<compile_context>
chip_gen: v6e
topology: v6e:2x2x1
jax: 0.10.0
libtpu: 0.0.40
codegen_flags: <defaults>
</compile_context>

<pallas_src>
import math
from functools import partial
from math import ceil

import jax
import jax.numpy as jnp
from jax import lax
from jax.experimental import pallas as pl
from jax.experimental.pallas import tpu as pltpu


# ------------------------------- fused kernel -------------------------------

def _forward_kernel(*refs, n_levels):
    """Whole SSGPool forward for ONE graph (the grid axis is the batch).

    Per graph:
      s   = pool_block1(x, A, mask)
      h   = relu(embed_block1(x, A, mask));      xs = [node_mean(h)]
      h, A', L', s = dense_ssgpool(h, A, s, mask); s_final = s
      per coarse level: s = pool_block(h, A'); h = relu(embed_block(h, A'));
                        xs += [node_mean(h)]  (+ ssgpool / s_final chaining)
      spectral + coarsening aux losses, lin1+relu+lin2+log_softmax head.
    """
    f32, bf16 = jnp.float32, jnp.bfloat16
    nb = n_levels + 1

    it = iter(refs)
    x_ref, adj_ref, mask_ref = next(it), next(it), next(it)

    def take7():
        return tuple(next(it) for _ in range(7))

    block_refs = [take7() for _ in range(2 + 2 * n_levels)]
    lin1_chunks = [next(it) for _ in range(nb)]
    lin1_b, lin2_w, lin2_b = next(it), next(it), next(it)
    logp_ref, spec_ref, coar_ref = next(it), next(it), next(it)

    pool1, embed1 = block_refs[0], block_refs[1]
    levels = [(block_refs[2 + 2 * i], block_refs[3 + 2 * i])
              for i in range(n_levels)]

    x = x_ref[0]                               # (N, Fin) f32
    adj_bf = adj_ref[0]                        # (N, N)   bf16 ({0,1} -> exact)
    adj_f = adj_bf.astype(f32)
    m = mask_ref[0]                            # (N, 1)   f32
    N = x.shape[0]
    cdim0 = (((0,), (0,)), ((), ()))           # contract dim0 with dim0 (s^T @)

    def ssum(a):                               # full sum -> (1,1), off the MXU
        return jnp.sum(jnp.sum(a, axis=-1, keepdims=True),
                       axis=-2, keepdims=True)

    def load_block(b):
        w1, b1, w2, b2, wl1, wl2, bl = b
        return (w1[...], b1[...], w2[...], b2[...], wl1[...], wl2[...], bl[...])

    def block_apply(bw, h, a_nodiag_bf, dis, mask_col, relu_out):
        """Dense GCN Block: conv1+relu(+mask) -> conv2+relu(+mask) -> concat-lin.

        a_nodiag_bf has a zero diagonal; the self loop of DenseGCNConv
        (add_loop=True sets diag to 1) is folded into the aggregation.
        """
        w1, b1, w2, b2, wl1, wl2, bl = bw

        def conv(hin, w, bias):
            hw = jnp.dot(hin.astype(bf16), w, preferred_element_type=f32)
            t = dis * hw
            agg = jnp.dot(a_nodiag_bf, t.astype(bf16),
                          preferred_element_type=f32) + t
            return dis * agg + bias            # D^-1/2 (A+I) D^-1/2 (hW) + b

        h1 = jnp.maximum(conv(h, w1, b1), 0.0)
        if mask_col is not None:
            h1 = h1 * mask_col
        h2 = jnp.maximum(conv(h1, w2, b2), 0.0)
        if mask_col is not None:
            h2 = h2 * mask_col
        out = (jnp.dot(h1.astype(bf16), wl1, preferred_element_type=f32)
               + jnp.dot(h2.astype(bf16), wl2, preferred_element_type=f32) + bl)
        return jnp.maximum(out, 0.0) if relu_out else out

    def ssgpool(h, a_f, a_bf, logits, mask_col):
        """softmax(+mask) -> x' = s_inv @ h, A' = s^T A s, L' = s^T (D-A) s."""
        e = jnp.exp(logits - jnp.max(logits, axis=-1, keepdims=True))
        s = e * pl.reciprocal(jnp.sum(e, axis=-1, keepdims=True), approx=True)
        if mask_col is not None:
            s = s * mask_col
        s_bf = s.astype(bf16)
        colsum = jnp.sum(s * s, axis=0, keepdims=True)                 # (1, K)
        s_scaled = (s * pl.reciprocal(colsum + 1e-10, approx=True)).astype(bf16)
        x_next = lax.dot_general(s_scaled, h.astype(bf16), cdim0,
                                 preferred_element_type=f32)           # (K, F)
        sta = lax.dot_general(s_bf, a_bf, cdim0,
                              preferred_element_type=f32)              # (K, N)
        adj_next = jnp.dot(sta.astype(bf16), s_bf,
                           preferred_element_type=f32)                 # (K, K)
        deg = jnp.sum(a_f, axis=-1, keepdims=True)                     # (N, 1)
        sds = lax.dot_general((s * deg).astype(bf16), s_bf, cdim0,
                              preferred_element_type=f32)              # (K, K)
        return x_next, adj_next, sds - adj_next, s

    # ---- level 0 (original resolution; driver guarantees zero diagonal) ----
    dis0 = lax.rsqrt(jnp.sum(adj_f, axis=-1, keepdims=True) + 1.0)
    s_logits = block_apply(load_block(pool1), x, adj_bf, dis0, m, relu_out=False)
    h = block_apply(load_block(embed1), x, adj_bf, dis0, m, relu_out=True)
    xs = [jnp.sum(h, axis=0, keepdims=True) * (1.0 / N)]               # (1, H)

    adj_last_f = adj_f
    h, adj_c, l_next, s = ssgpool(h, adj_f, adj_bf, s_logits, m)
    s_final = s                                 # identity @ s == s (bmm removed)

    # ---- coarse levels ----
    for li, (pool_b, embed_b) in enumerate(levels):
        Kc = adj_c.shape[0]
        r = lax.broadcasted_iota(jnp.int32, (Kc, Kc), 0)
        c = lax.broadcasted_iota(jnp.int32, (Kc, Kc), 1)
        a_nd = adj_c * (r != c).astype(f32)      # zero the tiny (K,K) diagonal
        a_nd_bf = a_nd.astype(bf16)
        dis = lax.rsqrt(jnp.sum(a_nd, axis=-1, keepdims=True) + 1.0)
        s_logits = block_apply(load_block(pool_b), h, a_nd_bf, dis, None,
                               relu_out=False)
        h = block_apply(load_block(embed_b), h, a_nd_bf, dis, None,
                        relu_out=True)
        xs.append(jnp.sum(h, axis=0, keepdims=True) * (1.0 / Kc))
        if li < n_levels - 1:
            adj_last_f = adj_c
            # TODO(synk): the reference passes the full-resolution mask here
            # (shape-mismatched for num_layers >= 6); coarse nodes are treated
            # as all-valid, matching the previous implementation's TODO.
            h, adj_c, l_next, s = ssgpool(h, adj_c, adj_c.astype(bf16),
                                          s_logits, None)
            s_final = jnp.dot(s_final.astype(bf16), s.astype(bf16),
                              preferred_element_type=f32)

    # ---- spectral loss (power-iteration Rayleigh mismatch; reconstructed) ----
    Nl = adj_last_f.shape[0]
    mask_l = m if Nl == N else jnp.ones((Nl, 1), f32)
    degl = jnp.sum(adj_last_f, axis=-1, keepdims=True)

    def lap_mv(vc):                             # (D - A) v, no (N,N) Laplacian
        return degl * vc - jnp.dot(adj_last_f, vc, preferred_element_type=f32)

    v = mask_l * lax.rsqrt(ssum(mask_l * mask_l) + 1e-10)
    for _ in range(3):
        v = lap_mv(v) * mask_l
        v = v * lax.rsqrt(ssum(v * v) + 1e-10)
    ray_fine = ssum(v * lap_mv(v))                                     # (1, 1)

    # TODO(synk): get_Spectral_loss body not provided; the fine vector is
    # projected through the column-normalized last-stage assignment (identical
    # to s_inv_final for a single pooling stage, which is the tested config).
    colsum_s = jnp.sum(s * s, axis=0, keepdims=True)
    p_mat = s * pl.reciprocal(colsum_s + 1e-10, approx=True)           # (Nl, K)
    u = jnp.sum(v * p_mat, axis=0, keepdims=True)                      # (1, K)
    lu = lax.dot_general(u, l_next, (((1,), (1,)), ((), ())),
                         preferred_element_type=f32)                   # L symmetric
    ray_coarse = ssum(u * lu)
    spec_ref[...] = jnp.abs(ray_fine - ray_coarse).reshape(1, 1, 1)

    # ---- coarsening loss: ||A + I_m - S S^T||_F via expansion (no NxN temp) --
    sf_bf = s_final.astype(bf16)
    g_mat = lax.dot_general(sf_bf, sf_bf, cdim0,
                            preferred_element_type=f32)                # S^T S (K,K)
    as_mat = jnp.dot(adj_bf, sf_bf, preferred_element_type=f32)        # A S (N,K)
    frob2 = (ssum(adj_f * adj_f) + ssum(m) + ssum(g_mat * g_mat)
             - 2.0 * ssum(as_mat * s_final) - 2.0 * ssum(s_final * s_final))
    coar_ref[...] = jnp.sqrt(jnp.maximum(frob2, 0.0)).reshape(1, 1, 1)

    # ---- JumpingKnowledge('cat') + MLP head + log_softmax ----
    acc = lin1_b[...]
    for xi, wch in zip(xs, lin1_chunks):        # [x0|x1|...] @ W1 as chunked sum
        acc = acc + jnp.dot(xi.astype(bf16), wch[...],
                            preferred_element_type=f32)
    h1 = jnp.maximum(acc, 0.0)                  # dropout(p=0.5) identity at eval
    logits = jnp.dot(h1.astype(bf16), lin2_w[...],
                     preferred_element_type=f32) + lin2_b[...]
    mx = jnp.max(logits, axis=-1, keepdims=True)
    lse = mx + jnp.log(jnp.sum(jnp.exp(logits - mx), axis=-1, keepdims=True))
    logp_ref[...] = (logits - lse).reshape(1, 1, -1)


# --------------------------------- wrapper -----------------------------------

def ssgpool_forward(params, x, adj, mask, lambda_=0.1):
    B, N, _ = adj.shape
    f_in = x.shape[-1]
    hidden = params["embed_block1"]["w2"].shape[1]
    n_classes = params["lin2_w"].shape[1]
    n_levels = len(params["embed_blocks"])
    nb = n_levels + 1

    x_f = x.astype(jnp.float32)
    adj_bf = adj.astype(jnp.bfloat16)          # {0,1} adjacency: exact in bf16
    mask_col = mask.astype(jnp.float32).reshape(B, N, 1)

    inputs = [x_f, adj_bf, mask_col]
    in_specs = [
        pl.BlockSpec((1, N, f_in), lambda g: (g, 0, 0)),
        pl.BlockSpec((1, N, N), lambda g: (g, 0, 0)),
        pl.BlockSpec((1, N, 1), lambda g: (g, 0, 0)),
    ]

    def add_weight(w, cast_bf16):
        w2d = w if w.ndim == 2 else w.reshape(1, -1)
        if cast_bf16:
            w2d = w2d.astype(jnp.bfloat16)
        inputs.append(w2d)
        # Weights: constant block index -> stay resident in VMEM across grid steps.
        in_specs.append(pl.BlockSpec(w2d.shape, lambda g: (0, 0)))

    blocks = [params["pool_block1"], params["embed_block1"]]
    for pp, ep in zip(params["pool_blocks"], params["embed_blocks"]):
        blocks += [pp, ep]
    for bp in blocks:
        h1 = bp["w1"].shape[1]
        add_weight(bp["w1"], True)
        add_weight(bp["b1"], False)
        add_weight(bp["w2"], True)
        add_weight(bp["b2"], False)
        add_weight(bp["wl"][:h1], True)         # concat-linear pre-split
        add_weight(bp["wl"][h1:], True)
        add_weight(bp["bl"], False)
    for i in range(nb):                         # lin1 split -> no concat in kernel
        add_weight(params["lin1_w"][i * hidden:(i + 1) * hidden], True)
    add_weight(params["lin1_b"], False)
    add_weight(params["lin2_w"], True)
    add_weight(params["lin2_b"], False)

    out_shape = (jax.ShapeDtypeStruct((B, 1, n_classes), jnp.float32),
                 jax.ShapeDtypeStruct((B, 1, 1), jnp.float32),
                 jax.ShapeDtypeStruct((B, 1, 1), jnp.float32))
    out_specs = (pl.BlockSpec((1, 1, n_classes), lambda g: (g, 0, 0)),
                 pl.BlockSpec((1, 1, 1), lambda g: (g, 0, 0)),
                 pl.BlockSpec((1, 1, 1), lambda g: (g, 0, 0)))

    logp3, spec3, coar3 = pl.pallas_call(
        partial(_forward_kernel, n_levels=n_levels),
        grid=(B,),                              # one graph per grid step
        in_specs=in_specs,
        out_specs=out_specs,
        out_shape=out_shape,
        compiler_params=pltpu.CompilerParams(
            dimension_semantics=("parallel",),  # v7x: shard batch over both TCs
            vmem_limit_bytes=32 * 1024 * 1024),
    )(*inputs)

    aux = lambda_ * (jnp.mean(spec3) + jnp.mean(coar3))
    return logp3[:, 0, :], aux


# --------------------------- parameter creation ------------------------------

def glorot(key, shape):
    lim = math.sqrt(6.0 / (shape[0] + shape[1]))
    return jax.random.uniform(key, shape, jnp.float32, -lim, lim)


def block_params(key, fin, hid, out):
    k1, k2, k3 = jax.random.split(key, 3)
    return {
        "w1": glorot(k1, (fin, hid)), "b1": jnp.zeros((hid,), jnp.float32),
        "w2": glorot(k2, (hid, out)), "b2": jnp.zeros((out,), jnp.float32),
        "wl": glorot(k3, (hid + out, out)),
        "bl": jnp.zeros((out,), jnp.float32),
    }


def make_params(key, num_features, hidden, num_classes, num_layers, N,
                ratio=0.25):
    keys = jax.random.split(key, 8)
    num_nodes = ceil(ratio * N)
    params = {
        "embed_block1": block_params(keys[0], num_features, hidden, hidden),
        "pool_block1": block_params(keys[1], num_features, hidden, num_nodes),
        "embed_blocks": [],
        "pool_blocks": [],
    }
    kidx = 2
    for _ in range(num_layers // 2 - 1):
        num_nodes = ceil(ratio * num_nodes)
        params["embed_blocks"].append(
            block_params(keys[kidx], hidden, hidden, hidden))
        params["pool_blocks"].append(
            block_params(keys[kidx + 1], hidden, hidden, num_nodes))
        kidx += 2
    nb = len(params["embed_blocks"]) + 1
    params["lin1_w"] = glorot(keys[6], (nb * hidden, hidden))
    params["lin1_b"] = jnp.zeros((hidden,), jnp.float32)
    params["lin2_w"] = glorot(keys[7], (hidden, num_classes))
    params["lin2_b"] = jnp.zeros((num_classes,), jnp.float32)
    return params


# ----------------------------------- main ------------------------------------

if __name__ == "__main__":
    B, N, F_IN, hidden, num_layers, num_classes = 2, 16, 8, 32, 4, 3

    key = jax.random.PRNGKey(0)
    kx, ka, kp = jax.random.split(key, 3)

    x = jax.random.normal(kx, (B, N, F_IN), jnp.float32)

    # symmetric random adjacency, zero diagonal
    a = (jax.random.uniform(ka, (B, N, N)) < 0.3).astype(jnp.float32)
    adj = jnp.maximum(a, jnp.swapaxes(a, 1, 2))
    adj = adj * (1.0 - jnp.eye(N, dtype=jnp.float32)[None])

    # graph 0 has 16 valid nodes, graph 1 has 12
    mask = jnp.stack([jnp.ones((N,), bool), jnp.arange(N) < 12], axis=0)
    mvalid = mask.astype(jnp.float32)
    adj = adj * mvalid[:, :, None] * mvalid[:, None, :]

    params = make_params(kp, F_IN, hidden, num_classes, num_layers, N)

    fwd = jax.jit(ssgpool_forward)
    log_probs, aux_loss = fwd(params, x, adj, mask)
    log_probs = jax.block_until_ready(log_probs)
    aux_loss = jax.block_until_ready(aux_loss)

    assert log_probs.shape == (B, num_classes)
    assert bool(jnp.all(jnp.isfinite(log_probs))) and bool(jnp.isfinite(aux_loss))
    print("KERNEL_OK")
</pallas_src>

<mosaic_0001>
module attributes {stable_mosaic.version = 11 : i64} {
  func.func @_forward_kernel(%arg0: i32, %arg1: memref<1x16x8xf32, #tpu.memory_space<vmem>>, %arg2: memref<1x16x16xbf16, #tpu.memory_space<vmem>>, %arg3: memref<1x16x1xf32, #tpu.memory_space<vmem>>, %arg4: memref<8x32xbf16, #tpu.memory_space<vmem>>, %arg5: memref<1x32xf32, #tpu.memory_space<vmem>>, %arg6: memref<32x4xbf16, #tpu.memory_space<vmem>>, %arg7: memref<1x4xf32, #tpu.memory_space<vmem>>, %arg8: memref<32x4xbf16, #tpu.memory_space<vmem>>, %arg9: memref<4x4xbf16, #tpu.memory_space<vmem>>, %arg10: memref<1x4xf32, #tpu.memory_space<vmem>>, %arg11: memref<8x32xbf16, #tpu.memory_space<vmem>>, %arg12: memref<1x32xf32, #tpu.memory_space<vmem>>, %arg13: memref<32x32xbf16, #tpu.memory_space<vmem>>, %arg14: memref<1x32xf32, #tpu.memory_space<vmem>>, %arg15: memref<32x32xbf16, #tpu.memory_space<vmem>>, %arg16: memref<32x32xbf16, #tpu.memory_space<vmem>>, %arg17: memref<1x32xf32, #tpu.memory_space<vmem>>, %arg18: memref<32x32xbf16, #tpu.memory_space<vmem>>, %arg19: memref<1x32xf32, #tpu.memory_space<vmem>>, %arg20: memref<32x1xbf16, #tpu.memory_space<vmem>>, %arg21: memref<1x1xf32, #tpu.memory_space<vmem>>, %arg22: memref<32x1xbf16, #tpu.memory_space<vmem>>, %arg23: memref<1x1xbf16, #tpu.memory_space<vmem>>, %arg24: memref<1x1xf32, #tpu.memory_space<vmem>>, %arg25: memref<32x32xbf16, #tpu.memory_space<vmem>>, %arg26: memref<1x32xf32, #tpu.memory_space<vmem>>, %arg27: memref<32x32xbf16, #tpu.memory_space<vmem>>, %arg28: memref<1x32xf32, #tpu.memory_space<vmem>>, %arg29: memref<32x32xbf16, #tpu.memory_space<vmem>>, %arg30: memref<32x32xbf16, #tpu.memory_space<vmem>>, %arg31: memref<1x32xf32, #tpu.memory_space<vmem>>, %arg32: memref<32x32xbf16, #tpu.memory_space<vmem>>, %arg33: memref<32x32xbf16, #tpu.memory_space<vmem>>, %arg34: memref<1x32xf32, #tpu.memory_space<vmem>>, %arg35: memref<32x3xbf16, #tpu.memory_space<vmem>>, %arg36: memref<1x3xf32, #tpu.memory_space<vmem>>, %arg37: memref<1x1x3xf32, #tpu.memory_space<vmem>>, %arg38: memref<1x1x1xf32, #tpu.memory_space<vmem>>, %arg39: memref<1x1x1xf32, #tpu.memory_space<vmem>>) attributes {dimension_semantics = [#tpu.dimension_semantics<parallel>], iteration_bounds = array<i64: 2>, scalar_prefetch = 0 : i64, scratch_operands = 0 : i64, tpu.core_type = #tpu.core_type<tc>, window_params = [{transform_indices = @transform_0, window_bounds = array<i64: 1, 16, 8>}, {transform_indices = @transform_1, window_bounds = array<i64: 1, 16, 16>}, {transform_indices = @transform_2, window_bounds = array<i64: 1, 16, 1>}, {pipeline_mode = #tpu.pipeline_mode<synchronous>, transform_indices = @transform_3, window_bounds = array<i64: 8, 32>}, {pipeline_mode = #tpu.pipeline_mode<synchronous>, transform_indices = @transform_4, window_bounds = array<i64: 1, 32>}, {pipeline_mode = #tpu.pipeline_mode<synchronous>, transform_indices = @transform_5, window_bounds = array<i64: 32, 4>}, {pipeline_mode = #tpu.pipeline_mode<synchronous>, transform_indices = @transform_6, window_bounds = array<i64: 1, 4>}, {pipeline_mode = #tpu.pipeline_mode<synchronous>, transform_indices = @transform_7, window_bounds = array<i64: 32, 4>}, {pipeline_mode = #tpu.pipeline_mode<synchronous>, transform_indices = @transform_8, window_bounds = array<i64: 4, 4>}, {pipeline_mode = #tpu.pipeline_mode<synchronous>, transform_indices = @transform_9, window_bounds = array<i64: 1, 4>}, {pipeline_mode = #tpu.pipeline_mode<synchronous>, transform_indices = @transform_10, window_bounds = array<i64: 8, 32>}, {pipeline_mode = #tpu.pipeline_mode<synchronous>, transform_indices = @transform_11, window_bounds = array<i64: 1, 32>}, {pipeline_mode = #tpu.pipeline_mode<synchronous>, transform_indices = @transform_12, window_bounds = array<i64: 32, 32>}, {pipeline_mode = #tpu.pipeline_mode<synchronous>, transform_indices = @transform_13, window_bounds = array<i64: 1, 32>}, {pipeline_mode = #tpu.pipeline_mode<synchronous>, transform_indices = @transform_14, window_bounds = array<i64: 32, 32>}, {pipeline_mode = #tpu.pipeline_mode<synchronous>, transform_indices = @transform_15, window_bounds = array<i64: 32, 32>}, {pipeline_mode = #tpu.pipeline_mode<synchronous>, transform_indices = @transform_16, window_bounds = array<i64: 1, 32>}, {pipeline_mode = #tpu.pipeline_mode<synchronous>, transform_indices = @transform_17, window_bounds = array<i64: 32, 32>}, {pipeline_mode = #tpu.pipeline_mode<synchronous>, transform_indices = @transform_18, window_bounds = array<i64: 1, 32>}, {pipeline_mode = #tpu.pipeline_mode<synchronous>, transform_indices = @transform_19, window_bounds = array<i64: 32, 1>}, {pipeline_mode = #tpu.pipeline_mode<synchronous>, transform_indices = @transform_20, window_bounds = array<i64: 1, 1>}, {pipeline_mode = #tpu.pipeline_mode<synchronous>, transform_indices = @transform_21, window_bounds = array<i64: 32, 1>}, {pipeline_mode = #tpu.pipeline_mode<synchronous>, transform_indices = @transform_22, window_bounds = array<i64: 1, 1>}, {pipeline_mode = #tpu.pipeline_mode<synchronous>, transform_indices = @transform_23, window_bounds = array<i64: 1, 1>}, {pipeline_mode = #tpu.pipeline_mode<synchronous>, transform_indices = @transform_24, window_bounds = array<i64: 32, 32>}, {pipeline_mode = #tpu.pipeline_mode<synchronous>, transform_indices = @transform_25, window_bounds = array<i64: 1, 32>}, {pipeline_mode = #tpu.pipeline_mode<synchronous>, transform_indices = @transform_26, window_bounds = array<i64: 32, 32>}, {pipeline_mode = #tpu.pipeline_mode<synchronous>, transform_indices = @transform_27, window_bounds = array<i64: 1, 32>}, {pipeline_mode = #tpu.pipeline_mode<synchronous>, transform_indices = @transform_28, window_bounds = array<i64: 32, 32>}, {pipeline_mode = #tpu.pipeline_mode<synchronous>, transform_indices = @transform_29, window_bounds = array<i64: 32, 32>}, {pipeline_mode = #tpu.pipeline_mode<synchronous>, transform_indices = @transform_30, window_bounds = array<i64: 1, 32>}, {pipeline_mode = #tpu.pipeline_mode<synchronous>, transform_indices = @transform_31, window_bounds = array<i64: 32, 32>}, {pipeline_mode = #tpu.pipeline_mode<synchronous>, transform_indices = @transform_32, window_bounds = array<i64: 32, 32>}, {pipeline_mode = #tpu.pipeline_mode<synchronous>, transform_indices = @transform_33, window_bounds = array<i64: 1, 32>}, {pipeline_mode = #tpu.pipeline_mode<synchronous>, transform_indices = @transform_34, window_bounds = array<i64: 32, 3>}, {pipeline_mode = #tpu.pipeline_mode<synchronous>, transform_indices = @transform_35, window_bounds = array<i64: 1, 3>}, {transform_indices = @transform_36, window_bounds = array<i64: 1, 1, 3>}, {transform_indices = @transform_37, window_bounds = array<i64: 1, 1, 1>}, {transform_indices = @transform_38, window_bounds = array<i64: 1, 1, 1>}]} {
    %c0 = arith.constant 0 : index
    %c0_0 = arith.constant 0 : index
    %c0_1 = arith.constant 0 : index
    %0 = vector.load %arg1[%c0, %c0_0, %c0_1] : memref<1x16x8xf32, #tpu.memory_space<vmem>>, vector<1x16x8xf32>
    %1 = vector.shape_cast %0 : vector<1x16x8xf32> to vector<16x8xf32>
    %c0_2 = arith.constant 0 : index
    %c0_3 = arith.constant 0 : index
    %c0_4 = arith.constant 0 : index
    %2 = vector.load %arg2[%c0_2, %c0_3, %c0_4] : memref<1x16x16xbf16, #tpu.memory_space<vmem>>, vector<1x16x16xbf16>
    %3 = vector.shape_cast %2 : vector<1x16x16xbf16> to vector<16x16xbf16>
    %4 = arith.extf %3 : vector<16x16xbf16> to vector<16x16xf32>
    %c0_5 = arith.constant 0 : index
    %c0_6 = arith.constant 0 : index
    %c0_7 = arith.constant 0 : index
    %5 = vector.load %arg3[%c0_5, %c0_6, %c0_7] : memref<1x16x1xf32, #tpu.memory_space<vmem>>, vector<1x16x1xf32>
    %6 = vector.shape_cast %5 : vector<1x16x1xf32> to vector<16x1xf32>
    %cst = arith.constant dense<0.000000e+00> : vector<16xf32>
    %7 = vector.multi_reduction <add>, %4, %cst [1] : vector<16x16xf32> to vector<16xf32>
    %8 = vector.shape_cast %7 : vector<16xf32> to vector<16x1xf32>
    %cst_8 = arith.constant 1.000000e+00 : f32
    %9 = vector.broadcast %cst_8 : f32 to vector<16x1xf32>
    %10 = arith.addf %8, %9 : vector<16x1xf32>
    %11 = math.rsqrt %10 : vector<16x1xf32>
    %c0_9 = arith.constant 0 : index
    %c0_10 = arith.constant 0 : index
    %12 = vector.load %arg4[%c0_9, %c0_10] : memref<8x32xbf16, #tpu.memory_space<vmem>>, vector<8x32xbf16>
    %c0_11 = arith.constant 0 : index
    %c0_12 = arith.constant 0 : index
    %13 = vector.load %arg5[%c0_11, %c0_12] : memref<1x32xf32, #tpu.memory_space<vmem>>, vector<1x32xf32>
    %c0_13 = arith.constant 0 : index
    %c0_14 = arith.constant 0 : index
    %14 = vector.load %arg6[%c0_13, %c0_14] : memref<32x4xbf16, #tpu.memory_space<vmem>>, vector<32x4xbf16>
    %c0_15 = arith.constant 0 : index
    %c0_16 = arith.constant 0 : index
    %15 = vector.load %arg7[%c0_15, %c0_16] : memref<1x4xf32, #tpu.memory_space<vmem>>, vector<1x4xf32>
    %c0_17 = arith.constant 0 : index
    %c0_18 = arith.constant 0 : index
    %16 = vector.load %arg8[%c0_17, %c0_18] : memref<32x4xbf16, #tpu.memory_space<vmem>>, vector<32x4xbf16>
    %c0_19 = arith.constant 0 : index
    %c0_20 = arith.constant 0 : index
    %17 = vector.load %arg9[%c0_19, %c0_20] : memref<4x4xbf16, #tpu.memory_space<vmem>>, vector<4x4xbf16>
    %c0_21 = arith.constant 0 : index
    %c0_22 = arith.constant 0 : index
    %18 = vector.load %arg10[%c0_21, %c0_22] : memref<1x4xf32, #tpu.memory_space<vmem>>, vector<1x4xf32>
    %19 = arith.truncf %1 : vector<16x8xf32> to vector<16x8xbf16>
    %cst_23 = arith.constant dense<0.000000e+00> : vector<16x32xf32>
    %20 = tpu.matmul %19, %12, %cst_23 {dimension_numbers = #tpu.dot_dimension_numbers<[1], [0], [0], [1], [0, 0, 1, 1], [], []>} : vector<16x8xbf16>, vector<8x32xbf16>, vector<16x32xf32> -> vector<16x32xf32>
    %21 = vector.broadcast %11 : vector<16x1xf32> to vector<16x32xf32>
    %22 = arith.mulf %21, %20 : vector<16x32xf32>
    %23 = arith.truncf %22 : vector<16x32xf32> to vector<16x32xbf16>
    %cst_24 = arith.constant dense<0.000000e+00> : vector<16x32xf32>
    %24 = tpu.matmul %3, %23, %cst_24 {dimension_numbers = #tpu.dot_dimension_numbers<[1], [0], [0], [1], [0, 0, 1, 1], [], []>} : vector<16x16xbf16>, vector<16x32xbf16>, vector<16x32xf32> -> vector<16x32xf32>
    %25 = arith.addf %24, %22 : vector<16x32xf32>
    %26 = vector.broadcast %11 : vector<16x1xf32> to vector<16x32xf32>
    %27 = arith.mulf %26, %25 : vector<16x32xf32>
    %28 = vector.broadcast %13 : vector<1x32xf32> to vector<16x32xf32>
    %29 = arith.addf %27, %28 : vector<16x32xf32>
    %cst_25 = arith.constant 0.000000e+00 : f32
    %30 = vector.broadcast %cst_25 : f32 to vector<16x32xf32>
    %31 = arith.maximumf %29, %30 : vector<16x32xf32>
    %32 = vector.broadcast %6 : vector<16x1xf32> to vector<16x32xf32>
    %33 = arith.mulf %31, %32 : vector<16x32xf32>
    %34 = arith.truncf %33 : vector<16x32xf32> to vector<16x32xbf16>
    %cst_26 = arith.constant dense<0.000000e+00> : vector<16x4xf32>
    %35 = tpu.matmul %34, %14, %cst_26 {dimension_numbers = #tpu.dot_dimension_numbers<[1], [0], [0], [1], [0, 0, 1, 1], [], []>} : vector<16x32xbf16>, vector<32x4xbf16>, vector<16x4xf32> -> vector<16x4xf32>
    %36 = vector.broadcast %11 : vector<16x1xf32> to vector<16x4xf32>
    %37 = arith.mulf %36, %35 : vector<16x4xf32>
    %38 = arith.truncf %37 : vector<16x4xf32> to vector<16x4xbf16>
    %cst_27 = arith.constant dense<0.000000e+00> : vector<16x4xf32>
    %39 = tpu.matmul %3, %38, %cst_27 {dimension_numbers = #tpu.dot_dimension_numbers<[1], [0], [0], [1], [0, 0, 1, 1], [], []>} : vector<16x16xbf16>, vector<16x4xbf16>, vector<16x4xf32> -> vector<16x4xf32>
    %40 = arith.addf %39, %37 : vector<16x4xf32>
    %41 = vector.broadcast %11 : vector<16x1xf32> to vector<16x4xf32>
    %42 = arith.mulf %41, %40 : vector<16x4xf32>
    %43 = vector.broadcast %15 : vector<1x4xf32> to vector<16x4xf32>
    %44 = arith.addf %42, %43 : vector<16x4xf32>
    %cst_28 = arith.constant 0.000000e+00 : f32
    %45 = vector.broadcast %cst_28 : f32 to vector<16x4xf32>
    %46 = arith.maximumf %44, %45 : vector<16x4xf32>
    %47 = vector.broadcast %6 : vector<16x1xf32> to vector<16x4xf32>
    %48 = arith.mulf %46, %47 : vector<16x4xf32>
    %49 = arith.truncf %33 : vector<16x32xf32> to vector<16x32xbf16>
    %cst_29 = arith.constant dense<0.000000e+00> : vector<16x4xf32>
    %50 = tpu.matmul %49, %16, %cst_29 {dimension_numbers = #tpu.dot_dimension_numbers<[1], [0], [0], [1], [0, 0, 1, 1], [], []>} : vector<16x32xbf16>, vector<32x4xbf16>, vector<16x4xf32> -> vector<16x4xf32>
    %51 = arith.truncf %48 : vector<16x4xf32> to vector<16x4xbf16>
    %cst_30 = arith.constant dense<0.000000e+00> : vector<16x4xf32>
    %52 = tpu.matmul %51, %17, %cst_30 {dimension_numbers = #tpu.dot_dimension_numbers<[1], [0], [0], [1], [0, 0, 1, 1], [], []>} : vector<16x4xbf16>, vector<4x4xbf16>, vector<16x4xf32> -> vector<16x4xf32>
    %53 = arith.addf %50, %52 : vector<16x4xf32>
    %54 = vector.broadcast %18 : vector<1x4xf32> to vector<16x4xf32>
    %55 = arith.addf %53, %54 : vector<16x4xf32>
    %c0_31 = arith.constant 0 : index
    %c0_32 = arith.constant 0 : index
    %56 = vector.load %arg11[%c0_31, %c0_32] : memref<8x32xbf16, #tpu.memory_space<vmem>>, vector<8x32xbf16>
    %c0_33 = arith.constant 0 : index
    %c0_34 = arith.constant 0 : index
    %57 = vector.load %arg12[%c0_33, %c0_34] : memref<1x32xf32, #tpu.memory_space<vmem>>, vector<1x32xf32>
    %c0_35 = arith.constant 0 : index
    %c0_36 = arith.constant 0 : index
    %58 = vector.load %arg13[%c0_35, %c0_36] : memref<32x32xbf16, #tpu.memory_space<vmem>>, vector<32x32xbf16>
    %c0_37 = arith.constant 0 : index
    %c0_38 = arith.constant 0 : index
    %59 = vector.load %arg14[%c0_37, %c0_38] : memref<1x32xf32, #tpu.memory_space<vmem>>, vector<1x32xf32>
    %c0_39 = arith.constant 0 : index
    %c0_40 = arith.constant 0 : index
    %60 = vector.load %arg15[%c0_39, %c0_40] : memref<32x32xbf16, #tpu.memory_space<vmem>>, vector<32x32xbf16>
    %c0_41 = arith.constant 0 : index
    %c0_42 = arith.constant 0 : index
    %61 = vector.load %arg16[%c0_41, %c0_42] : memref<32x32xbf16, #tpu.memory_space<vmem>>, vector<32x32xbf16>
    %c0_43 = arith.constant 0 : index
    %c0_44 = arith.constant 0 : index
    %62 = vector.load %arg17[%c0_43, %c0_44] : memref<1x32xf32, #tpu.memory_space<vmem>>, vector<1x32xf32>
    %63 = arith.truncf %1 : vector<16x8xf32> to vector<16x8xbf16>
    %cst_45 = arith.constant dense<0.000000e+00> : vector<16x32xf32>
    %64 = tpu.matmul %63, %56, %cst_45 {dimension_numbers = #tpu.dot_dimension_numbers<[1], [0], [0], [1], [0, 0, 1, 1], [], []>} : vector<16x8xbf16>, vector<8x32xbf16>, vector<16x32xf32> -> vector<16x32xf32>
    %65 = vector.broadcast %11 : vector<16x1xf32> to vector<16x32xf32>
    %66 = arith.mulf %65, %64 : vector<16x32xf32>
    %67 = arith.truncf %66 : vector<16x32xf32> to vector<16x32xbf16>
    %cst_46 = arith.constant dense<0.000000e+00> : vector<16x32xf32>
    %68 = tpu.matmul %3, %67, %cst_46 {dimension_numbers = #tpu.dot_dimension_numbers<[1], [0], [0], [1], [0, 0, 1, 1], [], []>} : vector<16x16xbf16>, vector<16x32xbf16>, vector<16x32xf32> -> vector<16x32xf32>
    %69 = arith.addf %68, %66 : vector<16x32xf32>
    %70 = vector.broadcast %11 : vector<16x1xf32> to vector<16x32xf32>
    %71 = arith.mulf %70, %69 : vector<16x32xf32>
    %72 = vector.broadcast %57 : vector<1x32xf32> to vector<16x32xf32>
    %73 = arith.addf %71, %72 : vector<16x32xf32>
    %cst_47 = arith.constant 0.000000e+00 : f32
    %74 = vector.broadcast %cst_47 : f32 to vector<16x32xf32>
    %75 = arith.maximumf %73, %74 : vector<16x32xf32>
    %76 = vector.broadcast %6 : vector<16x1xf32> to vector<16x32xf32>
    %77 = arith.mulf %75, %76 : vector<16x32xf32>
    %78 = arith.truncf %77 : vector<16x32xf32> to vector<16x32xbf16>
    %cst_48 = arith.constant dense<0.000000e+00> : vector<16x32xf32>
    %79 = tpu.matmul %78, %58, %cst_48 {dimension_numbers = #tpu.dot_dimension_numbers<[1], [0], [0], [1], [0, 0, 1, 1], [], []>} : vector<16x32xbf16>, vector<32x32xbf16>, vector<16x32xf32> -> vector<16x32xf32>
    %80 = vector.broadcast %11 : vector<16x1xf32> to vector<16x32xf32>
    %81 = arith.mulf %80, %79 : vector<16x32xf32>
    %82 = arith.truncf %81 : vector<16x32xf32> to vector<16x32xbf16>
    %cst_49 = arith.constant dense<0.000000e+00> : vector<16x32xf32>
    %83 = tpu.matmul %3, %82, %cst_49 {dimension_numbers = #tpu.dot_dimension_numbers<[1], [0], [0], [1], [0, 0, 1, 1], [], []>} : vector<16x16xbf16>, vector<16x32xbf16>, vector<16x32xf32> -> vector<16x32xf32>
    %84 = arith.addf %83, %81 : vector<16x32xf32>
    %85 = vector.broadcast %11 : vector<16x1xf32> to vector<16x32xf32>
    %86 = arith.mulf %85, %84 : vector<16x32xf32>
    %87 = vector.broadcast %59 : vector<1x32xf32> to vector<16x32xf32>
    %88 = arith.addf %86, %87 : vector<16x32xf32>
    %cst_50 = arith.constant 0.000000e+00 : f32
    %89 = vector.broadcast %cst_50 : f32 to vector<16x32xf32>
    %90 = arith.maximumf %88, %89 : vector<16x32xf32>
    %91 = vector.broadcast %6 : vector<16x1xf32> to vector<16x32xf32>
    %92 = arith.mulf %90, %91 : vector<16x32xf32>
    %93 = arith.truncf %77 : vector<16x32xf32> to vector<16x32xbf16>
    %cst_51 = arith.constant dense<0.000000e+00> : vector<16x32xf32>
    %94 = tpu.matmul %93, %60, %cst_51 {dimension_numbers = #tpu.dot_dimension_numbers<[1], [0], [0], [1], [0, 0, 1, 1], [], []>} : vector<16x32xbf16>, vector<32x32xbf16>, vector<16x32xf32> -> vector<16x32xf32>
    %95 = arith.truncf %92 : vector<16x32xf32> to vector<16x32xbf16>
    %cst_52 = arith.constant dense<0.000000e+00> : vector<16x32xf32>
    %96 = tpu.matmul %95, %61, %cst_52 {dimension_numbers = #tpu.dot_dimension_numbers<[1], [0], [0], [1], [0, 0, 1, 1], [], []>} : vector<16x32xbf16>, vector<32x32xbf16>, vector<16x32xf32> -> vector<16x32xf32>
    %97 = arith.addf %94, %96 : vector<16x32xf32>
    %98 = vector.broadcast %62 : vector<1x32xf32> to vector<16x32xf32>
    %99 = arith.addf %97, %98 : vector<16x32xf32>
    %cst_53 = arith.constant 0.000000e+00 : f32
    %100 = vector.broadcast %cst_53 : f32 to vector<16x32xf32>
    %101 = arith.maximumf %99, %100 : vector<16x32xf32>
    %cst_54 = arith.constant dense<0.000000e+00> : vector<32xf32>
    %102 = vector.multi_reduction <add>, %101, %cst_54 [0] : vector<16x32xf32> to vector<32xf32>
    %103 = vector.shape_cast %102 : vector<32xf32> to vector<1x32xf32>
    %cst_55 = arith.constant 6.250000e-02 : f32
    %104 = vector.broadcast %cst_55 : f32 to vector<1x32xf32>
    %105 = arith.mulf %103, %104 : vector<1x32xf32>
    %cst_56 = arith.constant dense<0xFF800000> : vector<16xf32>
    %106 = vector.multi_reduction <maximumf>, %55, %cst_56 [1] : vector<16x4xf32> to vector<16xf32>
    %107 = vector.shape_cast %106 : vector<16xf32> to vector<16x1xf32>
    %108 = vector.broadcast %107 : vector<16x1xf32> to vector<16x4xf32>
    %109 = arith.subf %55, %108 : vector<16x4xf32>
    %110 = math.exp %109 : vector<16x4xf32>
    %cst_57 = arith.constant dense<0.000000e+00> : vector<16xf32>
    %111 = vector.multi_reduction <add>, %110, %cst_57 [1] : vector<16x4xf32> to vector<16xf32>
    %112 = vector.shape_cast %111 : vector<16xf32> to vector<16x1xf32>
    %113 = tpu.reciprocal %112 {approx = true} : vector<16x1xf32> -> vector<16x1xf32>
    %114 = vector.broadcast %113 : vector<16x1xf32> to vector<16x4xf32>
    %115 = arith.mulf %110, %114 : vector<16x4xf32>
    %116 = vector.broadcast %6 : vector<16x1xf32> to vector<16x4xf32>
    %117 = arith.mulf %115, %116 : vector<16x4xf32>
    %118 = arith.truncf %117 : vector<16x4xf32> to vector<16x4xbf16>
    %119 = arith.mulf %117, %117 : vector<16x4xf32>
    %cst_58 = arith.constant dense<0.000000e+00> : vector<4xf32>
    %120 = vector.multi_reduction <add>, %119, %cst_58 [0] : vector<16x4xf32> to vector<4xf32>
    %121 = vector.shape_cast %120 : vector<4xf32> to vector<1x4xf32>
    %cst_59 = arith.constant 1.000000e-10 : f32
    %122 = vector.broadcast %cst_59 : f32 to vector<1x4xf32>
    %123 = arith.addf %121, %122 : vector<1x4xf32>
    %124 = tpu.reciprocal %123 {approx = true} : vector<1x4xf32> -> vector<1x4xf32>
    %125 = vector.broadcast %124 : vector<1x4xf32> to vector<16x4xf32>
    %126 = arith.mulf %117, %125 : vector<16x4xf32>
    %127 = arith.truncf %126 : vector<16x4xf32> to vector<16x4xbf16>
    %128 = arith.truncf %101 : vector<16x32xf32> to vector<16x32xbf16>
    %cst_60 = arith.constant dense<0.000000e+00> : vector<4x32xf32>
    %129 = tpu.matmul %127, %128, %cst_60 {dimension_numbers = #tpu.dot_dimension_numbers<[0], [0], [1], [1], [0, 1, 1, 1], [], []>} : vector<16x4xbf16>, vector<16x32xbf16>, vector<4x32xf32> -> vector<4x32xf32>
    %cst_61 = arith.constant dense<0.000000e+00> : vector<4x16xf32>
    %130 = tpu.matmul %118, %3, %cst_61 {dimension_numbers = #tpu.dot_dimension_numbers<[0], [0], [1], [1], [0, 1, 1, 1], [], []>} : vector<16x4xbf16>, vector<16x16xbf16>, vector<4x16xf32> -> vector<4x16xf32>
    %131 = arith.truncf %130 : vector<4x16xf32> to vector<4x16xbf16>
    %cst_62 = arith.constant dense<0.000000e+00> : vector<4x4xf32>
    %132 = tpu.matmul %131, %118, %cst_62 {dimension_numbers = #tpu.dot_dimension_numbers<[1], [0], [0], [1], [0, 0, 1, 1], [], []>} : vector<4x16xbf16>, vector<16x4xbf16>, vector<4x4xf32> -> vector<4x4xf32>
    %cst_63 = arith.constant dense<0.000000e+00> : vector<16xf32>
    %133 = vector.multi_reduction <add>, %4, %cst_63 [1] : vector<16x16xf32> to vector<16xf32>
    %134 = vector.shape_cast %133 : vector<16xf32> to vector<16x1xf32>
    %135 = vector.broadcast %134 : vector<16x1xf32> to vector<16x4xf32>
    %136 = arith.mulf %117, %135 : vector<16x4xf32>
    %137 = arith.truncf %136 : vector<16x4xf32> to vector<16x4xbf16>
    %cst_64 = arith.constant dense<0.000000e+00> : vector<4x4xf32>
    %138 = tpu.matmul %137, %118, %cst_64 {dimension_numbers = #tpu.dot_dimension_numbers<[0], [0], [1], [1], [0, 1, 1, 1], [], []>} : vector<16x4xbf16>, vector<16x4xbf16>, vector<4x4xf32> -> vector<4x4xf32>
    %139 = arith.subf %138, %132 : vector<4x4xf32>
    %140 = tpu.iota {dimensions = array<i32: 0>} : vector<4x4xi32>
    %141 = tpu.iota {dimensions = array<i32: 1>} : vector<4x4xi32>
    %142 = arith.cmpi ne, %140, %141 : vector<4x4xi32>
    %143 = arith.extui %142 : vector<4x4xi1> to vector<4x4xi32>
    %144 = arith.sitofp %143 : vector<4x4xi32> to vector<4x4xf32>
    %145 = arith.mulf %132, %144 : vector<4x4xf32>
    %146 = arith.truncf %145 : vector<4x4xf32> to vector<4x4xbf16>
    %cst_65 = arith.constant dense<0.000000e+00> : vector<4xf32>
    %147 = vector.multi_reduction <add>, %145, %cst_65 [1] : vector<4x4xf32> to vector<4xf32>
    %148 = vector.shape_cast %147 : vector<4xf32> to vector<4x1xf32>
    %cst_66 = arith.constant 1.000000e+00 : f32
    %149 = vector.broadcast %cst_66 : f32 to vector<4x1xf32>
    %150 = arith.addf %148, %149 : vector<4x1xf32>
    %151 = math.rsqrt %150 : vector<4x1xf32>
    %c0_67 = arith.constant 0 : index
    %c0_68 = arith.constant 0 : index
    %152 = vector.load %arg25[%c0_67, %c0_68] : memref<32x32xbf16, #tpu.memory_space<vmem>>, vector<32x32xbf16>
    %c0_69 = arith.constant 0 : index
    %c0_70 = arith.constant 0 : index
    %153 = vector.load %arg26[%c0_69, %c0_70] : memref<1x32xf32, #tpu.memory_space<vmem>>, vector<1x32xf32>
    %c0_71 = arith.constant 0 : index
    %c0_72 = arith.constant 0 : index
    %154 = vector.load %arg27[%c0_71, %c0_72] : memref<32x32xbf16, #tpu.memory_space<vmem>>, vector<32x32xbf16>
    %c0_73 = arith.constant 0 : index
    %c0_74 = arith.constant 0 : index
    %155 = vector.load %arg28[%c0_73, %c0_74] : memref<1x32xf32, #tpu.memory_space<vmem>>, vector<1x32xf32>
    %c0_75 = arith.constant 0 : index
    %c0_76 = arith.constant 0 : index
    %156 = vector.load %arg29[%c0_75, %c0_76] : memref<32x32xbf16, #tpu.memory_space<vmem>>, vector<32x32xbf16>
    %c0_77 = arith.constant 0 : index
    %c0_78 = arith.constant 0 : index
    %157 = vector.load %arg30[%c0_77, %c0_78] : memref<32x32xbf16, #tpu.memory_space<vmem>>, vector<32x32xbf16>
    %c0_79 = arith.constant 0 : index
    %c0_80 = arith.constant 0 : index
    %158 = vector.load %arg31[%c0_79, %c0_80] : memref<1x32xf32, #tpu.memory_space<vmem>>, vector<1x32xf32>
    %159 = arith.truncf %129 : vector<4x32xf32> to vector<4x32xbf16>
    %cst_81 = arith.constant dense<0.000000e+00> : vector<4x32xf32>
    %160 = tpu.matmul %159, %152, %cst_81 {dimension_numbers = #tpu.dot_dimension_numbers<[1], [0], [0], [1], [0, 0, 1, 1], [], []>} : vector<4x32xbf16>, vector<32x32xbf16>, vector<4x32xf32> -> vector<4x32xf32>
    %161 = vector.broadcast %151 : vector<4x1xf32> to vector<4x32xf32>
    %162 = arith.mulf %161, %160 : vector<4x32xf32>
    %163 = arith.truncf %162 : vector<4x32xf32> to vector<4x32xbf16>
    %cst_82 = arith.constant dense<0.000000e+00> : vector<4x32xf32>
    %164 = tpu.matmul %146, %163, %cst_82 {dimension_numbers = #tpu.dot_dimension_numbers<[1], [0], [0], [1], [0, 0, 1, 1], [], []>} : vector<4x4xbf16>, vector<4x32xbf16>, vector<4x32xf32> -> vector<4x32xf32>
    %165 = arith.addf %164, %162 : vector<4x32xf32>
    %166 = vector.broadcast %151 : vector<4x1xf32> to vector<4x32xf32>
    %167 = arith.mulf %166, %165 : vector<4x32xf32>
    %168 = vector.broadcast %153 : vector<1x32xf32> to vector<4x32xf32>
    %169 = arith.addf %167, %168 : vector<4x32xf32>
    %cst_83 = arith.constant 0.000000e+00 : f32
    %170 = vector.broadcast %cst_83 : f32 to vector<4x32xf32>
    %171 = arith.maximumf %169, %170 : vector<4x32xf32>
    %172 = arith.truncf %171 : vector<4x32xf32> to vector<4x32xbf16>
    %cst_84 = arith.constant dense<0.000000e+00> : vector<4x32xf32>
    %173 = tpu.matmul %172, %154, %cst_84 {dimension_numbers = #tpu.dot_dimension_numbers<[1], [0], [0], [1], [0, 0, 1, 1], [], []>} : vector<4x32xbf16>, vector<32x32xbf16>, vector<4x32xf32> -> vector<4x32xf32>
    %174 = vector.broadcast %151 : vector<4x1xf32> to vector<4x32xf32>
    %175 = arith.mulf %174, %173 : vector<4x32xf32>
    %176 = arith.truncf %175 : vector<4x32xf32> to vector<4x32xbf16>
    %cst_85 = arith.constant dense<0.000000e+00> : vector<4x32xf32>
    %177 = tpu.matmul %146, %176, %cst_85 {dimension_numbers = #tpu.dot_dimension_numbers<[1], [0], [0], [1], [0, 0, 1, 1], [], []>} : vector<4x4xbf16>, vector<4x32xbf16>, vector<4x32xf32> -> vector<4x32xf32>
    %178 = arith.addf %177, %175 : vector<4x32xf32>
    %179 = vector.broadcast %151 : vector<4x1xf32> to vector<4x32xf32>
    %180 = arith.mulf %179, %178 : vector<4x32xf32>
    %181 = vector.broadcast %155 : vector<1x32xf32> to vector<4x32xf32>
    %182 = arith.addf %180, %181 : vector<4x32xf32>
    %cst_86 = arith.constant 0.000000e+00 : f32
    %183 = vector.broadcast %cst_86 : f32 to vector<4x32xf32>
    %184 = arith.maximumf %182, %183 : vector<4x32xf32>
    %185 = arith.truncf %171 : vector<4x32xf32> to vector<4x32xbf16>
    %cst_87 = arith.constant dense<0.000000e+00> : vector<4x32xf32>
    %186 = tpu.matmul %185, %156, %cst_87 {dimension_numbers = #tpu.dot_dimension_numbers<[1], [0], [0], [1], [0, 0, 1, 1], [], []>} : vector<4x32xbf16>, vector<32x32xbf16>, vector<4x32xf32> -> vector<4x32xf32>
    %187 = arith.truncf %184 : vector<4x32xf32> to vector<4x32xbf16>
    %cst_88 = arith.constant dense<0.000000e+00> : vector<4x32xf32>
    %188 = tpu.matmul %187, %157, %cst_88 {dimension_numbers = #tpu.dot_dimension_numbers<[1], [0], [0], [1], [0, 0, 1, 1], [], []>} : vector<4x32xbf16>, vector<32x32xbf16>, vector<4x32xf32> -> vector<4x32xf32>
    %189 = arith.addf %186, %188 : vector<4x32xf32>
    %190 = vector.broadcast %158 : vector<1x32xf32> to vector<4x32xf32>
    %191 = arith.addf %189, %190 : vector<4x32xf32>
    %cst_89 = arith.constant 0.000000e+00 : f32
    %192 = vector.broadcast %cst_89 : f32 to vector<4x32xf32>
    %193 = arith.maximumf %191, %192 : vector<4x32xf32>
    %cst_90 = arith.constant dense<0.000000e+00> : vector<32xf32>
    %194 = vector.multi_reduction <add>, %193, %cst_90 [0] : vector<4x32xf32> to vector<32xf32>
    %195 = vector.shape_cast %194 : vector<32xf32> to vector<1x32xf32>
    %cst_91 = arith.constant 2.500000e-01 : f32
    %196 = vector.broadcast %cst_91 : f32 to vector<1x32xf32>
    %197 = arith.mulf %195, %196 : vector<1x32xf32>
    %cst_92 = arith.constant dense<0.000000e+00> : vector<16xf32>
    %198 = vector.multi_reduction <add>, %4, %cst_92 [1] : vector<16x16xf32> to vector<16xf32>
    %199 = vector.shape_cast %198 : vector<16xf32> to vector<16x1xf32>
    %200 = arith.mulf %6, %6 : vector<16x1xf32>
    %cst_93 = arith.constant dense<0.000000e+00> : vector<16xf32>
    %201 = vector.multi_reduction <add>, %200, %cst_93 [1] : vector<16x1xf32> to vector<16xf32>
    %202 = vector.shape_cast %201 : vector<16xf32> to vector<16x1xf32>
    %cst_94 = arith.constant dense<0.000000e+00> : vector<1xf32>
    %203 = vector.multi_reduction <add>, %202, %cst_94 [0] : vector<16x1xf32> to vector<1xf32>
    %204 = vector.shape_cast %203 : vector<1xf32> to vector<1x1xf32>
    %cst_95 = arith.constant 1.000000e-10 : f32
    %205 = vector.broadcast %cst_95 : f32 to vector<1x1xf32>
    %206 = arith.addf %204, %205 : vector<1x1xf32>
    %207 = math.rsqrt %206 : vector<1x1xf32>
    %208 = vector.broadcast %207 : vector<1x1xf32> to vector<16x1xf32>
    %209 = arith.mulf %6, %208 : vector<16x1xf32>
    %210 = arith.mulf %199, %209 : vector<16x1xf32>
    %cst_96 = arith.constant dense<0.000000e+00> : vector<16x1xf32>
    %211 = tpu.matmul %4, %209, %cst_96 {dimension_numbers = #tpu.dot_dimension_numbers<[1], [0], [0], [1], [0, 0, 1, 1], [], []>} : vector<16x16xf32>, vector<16x1xf32>, vector<16x1xf32> -> vector<16x1xf32>
    %212 = arith.subf %210, %211 : vector<16x1xf32>
    %213 = arith.mulf %212, %6 : vector<16x1xf32>
    %214 = arith.mulf %213, %213 : vector<16x1xf32>
    %cst_97 = arith.constant dense<0.000000e+00> : vector<16xf32>
    %215 = vector.multi_reduction <add>, %214, %cst_97 [1] : vector<16x1xf32> to vector<16xf32>
    %216 = vector.shape_cast %215 : vector<16xf32> to vector<16x1xf32>
    %cst_98 = arith.constant dense<0.000000e+00> : vector<1xf32>
    %217 = vector.multi_reduction <add>, %216, %cst_98 [0] : vector<16x1xf32> to vector<1xf32>
    %218 = vector.shape_cast %217 : vector<1xf32> to vector<1x1xf32>
    %cst_99 = arith.constant 1.000000e-10 : f32
    %219 = vector.broadcast %cst_99 : f32 to vector<1x1xf32>
    %220 = arith.addf %218, %219 : vector<1x1xf32>
    %221 = math.rsqrt %220 : vector<1x1xf32>
    %222 = vector.broadcast %221 : vector<1x1xf32> to vector<16x1xf32>
    %223 = arith.mulf %213, %222 : vector<16x1xf32>
    %224 = arith.mulf %199, %223 : vector<16x1xf32>
    %cst_100 = arith.constant dense<0.000000e+00> : vector<16x1xf32>
    %225 = tpu.matmul %4, %223, %cst_100 {dimension_numbers = #tpu.dot_dimension_numbers<[1], [0], [0], [1], [0, 0, 1, 1], [], []>} : vector<16x16xf32>, vector<16x1xf32>, vector<16x1xf32> -> vector<16x1xf32>
    %226 = arith.subf %224, %225 : vector<16x1xf32>
    %227 = arith.mulf %226, %6 : vector<16x1xf32>
    %228 = arith.mulf %227, %227 : vector<16x1xf32>
    %cst_101 = arith.constant dense<0.000000e+00> : vector<16xf32>
    %229 = vector.multi_reduction <add>, %228, %cst_101 [1] : vector<16x1xf32> to vector<16xf32>
    %230 = vector.shape_cast %229 : vector<16xf32> to vector<16x1xf32>
    %cst_102 = arith.constant dense<0.000000e+00> : vector<1xf32>
    %231 = vector.multi_reduction <add>, %230, %cst_102 [0] : vector<16x1xf32> to vector<1xf32>
    %232 = vector.shape_cast %231 : vector<1xf32> to vector<1x1xf32>
    %cst_103 = arith.constant 1.000000e-10 : f32
    %233 = vector.broadcast %cst_103 : f32 to vector<1x1xf32>
    %234 = arith.addf %232, %233 : vector<1x1xf32>
    %235 = math.rsqrt %234 : vector<1x1xf32>
    %236 = vector.broadcast %235 : vector<1x1xf32> to vector<16x1xf32>
    %237 = arith.mulf %227, %236 : vector<16x1xf32>
    %238 = arith.mulf %199, %237 : vector<16x1xf32>
    %cst_104 = arith.constant dense<0.000000e+00> : vector<16x1xf32>
    %239 = tpu.matmul %4, %237, %cst_104 {dimension_numbers = #tpu.dot_dimension_numbers<[1], [0], [0], [1], [0, 0, 1, 1], [], []>} : vector<16x16xf32>, vector<16x1xf32>, vector<16x1xf32> -> vector<16x1xf32>
    %240 = arith.subf %238, %239 : vector<16x1xf32>
    %241 = arith.mulf %240, %6 : vector<16x1xf32>
    %242 = arith.mulf %241, %241 : vector<16x1xf32>
    %cst_105 = arith.constant dense<0.000000e+00> : vector<16xf32>
    %243 = vector.multi_reduction <add>, %242, %cst_105 [1] : vector<16x1xf32> to vector<16xf32>
    %244 = vector.shape_cast %243 : vector<16xf32> to vector<16x1xf32>
    %cst_106 = arith.constant dense<0.000000e+00> : vector<1xf32>
    %245 = vector.multi_reduction <add>, %244, %cst_106 [0] : vector<16x1xf32> to vector<1xf32>
    %246 = vector.shape_cast %245 : vector<1xf32> to vector<1x1xf32>
    %cst_107 = arith.constant 1.000000e-10 : f32
    %247 = vector.broadcast %cst_107 : f32 to vector<1x1xf32>
    %248 = arith.addf %246, %247 : vector<1x1xf32>
    %249 = math.rsqrt %248 : vector<1x1xf32>
    %250 = vector.broadcast %249 : vector<1x1xf32> to vector<16x1xf32>
    %251 = arith.mulf %241, %250 : vector<16x1xf32>
    %252 = arith.mulf %199, %251 : vector<16x1xf32>
    %cst_108 = arith.constant dense<0.000000e+00> : vector<16x1xf32>
    %253 = tpu.matmul %4, %251, %cst_108 {dimension_numbers = #tpu.dot_dimension_numbers<[1], [0], [0], [1], [0, 0, 1, 1], [], []>} : vector<16x16xf32>, vector<16x1xf32>, vector<16x1xf32> -> vector<16x1xf32>
    %254 = arith.subf %252, %253 : vector<16x1xf32>
    %255 = arith.mulf %251, %254 : vector<16x1xf32>
    %cst_109 = arith.constant dense<0.000000e+00> : vector<16xf32>
    %256 = vector.multi_reduction <add>, %255, %cst_109 [1] : vector<16x1xf32> to vector<16xf32>
    %257 = vector.shape_cast %256 : vector<16xf32> to vector<16x1xf32>
    %cst_110 = arith.constant dense<0.000000e+00> : vector<1xf32>
    %258 = vector.multi_reduction <add>, %257, %cst_110 [0] : vector<16x1xf32> to vector<1xf32>
    %259 = vector.shape_cast %258 : vector<1xf32> to vector<1x1xf32>
    %260 = arith.mulf %117, %117 : vector<16x4xf32>
    %cst_111 = arith.constant dense<0.000000e+00> : vector<4xf32>
    %261 = vector.multi_reduction <add>, %260, %cst_111 [0] : vector<16x4xf32> to vector<4xf32>
    %262 = vector.shape_cast %261 : vector<4xf32> to vector<1x4xf32>
    %cst_112 = arith.constant 1.000000e-10 : f32
    %263 = vector.broadcast %cst_112 : f32 to vector<1x4xf32>
    %264 = arith.addf %262, %263 : vector<1x4xf32>
    %265 = tpu.reciprocal %264 {approx = true} : vector<1x4xf32> -> vector<1x4xf32>
    %266 = vector.broadcast %265 : vector<1x4xf32> to vector<16x4xf32>
    %267 = arith.mulf %117, %266 : vector<16x4xf32>
    %268 = vector.broadcast %251 : vector<16x1xf32> to vector<16x4xf32>
    %269 = arith.mulf %268, %267 : vector<16x4xf32>
    %cst_113 = arith.constant dense<0.000000e+00> : vector<4xf32>
    %270 = vector.multi_reduction <add>, %269, %cst_113 [0] : vector<16x4xf32> to vector<4xf32>
    %271 = vector.shape_cast %270 : vector<4xf32> to vector<1x4xf32>
    %cst_114 = arith.constant dense<0.000000e+00> : vector<1x4xf32>
    %272 = tpu.matmul %271, %139, %cst_114 {dimension_numbers = #tpu.dot_dimension_numbers<[1], [1], [0], [0], [0, 0, 1, 0], [], []>} : vector<1x4xf32>, vector<4x4xf32>, vector<1x4xf32> -> vector<1x4xf32>
    %273 = arith.mulf %271, %272 : vector<1x4xf32>
    %cst_115 = arith.constant dense<0.000000e+00> : vector<1xf32>
    %274 = vector.multi_reduction <add>, %273, %cst_115 [1] : vector<1x4xf32> to vector<1xf32>
    %275 = vector.shape_cast %274 : vector<1xf32> to vector<1x1xf32>
    %cst_116 = arith.constant dense<0.000000e+00> : vector<1xf32>
    %276 = vector.multi_reduction <add>, %275, %cst_116 [0] : vector<1x1xf32> to vector<1xf32>
    %277 = vector.shape_cast %276 : vector<1xf32> to vector<1x1xf32>
    %278 = arith.subf %259, %277 : vector<1x1xf32>
    %279 = math.absf %278 : vector<1x1xf32>
    %280 = vector.shape_cast %279 : vector<1x1xf32> to vector<1x1x1xf32>
    %c0_117 = arith.constant 0 : index
    %c0_118 = arith.constant 0 : index
    %c0_119 = arith.constant 0 : index
    %281 = vector.load %arg38[%c0_117, %c0_118, %c0_119] : memref<1x1x1xf32, #tpu.memory_space<vmem>>, vector<1x1x1xf32>
    tpu.vector_store %arg38[%c0_117, %c0_118, %c0_119], %280 {strides = array<i32>} : memref<1x1x1xf32, #tpu.memory_space<vmem>>, vector<1x1x1xf32>,
    %282 = arith.truncf %117 : vector<16x4xf32> to vector<16x4xbf16>
    %cst_120 = arith.constant dense<0.000000e+00> : vector<4x4xf32>
    %283 = tpu.matmul %282, %282, %cst_120 {dimension_numbers = #tpu.dot_dimension_numbers<[0], [0], [1], [1], [0, 1, 1, 1], [], []>} : vector<16x4xbf16>, vector<16x4xbf16>, vector<4x4xf32> -> vector<4x4xf32>
    %cst_121 = arith.constant dense<0.000000e+00> : vector<16x4xf32>
    %284 = tpu.matmul %3, %282, %cst_121 {dimension_numbers = #tpu.dot_dimension_numbers<[1], [0], [0], [1], [0, 0, 1, 1], [], []>} : vector<16x16xbf16>, vector<16x4xbf16>, vector<16x4xf32> -> vector<16x4xf32>
    %285 = arith.mulf %4, %4 : vector<16x16xf32>
    %cst_122 = arith.constant dense<0.000000e+00> : vector<16xf32>
    %286 = vector.multi_reduction <add>, %285, %cst_122 [1] : vector<16x16xf32> to vector<16xf32>
    %287 = vector.shape_cast %286 : vector<16xf32> to vector<16x1xf32>
    %cst_123 = arith.constant dense<0.000000e+00> : vector<1xf32>
    %288 = vector.multi_reduction <add>, %287, %cst_123 [0] : vector<16x1xf32> to vector<1xf32>
    %289 = vector.shape_cast %288 : vector<1xf32> to vector<1x1xf32>
    %cst_124 = arith.constant dense<0.000000e+00> : vector<16xf32>
    %290 = vector.multi_reduction <add>, %6, %cst_124 [1] : vector<16x1xf32> to vector<16xf32>
    %291 = vector.shape_cast %290 : vector<16xf32> to vector<16x1xf32>
    %cst_125 = arith.constant dense<0.000000e+00> : vector<1xf32>
    %292 = vector.multi_reduction <add>, %291, %cst_125 [0] : vector<16x1xf32> to vector<1xf32>
    %293 = vector.shape_cast %292 : vector<1xf32> to vector<1x1xf32>
    %294 = arith.addf %289, %293 : vector<1x1xf32>
    %295 = arith.mulf %283, %283 : vector<4x4xf32>
    %cst_126 = arith.constant dense<0.000000e+00> : vector<4xf32>
    %296 = vector.multi_reduction <add>, %295, %cst_126 [1] : vector<4x4xf32> to vector<4xf32>
    %297 = vector.shape_cast %296 : vector<4xf32> to vector<4x1xf32>
    %cst_127 = arith.constant dense<0.000000e+00> : vector<1xf32>
    %298 = vector.multi_reduction <add>, %297, %cst_127 [0] : vector<4x1xf32> to vector<1xf32>
    %299 = vector.shape_cast %298 : vector<1xf32> to vector<1x1xf32>
    %300 = arith.addf %294, %299 : vector<1x1xf32>
    %301 = arith.mulf %284, %117 : vector<16x4xf32>
    %cst_128 = arith.constant dense<0.000000e+00> : vector<16xf32>
    %302 = vector.multi_reduction <add>, %301, %cst_128 [1] : vector<16x4xf32> to vector<16xf32>
    %303 = vector.shape_cast %302 : vector<16xf32> to vector<16x1xf32>
    %cst_129 = arith.constant dense<0.000000e+00> : vector<1xf32>
    %304 = vector.multi_reduction <add>, %303, %cst_129 [0] : vector<16x1xf32> to vector<1xf32>
    %305 = vector.shape_cast %304 : vector<1xf32> to vector<1x1xf32>
    %cst_130 = arith.constant 2.000000e+00 : f32
    %306 = vector.broadcast %cst_130 : f32 to vector<1x1xf32>
    %307 = arith.mulf %306, %305 : vector<1x1xf32>
    %308 = arith.subf %300, %307 : vector<1x1xf32>
    %309 = arith.mulf %117, %117 : vector<16x4xf32>
    %cst_131 = arith.constant dense<0.000000e+00> : vector<16xf32>
    %310 = vector.multi_reduction <add>, %309, %cst_131 [1] : vector<16x4xf32> to vector<16xf32>
    %311 = vector.shape_cast %310 : vector<16xf32> to vector<16x1xf32>
    %cst_132 = arith.constant dense<0.000000e+00> : vector<1xf32>
    %312 = vector.multi_reduction <add>, %311, %cst_132 [0] : vector<16x1xf32> to vector<1xf32>
    %313 = vector.shape_cast %312 : vector<1xf32> to vector<1x1xf32>
    %cst_133 = arith.constant 2.000000e+00 : f32
    %314 = vector.broadcast %cst_133 : f32 to vector<1x1xf32>
    %315 = arith.mulf %314, %313 : vector<1x1xf32>
    %316 = arith.subf %308, %315 : vector<1x1xf32>
    %cst_134 = arith.constant 0.000000e+00 : f32
    %317 = vector.broadcast %cst_134 : f32 to vector<1x1xf32>
    %318 = arith.maximumf %316, %317 : vector<1x1xf32>
    %319 = math.sqrt %318 : vector<1x1xf32>
    %320 = vector.shape_cast %319 : vector<1x1xf32> to vector<1x1x1xf32>
    %c0_135 = arith.constant 0 : index
    %c0_136 = arith.constant 0 : index
    %c0_137 = arith.constant 0 : index
    %321 = vector.load %arg39[%c0_135, %c0_136, %c0_137] : memref<1x1x1xf32, #tpu.memory_space<vmem>>, vector<1x1x1xf32>
    tpu.vector_store %arg39[%c0_135, %c0_136, %c0_137], %320 {strides = array<i32>} : memref<1x1x1xf32, #tpu.memory_space<vmem>>, vector<1x1x1xf32>,
    %c0_138 = arith.constant 0 : index
    %c0_139 = arith.constant 0 : index
    %322 = vector.load %arg34[%c0_138, %c0_139] : memref<1x32xf32, #tpu.memory_space<vmem>>, vector<1x32xf32>
    %323 = arith.truncf %105 : vector<1x32xf32> to vector<1x32xbf16>
    %c0_140 = arith.constant 0 : index
    %c0_141 = arith.constant 0 : index
    %324 = vector.load %arg32[%c0_140, %c0_141] : memref<32x32xbf16, #tpu.memory_space<vmem>>, vector<32x32xbf16>
    %cst_142 = arith.constant dense<0.000000e+00> : vector<1x32xf32>
    %325 = tpu.matmul %323, %324, %cst_142 {dimension_numbers = #tpu.dot_dimension_numbers<[1], [0], [0], [1], [0, 0, 1, 1], [], []>} : vector<1x32xbf16>, vector<32x32xbf16>, vector<1x32xf32> -> vector<1x32xf32>
    %326 = arith.addf %322, %325 : vector<1x32xf32>
    %327 = arith.truncf %197 : vector<1x32xf32> to vector<1x32xbf16>
    %c0_143 = arith.constant 0 : index
    %c0_144 = arith.constant 0 : index
    %328 = vector.load %arg33[%c0_143, %c0_144] : memref<32x32xbf16, #tpu.memory_space<vmem>>, vector<32x32xbf16>
    %cst_145 = arith.constant dense<0.000000e+00> : vector<1x32xf32>
    %329 = tpu.matmul %327, %328, %cst_145 {dimension_numbers = #tpu.dot_dimension_numbers<[1], [0], [0], [1], [0, 0, 1, 1], [], []>} : vector<1x32xbf16>, vector<32x32xbf16>, vector<1x32xf32> -> vector<1x32xf32>
    %330 = arith.addf %326, %329 : vector<1x32xf32>
    %cst_146 = arith.constant 0.000000e+00 : f32
    %331 = vector.broadcast %cst_146 : f32 to vector<1x32xf32>
    %332 = arith.maximumf %330, %331 : vector<1x32xf32>
    %333 = arith.truncf %332 : vector<1x32xf32> to vector<1x32xbf16>
    %c0_147 = arith.constant 0 : index
    %c0_148 = arith.constant 0 : index
    %334 = vector.load %arg35[%c0_147, %c0_148] : memref<32x3xbf16, #tpu.memory_space<vmem>>, vector<32x3xbf16>
    %cst_149 = arith.constant dense<0.000000e+00> : vector<1x3xf32>
    %335 = tpu.matmul %333, %334, %cst_149 {dimension_numbers = #tpu.dot_dimension_numbers<[1], [0], [0], [1], [0, 0, 1, 1], [], []>} : vector<1x32xbf16>, vector<32x3xbf16>, vector<1x3xf32> -> vector<1x3xf32>
    %c0_150 = arith.constant 0 : index
    %c0_151 = arith.constant 0 : index
    %336 = vector.load %arg36[%c0_150, %c0_151] : memref<1x3xf32, #tpu.memory_space<vmem>>, vector<1x3xf32>
    %337 = arith.addf %335, %336 : vector<1x3xf32>
    %cst_152 = arith.constant dense<0xFF800000> : vector<1xf32>
    %338 = vector.multi_reduction <maximumf>, %337, %cst_152 [1] : vector<1x3xf32> to vector<1xf32>
    %339 = vector.shape_cast %338 : vector<1xf32> to vector<1x1xf32>
    %340 = vector.broadcast %339 : vector<1x1xf32> to vector<1x3xf32>
    %341 = arith.subf %337, %340 : vector<1x3xf32>
    %342 = math.exp %341 : vector<1x3xf32>
    %cst_153 = arith.constant dense<0.000000e+00> : vector<1xf32>
    %343 = vector.multi_reduction <add>, %342, %cst_153 [1] : vector<1x3xf32> to vector<1xf32>
    %344 = vector.shape_cast %343 : vector<1xf32> to vector<1x1xf32>
    %345 = math.log %344 : vector<1x1xf32>
    %346 = arith.addf %339, %345 : vector<1x1xf32>
    %347 = vector.broadcast %346 : vector<1x1xf32> to vector<1x3xf32>
    %348 = arith.subf %337, %347 : vector<1x3xf32>
    %349 = vector.shape_cast %348 : vector<1x3xf32> to vector<1x1x3xf32>
    %c0_154 = arith.constant 0 : index
    %c0_155 = arith.constant 0 : index
    %c0_156 = arith.constant 0 : index
    %350 = vector.load %arg37[%c0_154, %c0_155, %c0_156] : memref<1x1x3xf32, #tpu.memory_space<vmem>>, vector<1x1x3xf32>
    tpu.vector_store %arg37[%c0_154, %c0_155, %c0_156], %349 {strides = array<i32>} : memref<1x1x3xf32, #tpu.memory_space<vmem>>, vector<1x1x3xf32>,
    return
  }
  func.func @transform_0(%arg0: i32) -> (i32, i32, i32) {
    %c0_i32 = arith.constant 0 : i32
    %c0_i32_0 = arith.constant 0 : i32
    %c0_i32_1 = arith.constant 0 : i32
    return %arg0, %c0_i32, %c0_i32_0 : i32, i32, i32
  }
  func.func @transform_1(%arg0: i32) -> (i32, i32, i32) {
    %c0_i32 = arith.constant 0 : i32
    %c0_i32_0 = arith.constant 0 : i32
    %c0_i32_1 = arith.constant 0 : i32
    return %arg0, %c0_i32, %c0_i32_0 : i32, i32, i32
  }
  func.func @transform_2(%arg0: i32) -> (i32, i32, i32) {
    %c0_i32 = arith.constant 0 : i32
    %c0_i32_0 = arith.constant 0 : i32
    %c0_i32_1 = arith.constant 0 : i32
    return %arg0, %c0_i32, %c0_i32_0 : i32, i32, i32
  }
  func.func @transform_3(%arg0: i32) -> (i32, i32) {
    %c0_i32 = arith.constant 0 : i32
    %c0_i32_0 = arith.constant 0 : i32
    %c0_i32_1 = arith.constant 0 : i32
    return %c0_i32, %c0_i32_0 : i32, i32
  }
  func.func @transform_4(%arg0: i32) -> (i32, i32) {
    %c0_i32 = arith.constant 0 : i32
    %c0_i32_0 = arith.constant 0 : i32
    %c0_i32_1 = arith.constant 0 : i32
    return %c0_i32, %c0_i32_0 : i32, i32
  }
  func.func @transform_5(%arg0: i32) -> (i32, i32) {
    %c0_i32 = arith.constant 0 : i32
    %c0_i32_0 = arith.constant 0 : i32
    %c0_i32_1 = arith.constant 0 : i32
    return %c0_i32, %c0_i32_0 : i32, i32
  }
  func.func @transform_6(%arg0: i32) -> (i32, i32) {
    %c0_i32 = arith.constant 0 : i32
    %c0_i32_0 = arith.constant 0 : i32
    %c0_i32_1 = arith.constant 0 : i32
    return %c0_i32, %c0_i32_0 : i32, i32
  }
  func.func @transform_7(%arg0: i32) -> (i32, i32) {
    %c0_i32 = arith.constant 0 : i32
    %c0_i32_0 = arith.constant 0 : i32
    %c0_i32_1 = arith.constant 0 : i32
    return %c0_i32, %c0_i32_0 : i32, i32
  }
  func.func @transform_8(%arg0: i32) -> (i32, i32) {
    %c0_i32 = arith.constant 0 : i32
    %c0_i32_0 = arith.constant 0 : i32
    %c0_i32_1 = arith.constant 0 : i32
    return %c0_i32, %c0_i32_0 : i32, i32
  }
  func.func @transform_9(%arg0: i32) -> (i32, i32) {
    %c0_i32 = arith.constant 0 : i32
    %c0_i32_0 = arith.constant 0 : i32
    %c0_i32_1 = arith.constant 0 : i32
    return %c0_i32, %c0_i32_0 : i32, i32
  }
  func.func @transform_10(%arg0: i32) -> (i32, i32) {
    %c0_i32 = arith.constant 0 : i32
    %c0_i32_0 = arith.constant 0 : i32
    %c0_i32_1 = arith.constant 0 : i32
    return %c0_i32, %c0_i32_0 : i32, i32
  }
  func.func @transform_11(%arg0: i32) -> (i32, i32) {
    %c0_i32 = arith.constant 0 : i32
    %c0_i32_0 = arith.constant 0 : i32
    %c0_i32_1 = arith.constant 0 : i32
    return %c0_i32, %c0_i32_0 : i32, i32
  }
  func.func @transform_12(%arg0: i32) -> (i32, i32) {
    %c0_i32 = arith.constant 0 : i32
    %c0_i32_0 = arith.constant 0 : i32
    %c0_i32_1 = arith.constant 0 : i32
    return %c0_i32, %c0_i32_0 : i32, i32
  }
  func.func @transform_13(%arg0: i32) -> (i32, i32) {
    %c0_i32 = arith.constant 0 : i32
    %c0_i32_0 = arith.constant 0 : i32
    %c0_i32_1 = arith.constant 0 : i32
    return %c0_i32, %c0_i32_0 : i32, i32
  }
  func.func @transform_14(%arg0: i32) -> (i32, i32) {
    %c0_i32 = arith.constant 0 : i32
    %c0_i32_0 = arith.constant 0 : i32
    %c0_i32_1 = arith.constant 0 : i32
    return %c0_i32, %c0_i32_0 : i32, i32
  }
  func.func @transform_15(%arg0: i32) -> (i32, i32) {
    %c0_i32 = arith.constant 0 : i32
    %c0_i32_0 = arith.constant 0 : i32
    %c0_i32_1 = arith.constant 0 : i32
    return %c0_i32, %c0_i32_0 : i32, i32
  }
  func.func @transform_16(%arg0: i32) -> (i32, i32) {
    %c0_i32 = arith.constant 0 : i32
    %c0_i32_0 = arith.constant 0 : i32
    %c0_i32_1 = arith.constant 0 : i32
    return %c0_i32, %c0_i32_0 : i32, i32
  }
  func.func @transform_17(%arg0: i32) -> (i32, i32) {
    %c0_i32 = arith.constant 0 : i32
    %c0_i32_0 = arith.constant 0 : i32
    %c0_i32_1 = arith.constant 0 : i32
    return %c0_i32, %c0_i32_0 : i32, i32
  }
  func.func @transform_18(%arg0: i32) -> (i32, i32) {
    %c0_i32 = arith.constant 0 : i32
    %c0_i32_0 = arith.constant 0 : i32
    %c0_i32_1 = arith.constant 0 : i32
    return %c0_i32, %c0_i32_0 : i32, i32
  }
  func.func @transform_19(%arg0: i32) -> (i32, i32) {
    %c0_i32 = arith.constant 0 : i32
    %c0_i32_0 = arith.constant 0 : i32
    %c0_i32_1 = arith.constant 0 : i32
    return %c0_i32, %c0_i32_0 : i32, i32
  }
  func.func @transform_20(%arg0: i32) -> (i32, i32) {
    %c0_i32 = arith.constant 0 : i32
    %c0_i32_0 = arith.constant 0 : i32
    %c0_i32_1 = arith.constant 0 : i32
    return %c0_i32, %c0_i32_0 : i32, i32
  }
  func.func @transform_21(%arg0: i32) -> (i32, i32) {
    %c0_i32 = arith.constant 0 : i32
    %c0_i32_0 = arith.constant 0 : i32
    %c0_i32_1 = arith.constant 0 : i32
    return %c0_i32, %c0_i32_0 : i32, i32
  }
  func.func @transform_22(%arg0: i32) -> (i32, i32) {
    %c0_i32 = arith.constant 0 : i32
    %c0_i32_0 = arith.constant 0 : i32
    %c0_i32_1 = arith.constant 0 : i32
    return %c0_i32, %c0_i32_0 : i32, i32
  }
  func.func @transform_23(%arg0: i32) -> (i32, i32) {
    %c0_i32 = arith.constant 0 : i32
    %c0_i32_0 = arith.constant 0 : i32
    %c0_i32_1 = arith.constant 0 : i32
    return %c0_i32, %c0_i32_0 : i32, i32
  }
  func.func @transform_24(%arg0: i32) -> (i32, i32) {
    %c0_i32 = arith.constant 0 : i32
    %c0_i32_0 = arith.constant 0 : i32
    %c0_i32_1 = arith.constant 0 : i32
    return %c0_i32, %c0_i32_0 : i32, i32
  }
  func.func @transform_25(%arg0: i32) -> (i32, i32) {
    %c0_i32 = arith.constant 0 : i32
    %c0_i32_0 = arith.constant 0 : i32
    %c0_i32_1 = arith.constant 0 : i32
    return %c0_i32, %c0_i32_0 : i32, i32
  }
  func.func @transform_26(%arg0: i32) -> (i32, i32) {
    %c0_i32 = arith.constant 0 : i32
    %c0_i32_0 = arith.constant 0 : i32
    %c0_i32_1 = arith.constant 0 : i32
    return %c0_i32, %c0_i32_0 : i32, i32
  }
  func.func @transform_27(%arg0: i32) -> (i32, i32) {
    %c0_i32 = arith.constant 0 : i32
    %c0_i32_0 = arith.constant 0 : i32
    %c0_i32_1 = arith.constant 0 : i32
    return %c0_i32, %c0_i32_0 : i32, i32
  }
  func.func @transform_28(%arg0: i32) -> (i32, i32) {
    %c0_i32 = arith.constant 0 : i32
    %c0_i32_0 = arith.constant 0 : i32
    %c0_i32_1 = arith.constant 0 : i32
    return %c0_i32, %c0_i32_0 : i32, i32
  }
  func.func @transform_29(%arg0: i32) -> (i32, i32) {
    %c0_i32 = arith.constant 0 : i32
    %c0_i32_0 = arith.constant 0 : i32
    %c0_i32_1 = arith.constant 0 : i32
    return %c0_i32, %c0_i32_0 : i32, i32
  }
  func.func @transform_30(%arg0: i32) -> (i32, i32) {
    %c0_i32 = arith.constant 0 : i32
    %c0_i32_0 = arith.constant 0 : i32
    %c0_i32_1 = arith.constant 0 : i32
    return %c0_i32, %c0_i32_0 : i32, i32
  }
  func.func @transform_31(%arg0: i32) -> (i32, i32) {
    %c0_i32 = arith.constant 0 : i32
    %c0_i32_0 = arith.constant 0 : i32
    %c0_i32_1 = arith.constant 0 : i32
    return %c0_i32, %c0_i32_0 : i32, i32
  }
  func.func @transform_32(%arg0: i32) -> (i32, i32) {
    %c0_i32 = arith.constant 0 : i32
    %c0_i32_0 = arith.constant 0 : i32
    %c0_i32_1 = arith.constant 0 : i32
    return %c0_i32, %c0_i32_0 : i32, i32
  }
  func.func @transform_33(%arg0: i32) -> (i32, i32) {
    %c0_i32 = arith.constant 0 : i32
    %c0_i32_0 = arith.constant 0 : i32
    %c0_i32_1 = arith.constant 0 : i32
    return %c0_i32, %c0_i32_0 : i32, i32
  }
  func.func @transform_34(%arg0: i32) -> (i32, i32) {
    %c0_i32 = arith.constant 0 : i32
    %c0_i32_0 = arith.constant 0 : i32
    %c0_i32_1 = arith.constant 0 : i32
    return %c0_i32, %c0_i32_0 : i32, i32
  }
  func.func @transform_35(%arg0: i32) -> (i32, i32) {
    %c0_i32 = arith.constant 0 : i32
    %c0_i32_0 = arith.constant 0 : i32
    %c0_i32_1 = arith.constant 0 : i32
    return %c0_i32, %c0_i32_0 : i32, i32
  }
  func.func @transform_36(%arg0: i32) -> (i32, i32, i32) {
    %c0_i32 = arith.constant 0 : i32
    %c0_i32_0 = arith.constant 0 : i32
    %c0_i32_1 = arith.constant 0 : i32
    return %arg0, %c0_i32, %c0_i32_0 : i32, i32, i32
  }
  func.func @transform_37(%arg0: i32) -> (i32, i32, i32) {
    %c0_i32 = arith.constant 0 : i32
    %c0_i32_0 = arith.constant 0 : i32
    %c0_i32_1 = arith.constant 0 : i32
    return %arg0, %c0_i32, %c0_i32_0 : i32, i32, i32
  }
  func.func @transform_38(%arg0: i32) -> (i32, i32, i32) {
    %c0_i32 = arith.constant 0 : i32
    %c0_i32_0 = arith.constant 0 : i32
    %c0_i32_1 = arith.constant 0 : i32
    return %arg0, %c0_i32, %c0_i32_0 : i32, i32, i32
  }
}

</mosaic_0001>

<llo_original>
// kernel: ssgpool_forward.1
$region0: #{ssgpool_forward.1}
  #allocation0 [shape = 'u32[]', space=smem, size = 0x4, offset = 0x4, fixed_abs, tag = 'smem constant byte address 0x4 - core index']
  #allocation1 [shape = 'u32[144,128]{1,0:T(1,128)}', space=vmem, size = 0x12000, scoped, tag = 'internal scratch']
  #allocation2 [shape = 'f32[1,1]{1,0:T(1,128)S(1)}', space=vmem, size = 0x200, scoped, tag = 'scoped memory for ssgpool_forward.1']
  #allocation3 [shape = 'bf16[1,1]{1,0:T(2,128)S(1)}', space=vmem, size = 0x200, scoped, tag = 'scoped memory for ssgpool_forward.1']
  #allocation4 [shape = 'f32[1,1]{1,0:T(1,128)S(1)}', space=vmem, size = 0x200, scoped, tag = 'scoped memory for ssgpool_forward.1']
  %s0 = inlined_call_operand.smem [shape: u32[39], index: -1, kind: input, shape index: {}]
  %s1 = sld [smem:[%s0]]
  %s2 = scalar_lea.smem %s0, 1
  %s3 = sld [smem:[%s2]]
  %s4 = scalar_lea.smem %s0, 2
  %s5 = sld [smem:[%s4]]
  %s6 = scalar_lea.smem %s0, 3
  %s7 = sld [smem:[%s6]]
  %s8 = scalar_lea.smem %s0, 4
  %s9 = sld [smem:[%s8]]
  %s10 = scalar_lea.smem %s0, 5
  %s11 = sld [smem:[%s10]]
  %s12 = scalar_lea.smem %s0, 6
  %s13 = sld [smem:[%s12]]
  %s14 = scalar_lea.smem %s0, 7
  %s15 = sld [smem:[%s14]]
  %s16 = scalar_lea.smem %s0, 8
  %s17 = sld [smem:[%s16]]
  %s18 = scalar_lea.smem %s0, 9
  %s19 = sld [smem:[%s18]]
  %s20 = scalar_lea.smem %s0, 10
  %s21 = sld [smem:[%s20]]
  %s22 = scalar_lea.smem %s0, 11
  %s23 = sld [smem:[%s22]]
  %s24 = scalar_lea.smem %s0, 12
  %s25 = sld [smem:[%s24]]
  %s26 = scalar_lea.smem %s0, 13
  %s27 = sld [smem:[%s26]]
  %s28 = scalar_lea.smem %s0, 14
  %s29 = sld [smem:[%s28]]
  %s30 = scalar_lea.smem %s0, 15
  %s31 = sld [smem:[%s30]]
  %s32 = scalar_lea.smem %s0, 16
  %s33 = sld [smem:[%s32]]
  %s34 = scalar_lea.smem %s0, 17
  %s35 = sld [smem:[%s34]]
  %s36 = scalar_lea.smem %s0, 18
  %s37 = sld [smem:[%s36]]
  %s38 = scalar_lea.smem %s0, 19
  %s39 = sld [smem:[%s38]]
  %s40 = scalar_lea.smem %s0, 20
  %s41 = sld [smem:[%s40]]
  %s42 = scalar_lea.smem %s0, 21
  %s43 = sld [smem:[%s42]]
  %s44 = scalar_lea.smem %s0, 22
  %s45 = sld [smem:[%s44]]
  %s46 = scalar_lea.smem %s0, 23
  %s47 = sld [smem:[%s46]]
  %s48 = scalar_lea.smem %s0, 24
  %s49 = sld [smem:[%s48]]
  %s50 = scalar_lea.smem %s0, 25
  %s51 = sld [smem:[%s50]]
  %s52 = scalar_lea.smem %s0, 26
  %s53 = sld [smem:[%s52]]
  %s54 = scalar_lea.smem %s0, 27
  %s55 = sld [smem:[%s54]]
  %s56 = scalar_lea.smem %s0, 28
  %s57 = sld [smem:[%s56]]
  %s58 = scalar_lea.smem %s0, 29
  %s59 = sld [smem:[%s58]]
  %s60 = scalar_lea.smem %s0, 30
  %s61 = sld [smem:[%s60]]
  %s62 = scalar_lea.smem %s0, 31
  %s63 = sld [smem:[%s62]]
  %s64 = scalar_lea.smem %s0, 32
  %s65 = sld [smem:[%s64]]
  %s66 = scalar_lea.smem %s0, 33
  %s67 = sld [smem:[%s66]]
  %s68 = scalar_lea.smem %s0, 34
  %s69 = sld [smem:[%s68]]
  %s70 = scalar_lea.smem %s0, 35
  %s71 = sld [smem:[%s70]]
  %s72 = scalar_lea.smem %s0, 36
  %s73 = sld [smem:[%s72]]
  %s74 = scalar_lea.smem %s0, 37
  %s75 = sld [smem:[%s74]]
  %s76 = scalar_lea.smem %s0, 38
  %s77 = sld [smem:[%s76]]
  %78 = xla_tuple %s73, %s75, %s77
  %s79 = sld [smem:[#allocation0]]
  $region193: #{ssgpool_forward.1} parent=0
    _
  %s81 = ssub.s32 1, %s79
  %s82 = scalar_select 0, %s81, %s79
  %v83 = vstv %s41
  %84 = vst [vmem:[#allocation2] sm:$0x1] %v83
  %v85 = vstv %s45
  %86 = vst [vmem:[#allocation3] sm:$0x1] %v85
  %v87 = vstv %s47
  %88 = vst [vmem:[#allocation4] sm:$0x1] %v87
  $region1: #{ssgpool_forward.1} parent=0
    #allocation5 [shape = 'u8[1024]{0}', space=vmem, size = 0x400, scoped, tag = 'output window, operand 0']
    #allocation6 [shape = 's32[2]{0}', space=sflag, size = 0x8, scoped, tag = 'scoped memory for ssgpool_forward.1']
    %89 = vsyncpa [#allocation6], 0
    %s90 = scalar_lea.sflag [#allocation6], 1
    %91 = vsyncpa %s90, 0
    loop: start=0, step=1, limit=4
    $region2: #{ssgpool_forward.1} parent=1 // loop_pre_header
      _
    $region3: #{ssgpool_forward.1} parent=1 // loop_header
      %s93 = sphi 0, %s97
      %p94 = scmp.ge.s32.totalorder %s93, 4
      %s103 = sphi 0, %s105
      %s106 = sphi 0, %s103
      %s107 = sphi 0, %s106
      %s123 = sphi 0, %s107
      %s129 = sphi 0, %s131
      %s132 = sphi 0, %s129
      %s133 = sphi 0, %s132
      %s149 = sphi 0, %s133
      %s155 = sphi 0, %s157
      %s158 = sphi 0, %s155
      %s159 = sphi 0, %s158
      %s175 = sphi 0, %s159
      %s179 = sphi 0, %s179
      %s181 = sphi 0, %s179
      %s182 = sphi 0, %s181
      %s196 = sphi 0, %s182
      %s200 = sphi 0, %s200
      %s202 = sphi 0, %s200
      %s203 = sphi 0, %s202
      %s217 = sphi 0, %s203
      %s221 = sphi 0, %s221
      %s223 = sphi 0, %s221
      %s224 = sphi 0, %s223
      %s238 = sphi 0, %s224
      %s242 = sphi 0, %s242
      %s244 = sphi 0, %s242
      %s245 = sphi 0, %s244
      %s259 = sphi 0, %s245
      %s263 = sphi 0, %s263
      %s265 = sphi 0, %s263
      %s266 = sphi 0, %s265
      %s280 = sphi 0, %s266
      %s284 = sphi 0, %s284
      %s286 = sphi 0, %s284
      %s287 = sphi 0, %s286
      %s301 = sphi 0, %s287
      %s305 = sphi 0, %s305
      %s307 = sphi 0, %s305
      %s308 = sphi 0, %s307
      %s322 = sphi 0, %s308
      %s326 = sphi 0, %s326
      %s328 = sphi 0, %s326
      %s329 = sphi 0, %s328
      %s343 = sphi 0, %s329
      %s347 = sphi 0, %s347
      %s349 = sphi 0, %s347
      %s350 = sphi 0, %s349
      %s364 = sphi 0, %s350
      %s368 = sphi 0, %s368
      %s370 = sphi 0, %s368
      %s371 = sphi 0, %s370
      %s385 = sphi 0, %s371
      %s389 = sphi 0, %s389
      %s391 = sphi 0, %s389
      %s392 = sphi 0, %s391
      %s406 = sphi 0, %s392
      %s410 = sphi 0, %s410
      %s412 = sphi 0, %s410
      %s413 = sphi 0, %s412
      %s427 = sphi 0, %s413
      %s431 = sphi 0, %s431
      %s433 = sphi 0, %s431
      %s434 = sphi 0, %s433
      %s448 = sphi 0, %s434
      %s452 = sphi 0, %s452
      %s454 = sphi 0, %s452
      %s455 = sphi 0, %s454
      %s469 = sphi 0, %s455
      %s473 = sphi 0, %s473
      %s475 = sphi 0, %s473
      %s476 = sphi 0, %s475
      %s490 = sphi 0, %s476
      %s494 = sphi 0, %s494
      %s496 = sphi 0, %s494
      %s497 = sphi 0, %s496
      %s511 = sphi 0, %s497
      %s515 = sphi 0, %s515
      %s517 = sphi 0, %s515
      %s518 = sphi 0, %s517
      %s532 = sphi 0, %s518
      %s536 = sphi 0, %s536
      %s538 = sphi 0, %s536
      %s539 = sphi 0, %s538
      %s553 = sphi 0, %s539
      %s557 = sphi 0, %s557
      %s559 = sphi 0, %s557
      %s560 = sphi 0, %s559
      %s574 = sphi 0, %s560
      %s578 = sphi 0, %s578
      %s580 = sphi 0, %s578
      %s581 = sphi 0, %s580
      %s595 = sphi 0, %s581
      %s599 = sphi 0, %s599
      %s601 = sphi 0, %s599
      %s602 = sphi 0, %s601
      %s616 = sphi 0, %s602
      %s620 = sphi 0, %s620
      %s622 = sphi 0, %s620
      %s623 = sphi 0, %s622
      %s637 = sphi 0, %s623
      %s641 = sphi 0, %s641
      %s643 = sphi 0, %s641
      %s644 = sphi 0, %s643
      %s658 = sphi 0, %s644
      %s662 = sphi 0, %s662
      %s664 = sphi 0, %s662
      %s665 = sphi 0, %s664
      %s679 = sphi 0, %s665
      %s683 = sphi 0, %s683
      %s685 = sphi 0, %s683
      %s686 = sphi 0, %s685
      %s700 = sphi 0, %s686
      %s704 = sphi 0, %s704
      %s706 = sphi 0, %s704
      %s707 = sphi 0, %s706
      %s721 = sphi 0, %s707
      %s725 = sphi 0, %s725
      %s727 = sphi 0, %s725
      %s728 = sphi 0, %s727
      %s742 = sphi 0, %s728
      %s746 = sphi 0, %s746
      %s748 = sphi 0, %s746
      %s749 = sphi 0, %s748
      %s763 = sphi 0, %s749
      %s767 = sphi 0, %s767
      %s769 = sphi 0, %s767
      %s770 = sphi 0, %s769
      %s784 = sphi 0, %s770
      %s788 = sphi 0, %s788
      %s790 = sphi 0, %s788
      %s791 = sphi 0, %s790
      %s805 = sphi 0, %s791
      %s809 = sphi 0, %s809
      %s811 = sphi 0, %s809
      %s812 = sphi 0, %s811
      %s826 = sphi 0, %s812
      %s830 = sphi 0, %s830
      %s832 = sphi 0, %s830
      %s833 = sphi 0, %s832
      %s847 = sphi 0, %s833
      %s851 = sphi 0, %s851
      %s853 = sphi 0, %s851
      %s854 = sphi 0, %s853
      %s868 = sphi 0, %s854
      %s874 = sphi 0, %s876
      %s877 = sphi 0, %s874
      %s878 = sphi 0, %s877
      %s894 = sphi 0, %s878
      %s900 = sphi 0, %s902
      %s903 = sphi 0, %s900
      %s904 = sphi 0, %s903
      %s920 = sphi 0, %s904
      %s926 = sphi 0, %s928
      %s929 = sphi 0, %s926
      %s930 = sphi 0, %s929
      %s946 = sphi 0, %s930
    $region4: #{ssgpool_forward.1} parent=1 // loop_header_branch
      %96 = sbr.rel (%p94) target = $region8
    $region5: #{ssgpool_forward.1} parent=1 // loop_body
      %s98 = ssub.s32 %s93, 1
      %s99 = ssub.s32 %s93, 2
      %s100 = sadd.s32 %s93, 1
      %s101 = ssub.s32 %s93, %s100
      %p102 = scmp.eq.s32.totalorder %s101, 0
      %s104 = sadd.s32 %s103, 1
      %s105 = scalar_select %p102, %s103, %s104
      %p108 = pneg %p102
      %p109 = scmp.eq.s32.totalorder %s93, 1
      %p110 = por %p108, %p109
      %p111 = scmp.ne.s32.totalorder %s103, %s106
      %p112 = scmp.eq.s32.totalorder %s93, 0
      %p113 = por %p111, %p112
      %p114 = scmp.ne.s32.totalorder %s103, %s106
      %p115 = scmp.eq.s32.totalorder %s98, 1
      %p116 = por %p114, %p115
      %p117 = scmp.ne.s32.totalorder %s106, %s107
      %p118 = scmp.eq.s32.totalorder %s98, 0
      %p119 = por %p117, %p118
      %p120 = scmp.ne.s32.totalorder %s106, %s107
      %p121 = scmp.eq.s32.totalorder %s99, 1
      %p122 = por %p120, %p121
      %p124 = scmp.ne.s32.totalorder %s107, %s123
      %p125 = scmp.eq.s32.totalorder %s99, 0
      %p126 = por %p124, %p125
      %s127 = ssub.s32 %s93, %s100
      %p128 = scmp.eq.s32.totalorder %s127, 0
      %s130 = sadd.s32 %s129, 1
      %s131 = scalar_select %p128, %s129, %s130
      %p134 = pneg %p128
      %p135 = scmp.eq.s32.totalorder %s93, 1
      %p136 = por %p134, %p135
      %p137 = scmp.ne.s32.totalorder %s129, %s132
      %p138 = scmp.eq.s32.totalorder %s93, 0
      %p139 = por %p137, %p138
      %p140 = scmp.ne.s32.totalorder %s129, %s132
      %p141 = scmp.eq.s32.totalorder %s98, 1
      %p142 = por %p140, %p141
      %p143 = scmp.ne.s32.totalorder %s132, %s133
      %p144 = scmp.eq.s32.totalorder %s98, 0
      %p145 = por %p143, %p144
      %p146 = scmp.ne.s32.totalorder %s132, %s133
      %p147 = scmp.eq.s32.totalorder %s99, 1
      %p148 = por %p146, %p147
      %p150 = scmp.ne.s32.totalorder %s133, %s149
      %p151 = scmp.eq.s32.totalorder %s99, 0
      %p152 = por %p150, %p151
      %s153 = ssub.s32 %s93, %s100
      %p154 = scmp.eq.s32.totalorder %s153, 0
      %s156 = sadd.s32 %s155, 1
      %s157 = scalar_select %p154, %s155, %s156
      %p160 = pneg %p154
      %p161 = scmp.eq.s32.totalorder %s93, 1
      %p162 = por %p160, %p161
      %p163 = scmp.ne.s32.totalorder %s155, %s158
      %p164 = scmp.eq.s32.totalorder %s93, 0
      %p165 = por %p163, %p164
      %p166 = scmp.ne.s32.totalorder %s155, %s158
      %p167 = scmp.eq.s32.totalorder %s98, 1
      %p168 = por %p166, %p167
      %p169 = scmp.ne.s32.totalorder %s158, %s159
      %p170 = scmp.eq.s32.totalorder %s98, 0
      %p171 = por %p169, %p170
      %p172 = scmp.ne.s32.totalorder %s158, %s159
      %p173 = scmp.eq.s32.totalorder %s99, 1
      %p174 = por %p172, %p173
      %p176 = scmp.ne.s32.totalorder %s159, %s175
      %p177 = scmp.eq.s32.totalorder %s99, 0
      %p178 = por %p176, %p177
      %s180 = sadd.s32 %s179, 1
      %p183 = scmp.eq.s32.totalorder %s93, 1
      %p184 = scmp.ne.s32.totalorder %s179, %s181
      %p185 = scmp.eq.s32.totalorder %s93, 0
      %p186 = por %p184, %p185
      %p187 = scmp.ne.s32.totalorder %s179, %s181
      %p188 = scmp.eq.s32.totalorder %s98, 1
      %p189 = por %p187, %p188
      %p190 = scmp.ne.s32.totalorder %s181, %s182
      %p191 = scmp.eq.s32.totalorder %s98, 0
      %p192 = por %p190, %p191
      %p193 = scmp.ne.s32.totalorder %s181, %s182
      %p194 = scmp.eq.s32.totalorder %s99, 1
      %p195 = por %p193, %p194
      %p197 = scmp.ne.s32.totalorder %s182, %s196
      %p198 = scmp.eq.s32.totalorder %s99, 0
      %p199 = por %p197, %p198
      %s201 = sadd.s32 %s200, 1
      %p204 = scmp.eq.s32.totalorder %s93, 1
      %p205 = scmp.ne.s32.totalorder %s200, %s202
      %p206 = scmp.eq.s32.totalorder %s93, 0
      %p207 = por %p205, %p206
      %p208 = scmp.ne.s32.totalorder %s200, %s202
      %p209 = scmp.eq.s32.totalorder %s98, 1
      %p210 = por %p208, %p209
      %p211 = scmp.ne.s32.totalorder %s202, %s203
      %p212 = scmp.eq.s32.totalorder %s98, 0
      %p213 = por %p211, %p212
      %p214 = scmp.ne.s32.totalorder %s202, %s203
      %p215 = scmp.eq.s32.totalorder %s99, 1
      %p216 = por %p214, %p215
      %p218 = scmp.ne.s32.totalorder %s203, %s217
      %p219 = scmp.eq.s32.totalorder %s99, 0
      %p220 = por %p218, %p219
      %s222 = sadd.s32 %s221, 1
      %p225 = scmp.eq.s32.totalorder %s93, 1
      %p226 = scmp.ne.s32.totalorder %s221, %s223
      %p227 = scmp.eq.s32.totalorder %s93, 0
      %p228 = por %p226, %p227
      %p229 = scmp.ne.s32.totalorder %s221, %s223
      %p230 = scmp.eq.s32.totalorder %s98, 1
      %p231 = por %p229, %p230
      %p232 = scmp.ne.s32.totalorder %s223, %s224
      %p233 = scmp.eq.s32.totalorder %s98, 0
      %p234 = por %p232, %p233
      %p235 = scmp.ne.s32.totalorder %s223, %s224
      %p236 = scmp.eq.s32.totalorder %s99, 1
      %p237 = por %p235, %p236
      %p239 = scmp.ne.s32.totalorder %s224, %s238
      %p240 = scmp.eq.s32.totalorder %s99, 0
      %p241 = por %p239, %p240
      %s243 = sadd.s32 %s242, 1
      %p246 = scmp.eq.s32.totalorder %s93, 1
      %p247 = scmp.ne.s32.totalorder %s242, %s244
      %p248 = scmp.eq.s32.totalorder %s93, 0
      %p249 = por %p247, %p248
      %p250 = scmp.ne.s32.totalorder %s242, %s244
      %p251 = scmp.eq.s32.totalorder %s98, 1
      %p252 = por %p250, %p251
      %p253 = scmp.ne.s32.totalorder %s244, %s245
      %p254 = scmp.eq.s32.totalorder %s98, 0
      %p255 = por %p253, %p254
      %p256 = scmp.ne.s32.totalorder %s244, %s245
      %p257 = scmp.eq.s32.totalorder %s99, 1
      %p258 = por %p256, %p257
      %p260 = scmp.ne.s32.totalorder %s245, %s259
      %p261 = scmp.eq.s32.totalorder %s99, 0
      %p262 = por %p260, %p261
      %s264 = sadd.s32 %s263, 1
      %p267 = scmp.eq.s32.totalorder %s93, 1
      %p268 = scmp.ne.s32.totalorder %s263, %s265
      %p269 = scmp.eq.s32.totalorder %s93, 0
      %p270 = por %p268, %p269
      %p271 = scmp.ne.s32.totalorder %s263, %s265
      %p272 = scmp.eq.s32.totalorder %s98, 1
      %p273 = por %p271, %p272
      %p274 = scmp.ne.s32.totalorder %s265, %s266
      %p275 = scmp.eq.s32.totalorder %s98, 0
      %p276 = por %p274, %p275
      %p277 = scmp.ne.s32.totalorder %s265, %s266
      %p278 = scmp.eq.s32.totalorder %s99, 1
      %p279 = por %p277, %p278
      %p281 = scmp.ne.s32.totalorder %s266, %s280
      %p282 = scmp.eq.s32.totalorder %s99, 0
      %p283 = por %p281, %p282
      %s285 = sadd.s32 %s284, 1
      %p288 = scmp.eq.s32.totalorder %s93, 1
      %p289 = scmp.ne.s32.totalorder %s284, %s286
      %p290 = scmp.eq.s32.totalorder %s93, 0
      %p291 = por %p289, %p290
      %p292 = scmp.ne.s32.totalorder %s284, %s286
      %p293 = scmp.eq.s32.totalorder %s98, 1
      %p294 = por %p292, %p293
      %p295 = scmp.ne.s32.totalorder %s286, %s287
      %p296 = scmp.eq.s32.totalorder %s98, 0
      %p297 = por %p295, %p296
      %p298 = scmp.ne.s32.totalorder %s286, %s287
      %p299 = scmp.eq.s32.totalorder %s99, 1
      %p300 = por %p298, %p299
      %p302 = scmp.ne.s32.totalorder %s287, %s301
      %p303 = scmp.eq.s32.totalorder %s99, 0
      %p304 = por %p302, %p303
      %s306 = sadd.s32 %s305, 1
      %p309 = scmp.eq.s32.totalorder %s93, 1
      %p310 = scmp.ne.s32.totalorder %s305, %s307
      %p311 = scmp.eq.s32.totalorder %s93, 0
      %p312 = por %p310, %p311
      %p313 = scmp.ne.s32.totalorder %s305, %s307
      %p314 = scmp.eq.s32.totalorder %s98, 1
      %p315 = por %p313, %p314
      %p316 = scmp.ne.s32.totalorder %s307, %s308
      %p317 = scmp.eq.s32.totalorder %s98, 0
      %p318 = por %p316, %p317
      %p319 = scmp.ne.s32.totalorder %s307, %s308
      %p320 = scmp.eq.s32.totalorder %s99, 1
      %p321 = por %p319, %p320
      %p323 = scmp.ne.s32.totalorder %s308, %s322
      %p324 = scmp.eq.s32.totalorder %s99, 0
      %p325 = por %p323, %p324
      %s327 = sadd.s32 %s326, 1
      %p330 = scmp.eq.s32.totalorder %s93, 1
      %p331 = scmp.ne.s32.totalorder %s326, %s328
      %p332 = scmp.eq.s32.totalorder %s93, 0
      %p333 = por %p331, %p332
      %p334 = scmp.ne.s32.totalorder %s326, %s328
      %p335 = scmp.eq.s32.totalorder %s98, 1
      %p336 = por %p334, %p335
      %p337 = scmp.ne.s32.totalorder %s328, %s329
      %p338 = scmp.eq.s32.totalorder %s98, 0
      %p339 = por %p337, %p338
      %p340 = scmp.ne.s32.totalorder %s328, %s329
      %p341 = scmp.eq.s32.totalorder %s99, 1
      %p342 = por %p340, %p341
      %p344 = scmp.ne.s32.totalorder %s329, %s343
      %p345 = scmp.eq.s32.totalorder %s99, 0
      %p346 = por %p344, %p345
      %s348 = sadd.s32 %s347, 1
      %p351 = scmp.eq.s32.totalorder %s93, 1
      %p352 = scmp.ne.s32.totalorder %s347, %s349
      %p353 = scmp.eq.s32.totalorder %s93, 0
      %p354 = por %p352, %p353
      %p355 = scmp.ne.s32.totalorder %s347, %s349
      %p356 = scmp.eq.s32.totalorder %s98, 1
      %p357 = por %p355, %p356
      %p358 = scmp.ne.s32.totalorder %s349, %s350
      %p359 = scmp.eq.s32.totalorder %s98, 0
      %p360 = por %p358, %p359
      %p361 = scmp.ne.s32.totalorder %s349, %s350
      %p362 = scmp.eq.s32.totalorder %s99, 1
      %p363 = por %p361, %p362
      %p365 = scmp.ne.s32.totalorder %s350, %s364
      %p366 = scmp.eq.s32.totalorder %s99, 0
      %p367 = por %p365, %p366
      %s369 = sadd.s32 %s368, 1
      %p372 = scmp.eq.s32.totalorder %s93, 1
      %p373 = scmp.ne.s32.totalorder %s368, %s370
      %p374 = scmp.eq.s32.totalorder %s93, 0
      %p375 = por %p373, %p374
      %p376 = scmp.ne.s32.totalorder %s368, %s370
      %p377 = scmp.eq.s32.totalorder %s98, 1
      %p378 = por %p376, %p377
      %p379 = scmp.ne.s32.totalorder %s370, %s371
      %p380 = scmp.eq.s32.totalorder %s98, 0
      %p381 = por %p379, %p380
      %p382 = scmp.ne.s32.totalorder %s370, %s371
      %p383 = scmp.eq.s32.totalorder %s99, 1
      %p384 = por %p382, %p383
      %p386 = scmp.ne.s32.totalorder %s371, %s385
      %p387 = scmp.eq.s32.totalorder %s99, 0
      %p388 = por %p386, %p387
      %s390 = sadd.s32 %s389, 1
      %p393 = scmp.eq.s32.totalorder %s93, 1
      %p394 = scmp.ne.s32.totalorder %s389, %s391
      %p395 = scmp.eq.s32.totalorder %s93, 0
      %p396 = por %p394, %p395
      %p397 = scmp.ne.s32.totalorder %s389, %s391
      %p398 = scmp.eq.s32.totalorder %s98, 1
      %p399 = por %p397, %p398
      %p400 = scmp.ne.s32.totalorder %s391, %s392
      %p401 = scmp.eq.s32.totalorder %s98, 0
      %p402 = por %p400, %p401
      %p403 = scmp.ne.s32.totalorder %s391, %s392
      %p404 = scmp.eq.s32.totalorder %s99, 1
      %p405 = por %p403, %p404
      %p407 = scmp.ne.s32.totalorder %s392, %s406
      %p408 = scmp.eq.s32.totalorder %s99, 0
      %p409 = por %p407, %p408
      %s411 = sadd.s32 %s410, 1
      %p414 = scmp.eq.s32.totalorder %s93, 1
      %p415 = scmp.ne.s32.totalorder %s410, %s412
      %p416 = scmp.eq.s32.totalorder %s93, 0
      %p417 = por %p415, %p416
      %p418 = scmp.ne.s32.totalorder %s410, %s412
      %p419 = scmp.eq.s32.totalorder %s98, 1
      %p420 = por %p418, %p419
      %p421 = scmp.ne.s32.totalorder %s412, %s413
      %p422 = scmp.eq.s32.totalorder %s98, 0
      %p423 = por %p421, %p422
      %p424 = scmp.ne.s32.totalorder %s412, %s413
      %p425 = scmp.eq.s32.totalorder %s99, 1
      %p426 = por %p424, %p425
      %p428 = scmp.ne.s32.totalorder %s413, %s427
      %p429 = scmp.eq.s32.totalorder %s99, 0
      %p430 = por %p428, %p429
      %s432 = sadd.s32 %s431, 1
      %p435 = scmp.eq.s32.totalorder %s93, 1
      %p436 = scmp.ne.s32.totalorder %s431, %s433
      %p437 = scmp.eq.s32.totalorder %s93, 0
      %p438 = por %p436, %p437
      %p439 = scmp.ne.s32.totalorder %s431, %s433
      %p440 = scmp.eq.s32.totalorder %s98, 1
      %p441 = por %p439, %p440
      %p442 = scmp.ne.s32.totalorder %s433, %s434
      %p443 = scmp.eq.s32.totalorder %s98, 0
      %p444 = por %p442, %p443
      %p445 = scmp.ne.s32.totalorder %s433, %s434
      %p446 = scmp.eq.s32.totalorder %s99, 1
      %p447 = por %p445, %p446
      %p449 = scmp.ne.s32.totalorder %s434, %s448
      %p450 = scmp.eq.s32.totalorder %s99, 0
      %p451 = por %p449, %p450
      %s453 = sadd.s32 %s452, 1
      %p456 = scmp.eq.s32.totalorder %s93, 1
      %p457 = scmp.ne.s32.totalorder %s452, %s454
      %p458 = scmp.eq.s32.totalorder %s93, 0
      %p459 = por %p457, %p458
      %p460 = scmp.ne.s32.totalorder %s452, %s454
      %p461 = scmp.eq.s32.totalorder %s98, 1
      %p462 = por %p460, %p461
      %p463 = scmp.ne.s32.totalorder %s454, %s455
      %p464 = scmp.eq.s32.totalorder %s98, 0
      %p465 = por %p463, %p464
      %p466 = scmp.ne.s32.totalorder %s454, %s455
      %p467 = scmp.eq.s32.totalorder %s99, 1
      %p468 = por %p466, %p467
      %p470 = scmp.ne.s32.totalorder %s455, %s469
      %p471 = scmp.eq.s32.totalorder %s99, 0
      %p472 = por %p470, %p471
      %s474 = sadd.s32 %s473, 1
      %p477 = scmp.eq.s32.totalorder %s93, 1
      %p478 = scmp.ne.s32.totalorder %s473, %s475
      %p479 = scmp.eq.s32.totalorder %s93, 0
      %p480 = por %p478, %p479
      %p481 = scmp.ne.s32.totalorder %s473, %s475
      %p482 = scmp.eq.s32.totalorder %s98, 1
      %p483 = por %p481, %p482
      %p484 = scmp.ne.s32.totalorder %s475, %s476
      %p485 = scmp.eq.s32.totalorder %s98, 0
      %p486 = por %p484, %p485
      %p487 = scmp.ne.s32.totalorder %s475, %s476
      %p488 = scmp.eq.s32.totalorder %s99, 1
      %p489 = por %p487, %p488
      %p491 = scmp.ne.s32.totalorder %s476, %s490
      %p492 = scmp.eq.s32.totalorder %s99, 0
      %p493 = por %p491, %p492
      %s495 = sadd.s32 %s494, 1
      %p498 = scmp.eq.s32.totalorder %s93, 1
      %p499 = scmp.ne.s32.totalorder %s494, %s496
      %p500 = scmp.eq.s32.totalorder %s93, 0
      %p501 = por %p499, %p500
      %p502 = scmp.ne.s32.totalorder %s494, %s496
      %p503 = scmp.eq.s32.totalorder %s98, 1
      %p504 = por %p502, %p503
      %p505 = scmp.ne.s32.totalorder %s496, %s497
      %p506 = scmp.eq.s32.totalorder %s98, 0
      %p507 = por %p505, %p506
      %p508 = scmp.ne.s32.totalorder %s496, %s497
      %p509 = scmp.eq.s32.totalorder %s99, 1
      %p510 = por %p508, %p509
      %p512 = scmp.ne.s32.totalorder %s497, %s511
      %p513 = scmp.eq.s32.totalorder %s99, 0
      %p514 = por %p512, %p513
      %s516 = sadd.s32 %s515, 1
      %p519 = scmp.eq.s32.totalorder %s93, 1
      %p520 = scmp.ne.s32.totalorder %s515, %s517
      %p521 = scmp.eq.s32.totalorder %s93, 0
      %p522 = por %p520, %p521
      %p523 = scmp.ne.s32.totalorder %s515, %s517
      %p524 = scmp.eq.s32.totalorder %s98, 1
      %p525 = por %p523, %p524
      %p526 = scmp.ne.s32.totalorder %s517, %s518
      %p527 = scmp.eq.s32.totalorder %s98, 0
      %p528 = por %p526, %p527
      %p529 = scmp.ne.s32.totalorder %s517, %s518
      %p530 = scmp.eq.s32.totalorder %s99, 1
      %p531 = por %p529, %p530
      %p533 = scmp.ne.s32.totalorder %s518, %s532
      %p534 = scmp.eq.s32.totalorder %s99, 0
      %p535 = por %p533, %p534
      %s537 = sadd.s32 %s536, 1
      %p540 = scmp.eq.s32.totalorder %s93, 1
      %p541 = scmp.ne.s32.totalorder %s536, %s538
      %p542 = scmp.eq.s32.totalorder %s93, 0
      %p543 = por %p541, %p542
      %p544 = scmp.ne.s32.totalorder %s536, %s538
      %p545 = scmp.eq.s32.totalorder %s98, 1
      %p546 = por %p544, %p545
      %p547 = scmp.ne.s32.totalorder %s538, %s539
      %p548 = scmp.eq.s32.totalorder %s98, 0
      %p549 = por %p547, %p548
      %p550 = scmp.ne.s32.totalorder %s538, %s539
      %p551 = scmp.eq.s32.totalorder %s99, 1
      %p552 = por %p550, %p551
      %p554 = scmp.ne.s32.totalorder %s539, %s553
      %p555 = scmp.eq.s32.totalorder %s99, 0
      %p556 = por %p554, %p555
      %s558 = sadd.s32 %s557, 1
      %p561 = scmp.eq.s32.totalorder %s93, 1
      %p562 = scmp.ne.s32.totalorder %s557, %s559
      %p563 = scmp.eq.s32.totalorder %s93, 0
      %p564 = por %p562, %p563
      %p565 = scmp.ne.s32.totalorder %s557, %s559
      %p566 = scmp.eq.s32.totalorder %s98, 1
      %p567 = por %p565, %p566
      %p568 = scmp.ne.s32.totalorder %s559, %s560
      %p569 = scmp.eq.s32.totalorder %s98, 0
      %p570 = por %p568, %p569
      %p571 = scmp.ne.s32.totalorder %s559, %s560
      %p572 = scmp.eq.s32.totalorder %s99, 1
      %p573 = por %p571, %p572
      %p575 = scmp.ne.s32.totalorder %s560, %s574
      %p576 = scmp.eq.s32.totalorder %s99, 0
      %p577 = por %p575, %p576
      %s579 = sadd.s32 %s578, 1
      %p582 = scmp.eq.s32.totalorder %s93, 1
      %p583 = scmp.ne.s32.totalorder %s578, %s580
      %p584 = scmp.eq.s32.totalorder %s93, 0
      %p585 = por %p583, %p584
      %p586 = scmp.ne.s32.totalorder %s578, %s580
      %p587 = scmp.eq.s32.totalorder %s98, 1
      %p588 = por %p586, %p587
      %p589 = scmp.ne.s32.totalorder %s580, %s581
      %p590 = scmp.eq.s32.totalorder %s98, 0
      %p591 = por %p589, %p590
      %p592 = scmp.ne.s32.totalorder %s580, %s581
      %p593 = scmp.eq.s32.totalorder %s99, 1
      %p594 = por %p592, %p593
      %p596 = scmp.ne.s32.totalorder %s581, %s595
      %p597 = scmp.eq.s32.totalorder %s99, 0
      %p598 = por %p596, %p597
      %s600 = sadd.s32 %s599, 1
      %p603 = scmp.eq.s32.totalorder %s93, 1
      %p604 = scmp.ne.s32.totalorder %s599, %s601
      %p605 = scmp.eq.s32.totalorder %s93, 0
      %p606 = por %p604, %p605
      %p607 = scmp.ne.s32.totalorder %s599, %s601
      %p608 = scmp.eq.s32.totalorder %s98, 1
      %p609 = por %p607, %p608
      %p610 = scmp.ne.s32.totalorder %s601, %s602
      %p611 = scmp.eq.s32.totalorder %s98, 0
      %p612 = por %p610, %p611
      %p613 = scmp.ne.s32.totalorder %s601, %s602
      %p614 = scmp.eq.s32.totalorder %s99, 1
      %p615 = por %p613, %p614
      %p617 = scmp.ne.s32.totalorder %s602, %s616
      %p618 = scmp.eq.s32.totalorder %s99, 0
      %p619 = por %p617, %p618
      %s621 = sadd.s32 %s620, 1
      %p624 = scmp.eq.s32.totalorder %s93, 1
      %p625 = scmp.ne.s32.totalorder %s620, %s622
      %p626 = scmp.eq.s32.totalorder %s93, 0
      %p627 = por %p625, %p626
      %p628 = scmp.ne.s32.totalorder %s620, %s622
      %p629 = scmp.eq.s32.totalorder %s98, 1
      %p630 = por %p628, %p629
      %p631 = scmp.ne.s32.totalorder %s622, %s623
      %p632 = scmp.eq.s32.totalorder %s98, 0
      %p633 = por %p631, %p632
      %p634 = scmp.ne.s32.totalorder %s622, %s623
      %p635 = scmp.eq.s32.totalorder %s99, 1
      %p636 = por %p634, %p635
      %p638 = scmp.ne.s32.totalorder %s623, %s637
      %p639 = scmp.eq.s32.totalorder %s99, 0
      %p640 = por %p638, %p639
      %s642 = sadd.s32 %s641, 1
      %p645 = scmp.eq.s32.totalorder %s93, 1
      %p646 = scmp.ne.s32.totalorder %s641, %s643
      %p647 = scmp.eq.s32.totalorder %s93, 0
      %p648 = por %p646, %p647
      %p649 = scmp.ne.s32.totalorder %s641, %s643
      %p650 = scmp.eq.s32.totalorder %s98, 1
      %p651 = por %p649, %p650
      %p652 = scmp.ne.s32.totalorder %s643, %s644
      %p653 = scmp.eq.s32.totalorder %s98, 0
      %p654 = por %p652, %p653
      %p655 = scmp.ne.s32.totalorder %s643, %s644
      %p656 = scmp.eq.s32.totalorder %s99, 1
      %p657 = por %p655, %p656
      %p659 = scmp.ne.s32.totalorder %s644, %s658
      %p660 = scmp.eq.s32.totalorder %s99, 0
      %p661 = por %p659, %p660
      %s663 = sadd.s32 %s662, 1
      %p666 = scmp.eq.s32.totalorder %s93, 1
      %p667 = scmp.ne.s32.totalorder %s662, %s664
      %p668 = scmp.eq.s32.totalorder %s93, 0
      %p669 = por %p667, %p668
      %p670 = scmp.ne.s32.totalorder %s662, %s664
      %p671 = scmp.eq.s32.totalorder %s98, 1
      %p672 = por %p670, %p671
      %p673 = scmp.ne.s32.totalorder %s664, %s665
      %p674 = scmp.eq.s32.totalorder %s98, 0
      %p675 = por %p673, %p674
      %p676 = scmp.ne.s32.totalorder %s664, %s665
      %p677 = scmp.eq.s32.totalorder %s99, 1
      %p678 = por %p676, %p677
      %p680 = scmp.ne.s32.totalorder %s665, %s679
      %p681 = scmp.eq.s32.totalorder %s99, 0
      %p682 = por %p680, %p681
      %s684 = sadd.s32 %s683, 1
      %p687 = scmp.eq.s32.totalorder %s93, 1
      %p688 = scmp.ne.s32.totalorder %s683, %s685
      %p689 = scmp.eq.s32.totalorder %s93, 0
      %p690 = por %p688, %p689
      %p691 = scmp.ne.s32.totalorder %s683, %s685
      %p692 = scmp.eq.s32.totalorder %s98, 1
      %p693 = por %p691, %p692
      %p694 = scmp.ne.s32.totalorder %s685, %s686
      %p695 = scmp.eq.s32.totalorder %s98, 0
      %p696 = por %p694, %p695
      %p697 = scmp.ne.s32.totalorder %s685, %s686
      %p698 = scmp.eq.s32.totalorder %s99, 1
      %p699 = por %p697, %p698
      %p701 = scmp.ne.s32.totalorder %s686, %s700
      %p702 = scmp.eq.s32.totalorder %s99, 0
      %p703 = por %p701, %p702
      %s705 = sadd.s32 %s704, 1
      %p708 = scmp.eq.s32.totalorder %s93, 1
      %p709 = scmp.ne.s32.totalorder %s704, %s706
      %p710 = scmp.eq.s32.totalorder %s93, 0
      %p711 = por %p709, %p710
      %p712 = scmp.ne.s32.totalorder %s704, %s706
      %p713 = scmp.eq.s32.totalorder %s98, 1
      %p714 = por %p712, %p713
      %p715 = scmp.ne.s32.totalorder %s706, %s707
      %p716 = scmp.eq.s32.totalorder %s98, 0
      %p717 = por %p715, %p716
      %p718 = scmp.ne.s32.totalorder %s706, %s707
      %p719 = scmp.eq.s32.totalorder %s99, 1
      %p720 = por %p718, %p719
      %p722 = scmp.ne.s32.totalorder %s707, %s721
      %p723 = scmp.eq.s32.totalorder %s99, 0
      %p724 = por %p722, %p723
      %s726 = sadd.s32 %s725, 1
      %p729 = scmp.eq.s32.totalorder %s93, 1
      %p730 = scmp.ne.s32.totalorder %s725, %s727
      %p731 = scmp.eq.s32.totalorder %s93, 0
      %p732 = por %p730, %p731
      %p733 = scmp.ne.s32.totalorder %s725, %s727
      %p734 = scmp.eq.s32.totalorder %s98, 1
      %p735 = por %p733, %p734
      %p736 = scmp.ne.s32.totalorder %s727, %s728
      %p737 = scmp.eq.s32.totalorder %s98, 0
      %p738 = por %p736, %p737
      %p739 = scmp.ne.s32.totalorder %s727, %s728
      %p740 = scmp.eq.s32.totalorder %s99, 1
      %p741 = por %p739, %p740
      %p743 = scmp.ne.s32.totalorder %s728, %s742
      %p744 = scmp.eq.s32.totalorder %s99, 0
      %p745 = por %p743, %p744
      %s747 = sadd.s32 %s746, 1
      %p750 = scmp.eq.s32.totalorder %s93, 1
      %p751 = scmp.ne.s32.totalorder %s746, %s748
      %p752 = scmp.eq.s32.totalorder %s93, 0
      %p753 = por %p751, %p752
      %p754 = scmp.ne.s32.totalorder %s746, %s748
      %p755 = scmp.eq.s32.totalorder %s98, 1
      %p756 = por %p754, %p755
      %p757 = scmp.ne.s32.totalorder %s748, %s749
      %p758 = scmp.eq.s32.totalorder %s98, 0
      %p759 = por %p757, %p758
      %p760 = scmp.ne.s32.totalorder %s748, %s749
      %p761 = scmp.eq.s32.totalorder %s99, 1
      %p762 = por %p760, %p761
      %p764 = scmp.ne.s32.totalorder %s749, %s763
      %p765 = scmp.eq.s32.totalorder %s99, 0
      %p766 = por %p764, %p765
      %s768 = sadd.s32 %s767, 1
      %p771 = scmp.eq.s32.totalorder %s93, 1
      %p772 = scmp.ne.s32.totalorder %s767, %s769
      %p773 = scmp.eq.s32.totalorder %s93, 0
      %p774 = por %p772, %p773
      %p775 = scmp.ne.s32.totalorder %s767, %s769
      %p776 = scmp.eq.s32.totalorder %s98, 1
      %p777 = por %p775, %p776
      %p778 = scmp.ne.s32.totalorder %s769, %s770
      %p779 = scmp.eq.s32.totalorder %s98, 0
      %p780 = por %p778, %p779
      %p781 = scmp.ne.s32.totalorder %s769, %s770
      %p782 = scmp.eq.s32.totalorder %s99, 1
      %p783 = por %p781, %p782
      %p785 = scmp.ne.s32.totalorder %s770, %s784
      %p786 = scmp.eq.s32.totalorder %s99, 0
      %p787 = por %p785, %p786
      %s789 = sadd.s32 %s788, 1
      %p792 = scmp.eq.s32.totalorder %s93, 1
      %p793 = scmp.ne.s32.totalorder %s788, %s790
      %p794 = scmp.eq.s32.totalorder %s93, 0
      %p795 = por %p793, %p794
      %p796 = scmp.ne.s32.totalorder %s788, %s790
      %p797 = scmp.eq.s32.totalorder %s98, 1
      %p798 = por %p796, %p797
      %p799 = scmp.ne.s32.totalorder %s790, %s791
      %p800 = scmp.eq.s32.totalorder %s98, 0
      %p801 = por %p799, %p800
      %p802 = scmp.ne.s32.totalorder %s790, %s791
      %p803 = scmp.eq.s32.totalorder %s99, 1
      %p804 = por %p802, %p803
      %p806 = scmp.ne.s32.totalorder %s791, %s805
      %p807 = scmp.eq.s32.totalorder %s99, 0
      %p808 = por %p806, %p807
      %s810 = sadd.s32 %s809, 1
      %p813 = scmp.eq.s32.totalorder %s93, 1
      %p814 = scmp.ne.s32.totalorder %s809, %s811
      %p815 = scmp.eq.s32.totalorder %s93, 0
      %p816 = por %p814, %p815
      %p817 = scmp.ne.s32.totalorder %s809, %s811
      %p818 = scmp.eq.s32.totalorder %s98, 1
      %p819 = por %p817, %p818
      %p820 = scmp.ne.s32.totalorder %s811, %s812
      %p821 = scmp.eq.s32.totalorder %s98, 0
      %p822 = por %p820, %p821
      %p823 = scmp.ne.s32.totalorder %s811, %s812
      %p824 = scmp.eq.s32.totalorder %s99, 1
      %p825 = por %p823, %p824
      %p827 = scmp.ne.s32.totalorder %s812, %s826
      %p828 = scmp.eq.s32.totalorder %s99, 0
      %p829 = por %p827, %p828
      %s831 = sadd.s32 %s830, 1
      %p834 = scmp.eq.s32.totalorder %s93, 1
      %p835 = scmp.ne.s32.totalorder %s830, %s832
      %p836 = scmp.eq.s32.totalorder %s93, 0
      %p837 = por %p835, %p836
      %p838 = scmp.ne.s32.totalorder %s830, %s832
      %p839 = scmp.eq.s32.totalorder %s98, 1
      %p840 = por %p838, %p839
      %p841 = scmp.ne.s32.totalorder %s832, %s833
      %p842 = scmp.eq.s32.totalorder %s98, 0
      %p843 = por %p841, %p842
      %p844 = scmp.ne.s32.totalorder %s832, %s833
      %p845 = scmp.eq.s32.totalorder %s99, 1
      %p846 = por %p844, %p845
      %p848 = scmp.ne.s32.totalorder %s833, %s847
      %p849 = scmp.eq.s32.totalorder %s99, 0
      %p850 = por %p848, %p849
      %s852 = sadd.s32 %s851, 1
      %p855 = scmp.eq.s32.totalorder %s93, 1
      %p856 = scmp.ne.s32.totalorder %s851, %s853
      %p857 = scmp.eq.s32.totalorder %s93, 0
      %p858 = por %p856, %p857
      %p859 = scmp.ne.s32.totalorder %s851, %s853
      %p860 = scmp.eq.s32.totalorder %s98, 1
      %p861 = por %p859, %p860
      %p862 = scmp.ne.s32.totalorder %s853, %s854
      %p863 = scmp.eq.s32.totalorder %s98, 0
      %p864 = por %p862, %p863
      %p865 = scmp.ne.s32.totalorder %s853, %s854
      %p866 = scmp.eq.s32.totalorder %s99, 1
      %p867 = por %p865, %p866
      %p869 = scmp.ne.s32.totalorder %s854, %s868
      %p870 = scmp.eq.s32.totalorder %s99, 0
      %p871 = por %p869, %p870
      %s872 = ssub.s32 %s93, %s100
      %p873 = scmp.eq.s32.totalorder %s872, 0
      %s875 = sadd.s32 %s874, 1
      %s876 = scalar_select %p873, %s874, %s875
      %p879 = pneg %p873
      %p880 = scmp.eq.s32.totalorder %s93, 1
      %p881 = por %p879, %p880
      %p882 = scmp.ne.s32.totalorder %s874, %s877
      %p883 = scmp.eq.s32.totalorder %s93, 0
      %p884 = por %p882, %p883
      %p885 = scmp.ne.s32.totalorder %s874, %s877
      %p886 = scmp.eq.s32.totalorder %s98, 1
      %p887 = por %p885, %p886
      %p888 = scmp.ne.s32.totalorder %s877, %s878
      %p889 = scmp.eq.s32.totalorder %s98, 0
      %p890 = por %p888, %p889
      %p891 = scmp.ne.s32.totalorder %s877, %s878
      %p892 = scmp.eq.s32.totalorder %s99, 1
      %p893 = por %p891, %p892
      %p895 = scmp.ne.s32.totalorder %s878, %s894
      %p896 = scmp.eq.s32.totalorder %s99, 0
      %p897 = por %p895, %p896
      %s898 = ssub.s32 %s93, %s100
      %p899 = scmp.eq.s32.totalorder %s898, 0
      %s901 = sadd.s32 %s900, 1
      %s902 = scalar_select %p899, %s900, %s901
      %p905 = pneg %p899
      %p906 = scmp.eq.s32.totalorder %s93, 1
      %p907 = por %p905, %p906
      %p908 = scmp.ne.s32.totalorder %s900, %s903
      %p909 = scmp.eq.s32.totalorder %s93, 0
      %p910 = por %p908, %p909
      %p911 = scmp.ne.s32.totalorder %s900, %s903
      %p912 = scmp.eq.s32.totalorder %s98, 1
      %p913 = por %p911, %p912
      %p914 = scmp.ne.s32.totalorder %s903, %s904
      %p915 = scmp.eq.s32.totalorder %s98, 0
      %p916 = por %p914, %p915
      %p917 = scmp.ne.s32.totalorder %s903, %s904
      %p918 = scmp.eq.s32.totalorder %s99, 1
      %p919 = por %p917, %p918
      %p921 = scmp.ne.s32.totalorder %s904, %s920
      %p922 = scmp.eq.s32.totalorder %s99, 0
      %p923 = por %p921, %p922
      %s924 = ssub.s32 %s93, %s100
      %p925 = scmp.eq.s32.totalorder %s924, 0
      %s927 = sadd.s32 %s926, 1
      %s928 = scalar_select %p925, %s926, %s927
      %p931 = pneg %p925
      %p932 = scmp.eq.s32.totalorder %s93, 1
      %p933 = por %p931, %p932
      %p934 = scmp.ne.s32.totalorder %s926, %s929
      %p935 = scmp.eq.s32.totalorder %s93, 0
      %p936 = por %p934, %p935
      %p937 = scmp.ne.s32.totalorder %s926, %s929
      %p938 = scmp.eq.s32.totalorder %s98, 1
      %p939 = por %p937, %p938
      %p940 = scmp.ne.s32.totalorder %s929, %s930
      %p941 = scmp.eq.s32.totalorder %s98, 0
      %p942 = por %p940, %p941
      %p943 = scmp.ne.s32.totalorder %s929, %s930
      %p944 = scmp.eq.s32.totalorder %s99, 1
      %p945 = por %p943, %p944
      %p947 = scmp.ne.s32.totalorder %s930, %s946
      %p948 = scmp.eq.s32.totalorder %s99, 0
      %p949 = por %p947, %p948
      %p950 = scmp.le.s32.totalorder 1, %s93
      %p951 = scmp.lt.s32.totalorder %s93, 3
      %p952 = pnand %p950, %p951
      %p953 = pneg %p952
      // Predicated region
      $region9: #{ssgpool_forward.1} parent=5 // pred_check
        _
      $region10: #{ssgpool_forward.1} parent=5 // pred_check_branch
        %955 = sbr.rel (%p952) target = $region12
      $region11: #{ssgpool_forward.1} parent=5 // pred_region
        %s956 = ssub.s32 %s93, 1
        // Predicated region
        $region13: #{ssgpool_forward.1} parent=11 // pred_check
          %p957 = pneg %p192
        $region14: #{ssgpool_forward.1} parent=11 // pred_check_branch
          %959 = sbr.rel (%p957) target = $region16
        $region15: #{ssgpool_forward.1} parent=11 // pred_region
          _
        $region16: #{ssgpool_forward.1} parent=11 // pred_fallthru
          _
        // Predicated region
        $region17: #{ssgpool_forward.1} parent=11 // pred_check
          %p960 = pneg %p213
        $region18: #{ssgpool_forward.1} parent=11 // pred_check_branch
          %962 = sbr.rel (%p960) target = $region20
        $region19: #{ssgpool_forward.1} parent=11 // pred_region
          _
        $region20: #{ssgpool_forward.1} parent=11 // pred_fallthru
          _
        // Predicated region
        $region21: #{ssgpool_forward.1} parent=11 // pred_check
          %p963 = pneg %p234
        $region22: #{ssgpool_forward.1} parent=11 // pred_check_branch
          %965 = sbr.rel (%p963) target = $region24
        $region23: #{ssgpool_forward.1} parent=11 // pred_region
          _
        $region24: #{ssgpool_forward.1} parent=11 // pred_fallthru
          _
        // Predicated region
        $region25: #{ssgpool_forward.1} parent=11 // pred_check
          %p966 = pneg %p255
        $region26: #{ssgpool_forward.1} parent=11 // pred_check_branch
          %968 = sbr.rel (%p966) target = $region28
        $region27: #{ssgpool_forward.1} parent=11 // pred_region
          _
        $region28: #{ssgpool_forward.1} parent=11 // pred_fallthru
          _
        // Predicated region
        $region29: #{ssgpool_forward.1} parent=11 // pred_check
          %p969 = pneg %p276
        $region30: #{ssgpool_forward.1} parent=11 // pred_check_branch
          %971 = sbr.rel (%p969) target = $region32
        $region31: #{ssgpool_forward.1} parent=11 // pred_region
          _
        $region32: #{ssgpool_forward.1} parent=11 // pred_fallthru
          _
        // Predicated region
        $region33: #{ssgpool_forward.1} parent=11 // pred_check
          %p972 = pneg %p297
        $region34: #{ssgpool_forward.1} parent=11 // pred_check_branch
          %974 = sbr.rel (%p972) target = $region36
        $region35: #{ssgpool_forward.1} parent=11 // pred_region
          _
        $region36: #{ssgpool_forward.1} parent=11 // pred_fallthru
          _
        // Predicated region
        $region37: #{ssgpool_forward.1} parent=11 // pred_check
          %p975 = pneg %p318
        $region38: #{ssgpool_forward.1} parent=11 // pred_check_branch
          %977 = sbr.rel (%p975) target = $region40
        $region39: #{ssgpool_forward.1} parent=11 // pred_region
          _
        $region40: #{ssgpool_forward.1} parent=11 // pred_fallthru
          _
        // Predicated region
        $region41: #{ssgpool_forward.1} parent=11 // pred_check
          %p978 = pneg %p339
        $region42: #{ssgpool_forward.1} parent=11 // pred_check_branch
          %980 = sbr.rel (%p978) target = $region44
        $region43: #{ssgpool_forward.1} parent=11 // pred_region
          _
        $region44: #{ssgpool_forward.1} parent=11 // pred_fallthru
          _
        // Predicated region
        $region45: #{ssgpool_forward.1} parent=11 // pred_check
          %p981 = pneg %p360
        $region46: #{ssgpool_forward.1} parent=11 // pred_check_branch
          %983 = sbr.rel (%p981) target = $region48
        $region47: #{ssgpool_forward.1} parent=11 // pred_region
          _
        $region48: #{ssgpool_forward.1} parent=11 // pred_fallthru
          _
        // Predicated region
        $region49: #{ssgpool_forward.1} parent=11 // pred_check
          %p984 = pneg %p381
        $region50: #{ssgpool_forward.1} parent=11 // pred_check_branch
          %986 = sbr.rel (%p984) target = $region52
        $region51: #{ssgpool_forward.1} parent=11 // pred_region
          _
        $region52: #{ssgpool_forward.1} parent=11 // pred_fallthru
          _
        // Predicated region
        $region53: #{ssgpool_forward.1} parent=11 // pred_check
          %p987 = pneg %p402
        $region54: #{ssgpool_forward.1} parent=11 // pred_check_branch
          %989 = sbr.rel (%p987) target = $region56
        $region55: #{ssgpool_forward.1} parent=11 // pred_region
          _
        $region56: #{ssgpool_forward.1} parent=11 // pred_fallthru
          _
        // Predicated region
        $region57: #{ssgpool_forward.1} parent=11 // pred_check
          %p990 = pneg %p423
        $region58: #{ssgpool_forward.1} parent=11 // pred_check_branch
          %992 = sbr.rel (%p990) target = $region60
        $region59: #{ssgpool_forward.1} parent=11 // pred_region
          _
        $region60: #{ssgpool_forward.1} parent=11 // pred_fallthru
          _
        // Predicated region
        $region61: #{ssgpool_forward.1} parent=11 // pred_check
          %p993 = pneg %p444
        $region62: #{ssgpool_forward.1} parent=11 // pred_check_branch
          %995 = sbr.rel (%p993) target = $region64
        $region63: #{ssgpool_forward.1} parent=11 // pred_region
          _
        $region64: #{ssgpool_forward.1} parent=11 // pred_fallthru
          _
        // Predicated region
        $region65: #{ssgpool_forward.1} parent=11 // pred_check
          %p996 = pneg %p465
        $region66: #{ssgpool_forward.1} parent=11 // pred_check_branch
          %998 = sbr.rel (%p996) target = $region68
        $region67: #{ssgpool_forward.1} parent=11 // pred_region
          _
        $region68: #{ssgpool_forward.1} parent=11 // pred_fallthru
          _
        // Predicated region
        $region69: #{ssgpool_forward.1} parent=11 // pred_check
          %p999 = pneg %p486
        $region70: #{ssgpool_forward.1} parent=11 // pred_check_branch
          %1001 = sbr.rel (%p999) target = $region72
        $region71: #{ssgpool_forward.1} parent=11 // pred_region
          _
        $region72: #{ssgpool_forward.1} parent=11 // pred_fallthru
          _
        // Predicated region
        $region73: #{ssgpool_forward.1} parent=11 // pred_check
          %p1002 = pneg %p507
        $region74: #{ssgpool_forward.1} parent=11 // pred_check_branch
          %1004 = sbr.rel (%p1002) target = $region76
        $region75: #{ssgpool_forward.1} parent=11 // pred_region
          _
        $region76: #{ssgpool_forward.1} parent=11 // pred_fallthru
          _
        // Predicated region
        $region77: #{ssgpool_forward.1} parent=11 // pred_check
          %p1005 = pneg %p528
        $region78: #{ssgpool_forward.1} parent=11 // pred_check_branch
          %1007 = sbr.rel (%p1005) target = $region80
        $region79: #{ssgpool_forward.1} parent=11 // pred_region
          _
        $region80: #{ssgpool_forward.1} parent=11 // pred_fallthru
          _
        // Predicated region
        $region81: #{ssgpool_forward.1} parent=11 // pred_check
          %p1008 = pneg %p549
        $region82: #{ssgpool_forward.1} parent=11 // pred_check_branch
          %1010 = sbr.rel (%p1008) target = $region84
        $region83: #{ssgpool_forward.1} parent=11 // pred_region
          _
        $region84: #{ssgpool_forward.1} parent=11 // pred_fallthru
          _
        // Predicated region
        $region85: #{ssgpool_forward.1} parent=11 // pred_check
          %p1011 = pneg %p570
        $region86: #{ssgpool_forward.1} parent=11 // pred_check_branch
          %1013 = sbr.rel (%p1011) target = $region88
        $region87: #{ssgpool_forward.1} parent=11 // pred_region
          _
        $region88: #{ssgpool_forward.1} parent=11 // pred_fallthru
          _
        // Predicated region
        $region89: #{ssgpool_forward.1} parent=11 // pred_check
          %p1014 = pneg %p591
        $region90: #{ssgpool_forward.1} parent=11 // pred_check_branch
          %1016 = sbr.rel (%p1014) target = $region92
        $region91: #{ssgpool_forward.1} parent=11 // pred_region
          _
        $region92: #{ssgpool_forward.1} parent=11 // pred_fallthru
          _
        // Predicated region
        $region93: #{ssgpool_forward.1} parent=11 // pred_check
          %p1017 = pneg %p612
        $region94: #{ssgpool_forward.1} parent=11 // pred_check_branch
          %1019 = sbr.rel (%p1017) target = $region96
        $region95: #{ssgpool_forward.1} parent=11 // pred_region
          _
        $region96: #{ssgpool_forward.1} parent=11 // pred_fallthru
          _
        // Predicated region
        $region97: #{ssgpool_forward.1} parent=11 // pred_check
          %p1020 = pneg %p633
        $region98: #{ssgpool_forward.1} parent=11 // pred_check_branch
          %1022 = sbr.rel (%p1020) target = $region100
        $region99: #{ssgpool_forward.1} parent=11 // pred_region
          _
        $region100: #{ssgpool_forward.1} parent=11 // pred_fallthru
          _
        // Predicated region
        $region101: #{ssgpool_forward.1} parent=11 // pred_check
          %p1023 = pneg %p654
        $region102: #{ssgpool_forward.1} parent=11 // pred_check_branch
          %1025 = sbr.rel (%p1023) target = $region104
        $region103: #{ssgpool_forward.1} parent=11 // pred_region
          _
        $region104: #{ssgpool_forward.1} parent=11 // pred_fallthru
          _
        // Predicated region
        $region105: #{ssgpool_forward.1} parent=11 // pred_check
          %p1026 = pneg %p675
        $region106: #{ssgpool_forward.1} parent=11 // pred_check_branch
          %1028 = sbr.rel (%p1026) target = $region108
        $region107: #{ssgpool_forward.1} parent=11 // pred_region
          _
        $region108: #{ssgpool_forward.1} parent=11 // pred_fallthru
          _
        // Predicated region
        $region109: #{ssgpool_forward.1} parent=11 // pred_check
          %p1029 = pneg %p696
        $region110: #{ssgpool_forward.1} parent=11 // pred_check_branch
          %1031 = sbr.rel (%p1029) target = $region112
        $region111: #{ssgpool_forward.1} parent=11 // pred_region
          _
        $region112: #{ssgpool_forward.1} parent=11 // pred_fallthru
          _
        // Predicated region
        $region113: #{ssgpool_forward.1} parent=11 // pred_check
          %p1032 = pneg %p717
        $region114: #{ssgpool_forward.1} parent=11 // pred_check_branch
          %1034 = sbr.rel (%p1032) target = $region116
        $region115: #{ssgpool_forward.1} parent=11 // pred_region
          _
        $region116: #{ssgpool_forward.1} parent=11 // pred_fallthru
          _
        // Predicated region
        $region117: #{ssgpool_forward.1} parent=11 // pred_check
          %p1035 = pneg %p738
        $region118: #{ssgpool_forward.1} parent=11 // pred_check_branch
          %1037 = sbr.rel (%p1035) target = $region120
        $region119: #{ssgpool_forward.1} parent=11 // pred_region
          _
        $region120: #{ssgpool_forward.1} parent=11 // pred_fallthru
          _
        // Predicated region
        $region121: #{ssgpool_forward.1} parent=11 // pred_check
          %p1038 = pneg %p759
        $region122: #{ssgpool_forward.1} parent=11 // pred_check_branch
          %1040 = sbr.rel (%p1038) target = $region124
        $region123: #{ssgpool_forward.1} parent=11 // pred_region
          _
        $region124: #{ssgpool_forward.1} parent=11 // pred_fallthru
          _
        // Predicated region
        $region125: #{ssgpool_forward.1} parent=11 // pred_check
          %p1041 = pneg %p780
        $region126: #{ssgpool_forward.1} parent=11 // pred_check_branch
          %1043 = sbr.rel (%p1041) target = $region128
        $region127: #{ssgpool_forward.1} parent=11 // pred_region
          _
        $region128: #{ssgpool_forward.1} parent=11 // pred_fallthru
          _
        // Predicated region
        $region129: #{ssgpool_forward.1} parent=11 // pred_check
          %p1044 = pneg %p801
        $region130: #{ssgpool_forward.1} parent=11 // pred_check_branch
          %1046 = sbr.rel (%p1044) target = $region132
        $region131: #{ssgpool_forward.1} parent=11 // pred_region
          _
        $region132: #{ssgpool_forward.1} parent=11 // pred_fallthru
          _
        // Predicated region
        $region133: #{ssgpool_forward.1} parent=11 // pred_check
          %p1047 = pneg %p822
        $region134: #{ssgpool_forward.1} parent=11 // pred_check_branch
          %1049 = sbr.rel (%p1047) target = $region136
        $region135: #{ssgpool_forward.1} parent=11 // pred_region
          _
        $region136: #{ssgpool_forward.1} parent=11 // pred_fallthru
          _
        // Predicated region
        $region137: #{ssgpool_forward.1} parent=11 // pred_check
          %p1050 = pneg %p843
        $region138: #{ssgpool_forward.1} parent=11 // pred_check_branch
          %1052 = sbr.rel (%p1050) target = $region140
        $region139: #{ssgpool_forward.1} parent=11 // pred_region
          _
        $region140: #{ssgpool_forward.1} parent=11 // pred_fallthru
          _
        // Predicated region
        $region141: #{ssgpool_forward.1} parent=11 // pred_check
          %p1053 = pneg %p864
        $region142: #{ssgpool_forward.1} parent=11 // pred_check_branch
          %1055 = sbr.rel (%p1053) target = $region144
        $region143: #{ssgpool_forward.1} parent=11 // pred_region
          _
        $region144: #{ssgpool_forward.1} parent=11 // pred_fallthru
          _
      $region12: #{ssgpool_forward.1} parent=5 // pred_fallthru
        _
      %p1056 = scmp.lt.s32.totalorder %s93, 2
      // Predicated region
      $region145: #{ssgpool_forward.1} parent=5 // pred_check
        %p1057 = pneg %p1056
      $region146: #{ssgpool_forward.1} parent=5 // pred_check_branch
        %1059 = sbr.rel (%p1057) target = $region148
      $region147: #{ssgpool_forward.1} parent=5 // pred_region
        // Predicated region
        $region149: #{ssgpool_forward.1} parent=147 // pred_check
          %p1060 = pneg %p113
        $region150: #{ssgpool_forward.1} parent=147 // pred_check_branch
          %1062 = sbr.rel (%p1060) target = $region152
        $region151: #{ssgpool_forward.1} parent=147 // pred_region
          %p1063 = scmp.lt.s32.totalorder %s93, 1
          %s1064 = scalar_select %p1063, %s93, 1
          %s1065 = smul.addr %s1064, 2
          %s1066 = smul.addr %s1065, 8
          %s1067 = scalar_lea.vmem %s1, %s1066
        $region152: #{ssgpool_forward.1} parent=147 // pred_fallthru
          _
        // Predicated region
        $region153: #{ssgpool_forward.1} parent=147 // pred_check
          %p1068 = pneg %p139
        $region154: #{ssgpool_forward.1} parent=147 // pred_check_branch
          %1070 = sbr.rel (%p1068) target = $region156
        $region155: #{ssgpool_forward.1} parent=147 // pred_region
          %p1071 = scmp.lt.s32.totalorder %s93, 1
          %s1072 = scalar_select %p1071, %s93, 1
          %s1073 = smul.addr %s1072, 2
          %s1074 = smul.addr %s1073, 4
          %s1075 = scalar_lea.vmem %s3, %s1074
        $region156: #{ssgpool_forward.1} parent=147 // pred_fallthru
          _
        // Predicated region
        $region157: #{ssgpool_forward.1} parent=147 // pred_check
          %p1076 = pneg %p165
        $region158: #{ssgpool_forward.1} parent=147 // pred_check_branch
          %1078 = sbr.rel (%p1076) target = $region160
        $region159: #{ssgpool_forward.1} parent=147 // pred_region
          %p1079 = scmp.lt.s32.totalorder %s93, 1
          %s1080 = scalar_select %p1079, %s93, 1
          %s1081 = smul.addr %s1080, 2
          %s1082 = smul.addr %s1081, 8
          %s1083 = scalar_lea.vmem %s5, %s1082
        $region160: #{ssgpool_forward.1} parent=147 // pred_fallthru
          _
      $region148: #{ssgpool_forward.1} parent=5 // pred_fallthru
        _
      %p1084 = scmp.le.s32.totalorder 1, %s93
      %p1085 = scmp.lt.s32.totalorder %s93, 3
      %p1086 = pnand %p1084, %p1085
      %p1087 = pneg %p1086
      // Predicated region
      $region161: #{ssgpool_forward.1} parent=5 // pred_check
        _
      $region162: #{ssgpool_forward.1} parent=5 // pred_check_branch
        %1089 = sbr.rel (%p1086) target = $region164
      $region163: #{ssgpool_forward.1} parent=5 // pred_region
        %s1090 = ssub.s32 %s93, 1
        %p1091 = scmp.lt.s32.totalorder %s98, 1
        %s1092 = scalar_select %p1091, %s98, 1
        %s1093 = smul.addr %s1092, 2
        %s1094 = smul.addr %s1093, 8
        %s1095 = scalar_lea.vmem %s1, %s1094
        %p1096 = pneg %p119
        %p1097 = pneg %p116
        %p1098 = scmp.lt.s32.totalorder %s98, 1
        %s1099 = scalar_select %p1098, %s98, 1
        %s1100 = smul.addr %s1099, 2
        %s1101 = smul.addr %s1100, 4
        %s1102 = scalar_lea.vmem %s3, %s1101
        %p1103 = pneg %p145
        %p1104 = pneg %p142
        %p1105 = scmp.lt.s32.totalorder %s98, 1
        %s1106 = scalar_select %p1105, %s98, 1
        %s1107 = smul.addr %s1106, 2
        %s1108 = smul.addr %s1107, 8
        %s1109 = scalar_lea.vmem %s5, %s1108
        %p1110 = pneg %p171
        %p1111 = pneg %p168
        %p1112 = pneg %p192
        %p1113 = pneg %p189
        %p1114 = pneg %p213
        %p1115 = pneg %p210
        %p1116 = pneg %p234
        %p1117 = pneg %p231
        %p1118 = pneg %p255
        %p1119 = pneg %p252
        %p1120 = pneg %p276
        %p1121 = pneg %p273
        %p1122 = pneg %p297
        %p1123 = pneg %p294
        %p1124 = pneg %p318
        %p1125 = pneg %p315
        %p1126 = pneg %p339
        %p1127 = pneg %p336
        %p1128 = pneg %p360
        %p1129 = pneg %p357
        %p1130 = pneg %p381
        %p1131 = pneg %p378
        %p1132 = pneg %p402
        %p1133 = pneg %p399
        %p1134 = pneg %p423
        %p1135 = pneg %p420
        %p1136 = pneg %p444
        %p1137 = pneg %p441
        %p1138 = pneg %p465
        %p1139 = pneg %p462
        %p1140 = pneg %p486
        %p1141 = pneg %p483
        %p1142 = pneg %p507
        %p1143 = pneg %p504
        %p1144 = pneg %p528
        %p1145 = pneg %p525
        %p1146 = pneg %p549
        %p1147 = pneg %p546
        %p1148 = pneg %p570
        %p1149 = pneg %p567
        %p1150 = pneg %p591
        %p1151 = pneg %p588
        %p1152 = pneg %p612
        %p1153 = pneg %p609
        %p1154 = pneg %p633
        %p1155 = pneg %p630
        %p1156 = pneg %p654
        %p1157 = pneg %p651
        %p1158 = pneg %p675
        %p1159 = pneg %p672
        %p1160 = pneg %p696
        %p1161 = pneg %p693
        %p1162 = pneg %p717
        %p1163 = pneg %p714
        %p1164 = pneg %p738
        %p1165 = pneg %p735
        %p1166 = pneg %p759
        %p1167 = pneg %p756
        %p1168 = pneg %p780
        %p1169 = pneg %p777
        %p1170 = pneg %p801
        %p1171 = pneg %p798
        %p1172 = pneg %p822
        %p1173 = pneg %p819
        %p1174 = pneg %p843
        %p1175 = pneg %p840
        %p1176 = pneg %p864
        %p1177 = pneg %p861
        %p1178 = pneg %p890
        %p1179 = pneg %p887
        %s1180 = sand.u32 %s877, 1
        %s1181 = scalar_lea.sflag [#allocation6], %s1180
        %s1182 = sand.u32 %s877, 1
        %s1183 = scalar_lea.vmem [#allocation5], %s1182
        %p1184 = pneg %p916
        %p1185 = pneg %p913
        %p1186 = scmp.lt.s32.totalorder %s98, 1
        %s1187 = scalar_select %p1186, %s98, 1
        %s1188 = scalar_lea.vmem %s75, %s1187
        %p1189 = pneg %p942
        %p1190 = pneg %p939
        %p1191 = scmp.lt.s32.totalorder %s98, 1
        %s1192 = scalar_select %p1191, %s98, 1
        %s1193 = scalar_lea.vmem %s77, %s1192
        %p1194 = scmp.lt.s32.totalorder %s98, 1
        %s1195 = scalar_select %p1194, %s98, 1
        %s1196 = smul.addr %s1195, 2
        %s1197 = smul.addr %s1196, 8
        %s1198 = scalar_lea.vmem %s1, %s1197
        %p1199 = scmp.lt.s32.totalorder %s98, 1
        %s1200 = scalar_select %p1199, %s98, 1
        %s1201 = smul.addr %s1200, 2
        %s1202 = smul.addr %s1201, 4
        %s1203 = scalar_lea.vmem %s3, %s1202
        %p1204 = scmp.lt.s32.totalorder %s98, 1
        %s1205 = scalar_select %p1204, %s98, 1
        %s1206 = smul.addr %s1205, 2
        %s1207 = smul.addr %s1206, 8
        %s1208 = scalar_lea.vmem %s5, %s1207
        %p1209 = scmp.lt.s32.totalorder %s98, 1
        %s1210 = scalar_select %p1209, %s98, 1
        %s1211 = scalar_lea.vmem %s75, %s1210
        %p1212 = scmp.lt.s32.totalorder %s98, 1
        %s1213 = scalar_select %p1212, %s98, 1
        %s1214 = scalar_lea.vmem %s77, %s1213
        %v1216 = vld [vmem:[%s1198] sm:$0xff]
        %v1217 = vld [vmem:[%s1198 + $0x8] sm:$0xff]
        %v1218 = vld [vmem:[%s1203] sm:$0xf]
        %v1219 = vld [vmem:[%s1203 + $0x4] sm:$0xf]
        %v1220 = vunpack.c.l.bf16 %v1218
        %v1221 = vunpack.c.l.bf16 %v1219
        %v1222 = vld [vmem:[%s1208] sm:$0xff]
        %v1223 = vld [vmem:[%s1208 + $0x8] sm:$0xff]
        %vm1224 = vcmask 130048
        %v1225 = vsel %vm1224, %v1220, 0.0
        %1226 = vadd.xlane.f32.xlu0 %v1225
        %v1227 = vpop.xlane.xlu0 %1226
        %v1228 = vsel %vm1224, %v1221, 0.0
        %1229 = vadd.xlane.f32.xlu0 %v1228
        %v1230 = vpop.xlane.xlu0 %1229
        %v1231 = vadd.f32 %v1227, 1.0
        %v1232 = vadd.f32 %v1230, 1.0
        %v1233 = vrsqrt.pop %v1231
        %v1234 = vrsqrt.pop %v1232
        %v1235 = vld [vmem:[%s7] sm:$0xf]
        %v1236 = vld [vmem:[%s9] sm:$0x1]
        %v1237 = vld [vmem:[%s11] sm:$0xf]
        %v1238 = vld [vmem:[%s11 + $0x4] sm:$0xf]
        %v1239 = vld [vmem:[%s11 + $0x8] sm:$0xf]
        %v1240 = vld [vmem:[%s11 + $0xc] sm:$0xf]
        %v1241 = vld [vmem:[%s13] sm:$0x1]
        %v1242 = vld [vmem:[%s15] sm:$0xf]
        %v1243 = vld [vmem:[%s15 + $0x4] sm:$0xf]
        %v1244 = vld [vmem:[%s15 + $0x8] sm:$0xf]
        %v1245 = vld [vmem:[%s15 + $0xc] sm:$0xf]
        %v1246 = vld [vmem:[%s17] sm:$0x3]
        %v1247 = vld [vmem:[%s19] sm:$0x1]
        %v1248 = vpack.c.bf16 %v1217, %v1216
        %vm1249 = vcmask 64512
        %v1251 = vsel %vm1249, %v1248, 0
        %vm1253 = vcmask 1043456
        %v1255 = vsel %vm1253, %v1235, 0
        %1257 = vmatprep.subr.bf16.mxu0 0
        %1258 = vmatpush1.bf16.msra.mxu0 0
        %1259 = vmatprep.subr.bf16.mxu0 0
        %1260 = vmatpush1.bf16.msra.mxu0 0
        %1261 = vmatprep.subr.bf16.mxu0 0
        %1262 = vmatpush1.bf16.msra.mxu0 0
        %1263 = vmatprep.subr.bf16.mxu0 0
        %1264 = vmatpush1.bf16.msra.mxu0 0
        %1265 = vmatprep.subr.bf16.mxu0 0
        %1266 = vmatpush1.bf16.msra.mxu0 0
        %1267 = vmatprep.subr.bf16.mxu0 0
        %1268 = vmatpush1.bf16.msra.mxu0 0
        %1269 = vmatprep.subr.bf16.mxu0 0
        %1270 = vmatpush1.bf16.msra.mxu0 0
        %1271 = vmatprep.subr.bf16.mxu0 0
        %1272 = vmatpush1.bf16.msra.mxu0 %v1255
        %1273 = vmatprep.subr.bf16.mxu0 0
        %1274 = vmatpush2.bf16.msra.mxu0 0
        %1275 = vmatprep.subr.bf16.mxu0 0
        %1276 = vmatpush2.bf16.msra.mxu0 0
        %1277 = vmatprep.subr.bf16.mxu0 0
        %1278 = vmatpush2.bf16.msra.mxu0 0
        %1279 = vmatprep.subr.bf16.mxu0 0
        %1280 = vmatpush2.bf16.msra.mxu0 0
        %1281 = vmatprep.subr.bf16.mxu0 0
        %1282 = vmatpush2.bf16.msra.mxu0 0
        %1283 = vmatprep.subr.bf16.mxu0 0
        %1284 = vmatpush2.bf16.msra.mxu0 0
        %1285 = vmatprep.subr.bf16.mxu0 0
        %1286 = vmatpush2.bf16.msra.mxu0 0
        %1287 = vmatprep.subr.bf16.mxu0 0
        %1288 = vmatpush2.bf16.msra.mxu0 0
        %1289 = vmatprep.mubr.bf16.mxu0 0
        %1290 = vmatmul.mubr.bf16.gmra.mxu0 %v1251
        %v1291 = vpop.f32.mrf.mxu0
        %v1292 = vadd.f32 0.0, %v1291
        %v1293 = vpop.f32.mrf.mxu0
        %v1294 = vpop.f32.mrf.mxu0
        %v1295 = vadd.f32 0.0, %v1294
        %v1296 = vpop.f32.mrf.mxu0
        %1297 = vdwg.mxu0
        %v1298 = vmul.f32 %v1233, %v1292
        %v1299 = vmul.f32 %v1234, %v1295
        %v1300 = vpack.c.bf16 %v1299, %v1298
        %v1303 = vunpack.c.l.b16 %v1218
        %v1304 = vunpack.c.l.b16 %v1219
        %v1305 = vpack.c.b16 %v1304, %v1303
        %v1307 = vsel %vm1224, %v1305, 0
        %1309 = vmatprep.subr.bf16.mxu0 0
        %1310 = vmatpush1.bf16.msra.mxu0 0
        %1311 = vmatprep.subr.bf16.mxu0 0
        %1312 = vmatpush1.bf16.msra.mxu0 0
        %1313 = vmatprep.subr.bf16.mxu0 0
        %1314 = vmatpush1.bf16.msra.mxu0 0
        %1315 = vmatprep.subr.bf16.mxu0 0
        %1316 = vmatpush1.bf16.msra.mxu0 0
        %1317 = vmatprep.subr.bf16.mxu0 0
        %1318 = vmatpush1.bf16.msra.mxu0 0
        %1319 = vmatprep.subr.bf16.mxu0 0
        %1320 = vmatpush1.bf16.msra.mxu0 0
        %1321 = vmatprep.subr.bf16.mxu0 0
        %1322 = vmatpush1.bf16.msra.mxu0 0
        %1323 = vmatprep.subr.bf16.mxu0 0
        %1324 = vmatpush1.bf16.msra.mxu0 %v1300
        %1325 = vmatprep.subr.bf16.mxu0 0
        %1326 = vmatpush2.bf16.msra.mxu0 0
        %1327 = vmatprep.subr.bf16.mxu0 0
        %1328 = vmatpush2.bf16.msra.mxu0 0
        %1329 = vmatprep.subr.bf16.mxu0 0
        %1330 = vmatpush2.bf16.msra.mxu0 0
        %1331 = vmatprep.subr.bf16.mxu0 0
        %1332 = vmatpush2.bf16.msra.mxu0 0
        %1333 = vmatprep.subr.bf16.mxu0 0
        %1334 = vmatpush2.bf16.msra.mxu0 0
        %1335 = vmatprep.subr.bf16.mxu0 0
        %1336 = vmatpush2.bf16.msra.mxu0 0
        %1337 = vmatprep.subr.bf16.mxu0 0
        %1338 = vmatpush2.bf16.msra.mxu0 0
        %1339 = vmatprep.subr.bf16.mxu0 0
        %1340 = vmatpush2.bf16.msra.mxu0 0
        %1341 = vmatprep.mubr.bf16.mxu0 0
        %1342 = vmatmul.mubr.bf16.gmra.mxu0 %v1307
        %v1343 = vpop.f32.mrf.mxu0
        %v1344 = vadd.f32 %v1298, %v1343
        %v1345 = vpop.f32.mrf.mxu0
        %v1346 = vpop.f32.mrf.mxu0
        %v1347 = vadd.f32 %v1299, %v1346
        %v1348 = vpop.f32.mrf.mxu0
        %1349 = vdwg.mxu0
        %v1350 = vmul.f32 %v1233, %v1344
        %v1351 = vmul.f32 %v1234, %v1347
        %v1353 = vlaneseq
        %v1354 = vshrl.u32 %v1353, 7
        %v1355 = vsub.s32 0, %v1354
        %v1356 = vrot.slane %v1236, %v1355
        %v1358 = vadd.f32 %v1350, %v1356
        %v1359 = vadd.f32 %v1351, %v1356
        %v1360 = vmax.f32 %v1358, 0.0
        %v1361 = vmax.f32 %v1359, 0.0
        %1363 = vset.pattern.permute.xlu0 0
        %1364 = vperm.xlu0 %1363, %v1222
        %v1365 = vpop.permute.xlu0 %1364
        %1368 = vset.pattern.permute.xlu0 0
        %1369 = vperm.xlu0 %1368, %v1223
        %v1370 = vpop.permute.xlu0 %1369
        %v1372 = vmul.f32 %v1360, %v1365
        %v1373 = vmul.f32 %v1361, %v1370
        %v1374 = vpack.c.bf16 %v1373, %v1372
        %v1379 = vunpack.c.l.b16 %v1237
        %v1380 = vunpack.c.l.b16 %v1238
        %v1381 = vunpack.c.l.b16 %v1239
        %v1382 = vunpack.c.l.b16 %v1240
        %v1383 = vpack.c.b16 %v1380, %v1379
        %v1384 = vpack.c.b16 %v1382, %v1381
        %vm1387 = vcmask 261120
        %v1389 = vsel %vm1387, %v1374, 0
        %1391 = vmatprep.subr.bf16.mxu0 0
        %1392 = vmatpush1.bf16.msra.mxu0 0
        %1393 = vmatprep.subr.bf16.mxu0 0
        %1394 = vmatpush1.bf16.msra.mxu0 0
        %1395 = vmatprep.subr.bf16.mxu0 0
        %1396 = vmatpush1.bf16.msra.mxu0 0
        %1397 = vmatprep.subr.bf16.mxu0 0
        %1398 = vmatpush1.bf16.msra.mxu0 0
        %1399 = vmatprep.subr.bf16.mxu0 0
        %1400 = vmatpush1.bf16.msra.mxu0 0
        %1401 = vmatprep.subr.bf16.mxu0 0
        %1402 = vmatpush1.bf16.msra.mxu0 0
        %1403 = vmatprep.subr.bf16.mxu0 0
        %1404 = vmatpush1.bf16.msra.mxu0 %v1384
        %1405 = vmatprep.subr.bf16.mxu0 0
        %1406 = vmatpush1.bf16.msra.mxu0 %v1383
        %1407 = vmatprep.subr.bf16.mxu0 0
        %1408 = vmatpush2.bf16.msra.mxu0 0
        %1409 = vmatprep.subr.bf16.mxu0 0
        %1410 = vmatpush2.bf16.msra.mxu0 0
        %1411 = vmatprep.subr.bf16.mxu0 0
        %1412 = vmatpush2.bf16.msra.mxu0 0
        %1413 = vmatprep.subr.bf16.mxu0 0
        %1414 = vmatpush2.bf16.msra.mxu0 0
        %1415 = vmatprep.subr.bf16.mxu0 0
        %1416 = vmatpush2.bf16.msra.mxu0 0
        %1417 = vmatprep.subr.bf16.mxu0 0
        %1418 = vmatpush2.bf16.msra.mxu0 0
        %1419 = vmatprep.subr.bf16.mxu0 0
        %1420 = vmatpush2.bf16.msra.mxu0 0
        %1421 = vmatprep.subr.bf16.mxu0 0
        %1422 = vmatpush2.bf16.msra.mxu0 0
        %1423 = vmatprep.mubr.bf16.mxu0 0
        %1424 = vmatmul.mubr.bf16.gmra.mxu0 %v1389
        %v1425 = vpop.f32.mrf.mxu0
        %v1426 = vadd.f32 0.0, %v1425
        %v1427 = vpop.f32.mrf.mxu0
        %v1428 = vpop.f32.mrf.mxu0
        %v1429 = vadd.f32 0.0, %v1428
        %v1430 = vpop.f32.mrf.mxu0
        %1431 = vdwg.mxu0
        %v1432 = vmul.f32 %v1233, %v1426
        %v1433 = vmul.f32 %v1234, %v1429
        %v1434 = vpack.c.bf16 %v1433, %v1432
        %1435 = vmatprep.subr.bf16.mxu0 0
        %1436 = vmatpush1.bf16.msra.mxu0 0
        %1437 = vmatprep.subr.bf16.mxu0 0
        %1438 = vmatpush1.bf16.msra.mxu0 0
        %1439 = vmatprep.subr.bf16.mxu0 0
        %1440 = vmatpush1.bf16.msra.mxu0 0
        %1441 = vmatprep.subr.bf16.mxu0 0
        %1442 = vmatpush1.bf16.msra.mxu0 0
        %1443 = vmatprep.subr.bf16.mxu0 0
        %1444 = vmatpush1.bf16.msra.mxu0 0
        %1445 = vmatprep.subr.bf16.mxu0 0
        %1446 = vmatpush1.bf16.msra.mxu0 0
        %1447 = vmatprep.subr.bf16.mxu0 0
        %1448 = vmatpush1.bf16.msra.mxu0 0
        %1449 = vmatprep.subr.bf16.mxu0 0
        %1450 = vmatpush1.bf16.msra.mxu0 %v1434
        %1451 = vmatprep.subr.bf16.mxu0 0
        %1452 = vmatpush2.bf16.msra.mxu0 0
        %1453 = vmatprep.subr.bf16.mxu0 0
        %1454 = vmatpush2.bf16.msra.mxu0 0
        %1455 = vmatprep.subr.bf16.mxu0 0
        %1456 = vmatpush2.bf16.msra.mxu0 0
        %1457 = vmatprep.subr.bf16.mxu0 0
        %1458 = vmatpush2.bf16.msra.mxu0 0
        %1459 = vmatprep.subr.bf16.mxu0 0
        %1460 = vmatpush2.bf16.msra.mxu0 0
        %1461 = vmatprep.subr.bf16.mxu0 0
        %1462 = vmatpush2.bf16.msra.mxu0 0
        %1463 = vmatprep.subr.bf16.mxu0 0
        %1464 = vmatpush2.bf16.msra.mxu0 0
        %1465 = vmatprep.subr.bf16.mxu0 0
        %1466 = vmatpush2.bf16.msra.mxu0 0
        %1467 = vmatprep.mubr.bf16.mxu0 0
        %1468 = vmatmul.mubr.bf16.gmra.mxu0 %v1307
        %v1469 = vpop.f32.mrf.mxu0
        %v1470 = vadd.f32 %v1432, %v1469
        %v1471 = vpop.f32.mrf.mxu0
        %v1472 = vpop.f32.mrf.mxu0
        %v1473 = vadd.f32 %v1433, %v1472
        %v1474 = vpop.f32.mrf.mxu0
        %1475 = vdwg.mxu0
        %v1476 = vmul.f32 %v1233, %v1470
        %v1477 = vmul.f32 %v1234, %v1473
        %v1479 = vlaneseq
        %v1480 = vshrl.u32 %v1479, 7
        %v1481 = vsub.s32 0, %v1480
        %v1482 = vrot.slane %v1241, %v1481
        %v1484 = vadd.f32 %v1476, %v1482
        %v1485 = vadd.f32 %v1477, %v1482
        %v1486 = vmax.f32 %v1484, 0.0
        %v1487 = vmax.f32 %v1485, 0.0
        %v1488 = vmul.f32 %v1486, %v1365
        %v1489 = vmul.f32 %v1487, %v1370
        %v1490 = vpack.c.bf16 %v1489, %v1488
        %vm1491 = vcmask 31744
        %v1493 = vsel %vm1491, %v1490, 0
        %vm1495 = vcmask 1041408
        %v1497 = vsel %vm1495, %v1246, 0
        %1499 = vmatprep.subr.bf16.mxu0 0
        %1500 = vmatpush1.bf16.msra.mxu0 0
        %1501 = vmatprep.subr.bf16.mxu0 0
        %1502 = vmatpush1.bf16.msra.mxu0 0
        %1503 = vmatprep.subr.bf16.mxu0 0
        %1504 = vmatpush1.bf16.msra.mxu0 0
        %1505 = vmatprep.subr.bf16.mxu0 0
        %1506 = vmatpush1.bf16.msra.mxu0 0
        %1507 = vmatprep.subr.bf16.mxu0 0
        %1508 = vmatpush1.bf16.msra.mxu0 0
        %1509 = vmatprep.subr.bf16.mxu0 0
        %1510 = vmatpush1.bf16.msra.mxu0 0
        %1511 = vmatprep.subr.bf16.mxu0 0
        %1512 = vmatpush1.bf16.msra.mxu0 0
        %1513 = vmatprep.subr.bf16.mxu0 0
        %1514 = vmatpush1.bf16.msra.mxu0 %v1497
        %1515 = vmatprep.subr.bf16.mxu0 0
        %1516 = vmatpush2.bf16.msra.mxu0 0
        %1517 = vmatprep.subr.bf16.mxu0 0
        %1518 = vmatpush2.bf16.msra.mxu0 0
        %1519 = vmatprep.subr.bf16.mxu0 0
        %1520 = vmatpush2.bf16.msra.mxu0 0
        %1521 = vmatprep.subr.bf16.mxu0 0
        %1522 = vmatpush2.bf16.msra.mxu0 0
        %1523 = vmatprep.subr.bf16.mxu0 0
        %1524 = vmatpush2.bf16.msra.mxu0 0
        %1525 = vmatprep.subr.bf16.mxu0 0
        %1526 = vmatpush2.bf16.msra.mxu0 0
        %1527 = vmatprep.subr.bf16.mxu0 0
        %1528 = vmatpush2.bf16.msra.mxu0 0
        %1529 = vmatprep.subr.bf16.mxu0 0
        %1530 = vmatpush2.bf16.msra.mxu0 0
        %1531 = vmatprep.mubr.bf16.mxu0 0
        %1532 = vmatmul.mubr.bf16.gmra.mxu0 %v1493
        %v1533 = vpop.f32.mrf.mxu0
        %v1534 = vadd.f32 0.0, %v1533
        %v1535 = vpop.f32.mrf.mxu0
        %v1536 = vpop.f32.mrf.mxu0
        %v1537 = vadd.f32 0.0, %v1536
        %v1538 = vpop.f32.mrf.mxu0
        %1539 = vdwg.mxu0
        %v1544 = vunpack.c.l.b16 %v1242
        %v1545 = vunpack.c.l.b16 %v1243
        %v1546 = vunpack.c.l.b16 %v1244
        %v1547 = vunpack.c.l.b16 %v1245
        %v1548 = vpack.c.b16 %v1545, %v1544
        %v1549 = vpack.c.b16 %v1547, %v1546
        %1552 = vmatprep.subr.bf16.mxu0 0
        %1553 = vmatpush1.bf16.msra.mxu0 0
        %1554 = vmatprep.subr.bf16.mxu0 0
        %1555 = vmatpush1.bf16.msra.mxu0 0
        %1556 = vmatprep.subr.bf16.mxu0 0
        %1557 = vmatpush1.bf16.msra.mxu0 0
        %1558 = vmatprep.subr.bf16.mxu0 0
        %1559 = vmatpush1.bf16.msra.mxu0 0
        %1560 = vmatprep.subr.bf16.mxu0 0
        %1561 = vmatpush1.bf16.msra.mxu0 0
        %1562 = vmatprep.subr.bf16.mxu0 0
        %1563 = vmatpush1.bf16.msra.mxu0 0
        %1564 = vmatprep.subr.bf16.mxu0 0
        %1565 = vmatpush1.bf16.msra.mxu0 %v1549
        %1566 = vmatprep.subr.bf16.mxu0 0
        %1567 = vmatpush1.bf16.msra.mxu0 %v1548
        %1568 = vmatprep.subr.bf16.mxu0 0
        %1569 = vmatpush2.bf16.msra.mxu0 0
        %1570 = vmatprep.subr.bf16.mxu0 0
        %1571 = vmatpush2.bf16.msra.mxu0 0
        %1572 = vmatprep.subr.bf16.mxu0 0
        %1573 = vmatpush2.bf16.msra.mxu0 0
        %1574 = vmatprep.subr.bf16.mxu0 0
        %1575 = vmatpush2.bf16.msra.mxu0 0
        %1576 = vmatprep.subr.bf16.mxu0 0
        %1577 = vmatpush2.bf16.msra.mxu0 0
        %1578 = vmatprep.subr.bf16.mxu0 0
        %1579 = vmatpush2.bf16.msra.mxu0 0
        %1580 = vmatprep.subr.bf16.mxu0 0
        %1581 = vmatpush2.bf16.msra.mxu0 0
        %1582 = vmatprep.subr.bf16.mxu0 0
        %1583 = vmatpush2.bf16.msra.mxu0 0
        %1584 = vmatprep.mubr.bf16.mxu0 0
        %1585 = vmatmul.mubr.bf16.gmra.mxu0 %v1389
        %v1586 = vpop.f32.mrf.mxu0
        %v1587 = vadd.f32 %v1534, %v1586
        %v1588 = vpop.f32.mrf.mxu0
        %v1589 = vpop.f32.mrf.mxu0
        %v1590 = vadd.f32 %v1537, %v1589
        %v1591 = vpop.f32.mrf.mxu0
        %1592 = vdwg.mxu0
        %v1594 = vlaneseq
        %v1595 = vshrl.u32 %v1594, 7
        %v1596 = vsub.s32 0, %v1595
        %v1597 = vrot.slane %v1247, %v1596
        %v1599 = vadd.f32 %v1587, %v1597
        %v1600 = vadd.f32 %v1590, %v1597
        %v1601 = vld [vmem:[%s21] sm:$0xf]
        %v1602 = vld [vmem:[%s23] sm:$0x1]
        %v1603 = vld [vmem:[%s25] sm:$0xf]
        %v1604 = vld [vmem:[%s25 + $0x4] sm:$0xf]
        %v1605 = vld [vmem:[%s25 + $0x8] sm:$0xf]
        %v1606 = vld [vmem:[%s25 + $0xc] sm:$0xf]
        %v1607 = vld [vmem:[%s27] sm:$0x1]
        %v1608 = vld [vmem:[%s29] sm:$0xf]
        %v1609 = vld [vmem:[%s29 + $0x4] sm:$0xf]
        %v1610 = vld [vmem:[%s29 + $0x8] sm:$0xf]
        %v1611 = vld [vmem:[%s29 + $0xc] sm:$0xf]
        %v1612 = vld [vmem:[%s31] sm:$0xf]
        %v1613 = vld [vmem:[%s31 + $0x4] sm:$0xf]
        %v1614 = vld [vmem:[%s31 + $0x8] sm:$0xf]
        %v1615 = vld [vmem:[%s31 + $0xc] sm:$0xf]
        %v1616 = vld [vmem:[%s33] sm:$0x1]
        %v1618 = vsel %vm1253, %v1601, 0
        %1620 = vmatprep.subr.bf16.mxu0 0
        %1621 = vmatpush1.bf16.msra.mxu0 0
        %1622 = vmatprep.subr.bf16.mxu0 0
        %1623 = vmatpush1.bf16.msra.mxu0 0
        %1624 = vmatprep.subr.bf16.mxu0 0
        %1625 = vmatpush1.bf16.msra.mxu0 0
        %1626 = vmatprep.subr.bf16.mxu0 0
        %1627 = vmatpush1.bf16.msra.mxu0 0
        %1628 = vmatprep.subr.bf16.mxu0 0
        %1629 = vmatpush1.bf16.msra.mxu0 0
        %1630 = vmatprep.subr.bf16.mxu0 0
        %1631 = vmatpush1.bf16.msra.mxu0 0
        %1632 = vmatprep.subr.bf16.mxu0 0
        %1633 = vmatpush1.bf16.msra.mxu0 0
        %1634 = vmatprep.subr.bf16.mxu0 0
        %1635 = vmatpush1.bf16.msra.mxu0 %v1618
        %1636 = vmatprep.subr.bf16.mxu0 0
        %1637 = vmatpush2.bf16.msra.mxu0 0
        %1638 = vmatprep.subr.bf16.mxu0 0
        %1639 = vmatpush2.bf16.msra.mxu0 0
        %1640 = vmatprep.subr.bf16.mxu0 0
        %1641 = vmatpush2.bf16.msra.mxu0 0
        %1642 = vmatprep.subr.bf16.mxu0 0
        %1643 = vmatpush2.bf16.msra.mxu0 0
        %1644 = vmatprep.subr.bf16.mxu0 0
        %1645 = vmatpush2.bf16.msra.mxu0 0
        %1646 = vmatprep.subr.bf16.mxu0 0
        %1647 = vmatpush2.bf16.msra.mxu0 0
        %1648 = vmatprep.subr.bf16.mxu0 0
        %1649 = vmatpush2.bf16.msra.mxu0 0
        %1650 = vmatprep.subr.bf16.mxu0 0
        %1651 = vmatpush2.bf16.msra.mxu0 0
        %1652 = vmatprep.mubr.bf16.mxu0 0
        %1653 = vmatmul.mubr.bf16.gmra.mxu0 %v1251
        %v1654 = vpop.f32.mrf.mxu0
        %v1655 = vadd.f32 0.0, %v1654
        %v1656 = vpop.f32.mrf.mxu0
        %v1657 = vpop.f32.mrf.mxu0
        %v1658 = vadd.f32 0.0, %v1657
        %v1659 = vpop.f32.mrf.mxu0
        %1660 = vdwg.mxu0
        %v1661 = vmul.f32 %v1233, %v1655
        %v1662 = vmul.f32 %v1234, %v1658
        %v1663 = vpack.c.bf16 %v1662, %v1661
        %1664 = vmatprep.subr.bf16.mxu0 0
        %1665 = vmatpush1.bf16.msra.mxu0 0
        %1666 = vmatprep.subr.bf16.mxu0 0
        %1667 = vmatpush1.bf16.msra.mxu0 0
        %1668 = vmatprep.subr.bf16.mxu0 0
        %1669 = vmatpush1.bf16.msra.mxu0 0
        %1670 = vmatprep.subr.bf16.mxu0 0
        %1671 = vmatpush1.bf16.msra.mxu0 0
        %1672 = vmatprep.subr.bf16.mxu0 0
        %1673 = vmatpush1.bf16.msra.mxu0 0
        %1674 = vmatprep.subr.bf16.mxu0 0
        %1675 = vmatpush1.bf16.msra.mxu0 0
        %1676 = vmatprep.subr.bf16.mxu0 0
        %1677 = vmatpush1.bf16.msra.mxu0 0
        %1678 = vmatprep.subr.bf16.mxu0 0
        %1679 = vmatpush1.bf16.msra.mxu0 %v1663
        %1680 = vmatprep.subr.bf16.mxu0 0
        %1681 = vmatpush2.bf16.msra.mxu0 0
        %1682 = vmatprep.subr.bf16.mxu0 0
        %1683 = vmatpush2.bf16.msra.mxu0 0
        %1684 = vmatprep.subr.bf16.mxu0 0
        %1685 = vmatpush2.bf16.msra.mxu0 0
        %1686 = vmatprep.subr.bf16.mxu0 0
        %1687 = vmatpush2.bf16.msra.mxu0 0
        %1688 = vmatprep.subr.bf16.mxu0 0
        %1689 = vmatpush2.bf16.msra.mxu0 0
        %1690 = vmatprep.subr.bf16.mxu0 0
        %1691 = vmatpush2.bf16.msra.mxu0 0
        %1692 = vmatprep.subr.bf16.mxu0 0
        %1693 = vmatpush2.bf16.msra.mxu0 0
        %1694 = vmatprep.subr.bf16.mxu0 0
        %1695 = vmatpush2.bf16.msra.mxu0 0
        %1696 = vmatprep.mubr.bf16.mxu0 0
        %1697 = vmatmul.mubr.bf16.gmra.mxu0 %v1307
        %v1698 = vpop.f32.mrf.mxu0
        %v1699 = vadd.f32 %v1661, %v1698
        %v1700 = vpop.f32.mrf.mxu0
        %v1701 = vpop.f32.mrf.mxu0
        %v1702 = vadd.f32 %v1662, %v1701
        %v1703 = vpop.f32.mrf.mxu0
        %1704 = vdwg.mxu0
        %v1705 = vmul.f32 %v1233, %v1699
        %v1706 = vmul.f32 %v1234, %v1702
        %v1708 = vlaneseq
        %v1709 = vshrl.u32 %v1708, 7
        %v1710 = vsub.s32 0, %v1709
        %v1711 = vrot.slane %v1602, %v1710
        %v1713 = vadd.f32 %v1705, %v1711
        %v1714 = vadd.f32 %v1706, %v1711
        %v1715 = vmax.f32 %v1713, 0.0
        %v1716 = vmax.f32 %v1714, 0.0
        %v1717 = vmul.f32 %v1715, %v1365
        %v1718 = vmul.f32 %v1716, %v1370
        %v1719 = vpack.c.bf16 %v1718, %v1717
        %v1724 = vunpack.c.l.b16 %v1603
        %v1725 = vunpack.c.l.b16 %v1604
        %v1726 = vunpack.c.l.b16 %v1605
        %v1727 = vunpack.c.l.b16 %v1606
        %v1728 = vpack.c.b16 %v1725, %v1724
        %v1729 = vpack.c.b16 %v1727, %v1726
        %v1733 = vsel %vm1387, %v1719, 0
        %1735 = vmatprep.subr.bf16.mxu0 0
        %1736 = vmatpush1.bf16.msra.mxu0 0
        %1737 = vmatprep.subr.bf16.mxu0 0
        %1738 = vmatpush1.bf16.msra.mxu0 0
        %1739 = vmatprep.subr.bf16.mxu0 0
        %1740 = vmatpush1.bf16.msra.mxu0 0
        %1741 = vmatprep.subr.bf16.mxu0 0
        %1742 = vmatpush1.bf16.msra.mxu0 0
        %1743 = vmatprep.subr.bf16.mxu0 0
        %1744 = vmatpush1.bf16.msra.mxu0 0
        %1745 = vmatprep.subr.bf16.mxu0 0
        %1746 = vmatpush1.bf16.msra.mxu0 0
        %1747 = vmatprep.subr.bf16.mxu0 0
        %1748 = vmatpush1.bf16.msra.mxu0 %v1729
        %1749 = vmatprep.subr.bf16.mxu0 0
        %1750 = vmatpush1.bf16.msra.mxu0 %v1728
        %1751 = vmatprep.subr.bf16.mxu0 0
        %1752 = vmatpush2.bf16.msra.mxu0 0
        %1753 = vmatprep.subr.bf16.mxu0 0
        %1754 = vmatpush2.bf16.msra.mxu0 0
        %1755 = vmatprep.subr.bf16.mxu0 0
        %1756 = vmatpush2.bf16.msra.mxu0 0
        %1757 = vmatprep.subr.bf16.mxu0 0
        %1758 = vmatpush2.bf16.msra.mxu0 0
        %1759 = vmatprep.subr.bf16.mxu0 0
        %1760 = vmatpush2.bf16.msra.mxu0 0
        %1761 = vmatprep.subr.bf16.mxu0 0
        %1762 = vmatpush2.bf16.msra.mxu0 0
        %1763 = vmatprep.subr.bf16.mxu0 0
        %1764 = vmatpush2.bf16.msra.mxu0 0
        %1765 = vmatprep.subr.bf16.mxu0 0
        %1766 = vmatpush2.bf16.msra.mxu0 0
        %1767 = vmatprep.mubr.bf16.mxu0 0
        %1768 = vmatmul.mubr.bf16.gmra.mxu0 %v1733
        %v1769 = vpop.f32.mrf.mxu0
        %v1770 = vadd.f32 0.0, %v1769
        %v1771 = vpop.f32.mrf.mxu0
        %v1772 = vpop.f32.mrf.mxu0
        %v1773 = vadd.f32 0.0, %v1772
        %v1774 = vpop.f32.mrf.mxu0
        %1775 = vdwg.mxu0
        %v1776 = vmul.f32 %v1233, %v1770
        %v1777 = vmul.f32 %v1234, %v1773
        %v1778 = vpack.c.bf16 %v1777, %v1776
        %1779 = vmatprep.subr.bf16.mxu0 0
        %1780 = vmatpush1.bf16.msra.mxu0 0
        %1781 = vmatprep.subr.bf16.mxu0 0
        %1782 = vmatpush1.bf16.msra.mxu0 0
        %1783 = vmatprep.subr.bf16.mxu0 0
        %1784 = vmatpush1.bf16.msra.mxu0 0
        %1785 = vmatprep.subr.bf16.mxu0 0
        %1786 = vmatpush1.bf16.msra.mxu0 0
        %1787 = vmatprep.subr.bf16.mxu0 0
        %1788 = vmatpush1.bf16.msra.mxu0 0
        %1789 = vmatprep.subr.bf16.mxu0 0
        %1790 = vmatpush1.bf16.msra.mxu0 0
        %1791 = vmatprep.subr.bf16.mxu0 0
        %1792 = vmatpush1.bf16.msra.mxu0 0
        %1793 = vmatprep.subr.bf16.mxu0 0
        %1794 = vmatpush1.bf16.msra.mxu0 %v1778
        %1795 = vmatprep.subr.bf16.mxu0 0
        %1796 = vmatpush2.bf16.msra.mxu0 0
        %1797 = vmatprep.subr.bf16.mxu0 0
        %1798 = vmatpush2.bf16.msra.mxu0 0
        %1799 = vmatprep.subr.bf16.mxu0 0
        %1800 = vmatpush2.bf16.msra.mxu0 0
        %1801 = vmatprep.subr.bf16.mxu0 0
        %1802 = vmatpush2.bf16.msra.mxu0 0
        %1803 = vmatprep.subr.bf16.mxu0 0
        %1804 = vmatpush2.bf16.msra.mxu0 0
        %1805 = vmatprep.subr.bf16.mxu0 0
        %1806 = vmatpush2.bf16.msra.mxu0 0
        %1807 = vmatprep.subr.bf16.mxu0 0
        %1808 = vmatpush2.bf16.msra.mxu0 0
        %1809 = vmatprep.subr.bf16.mxu0 0
        %1810 = vmatpush2.bf16.msra.mxu0 0
        %1811 = vmatprep.mubr.bf16.mxu0 0
        %1812 = vmatmul.mubr.bf16.gmra.mxu0 %v1307
        %v1813 = vpop.f32.mrf.mxu0
        %v1814 = vadd.f32 %v1776, %v1813
        %v1815 = vpop.f32.mrf.mxu0
        %v1816 = vpop.f32.mrf.mxu0
        %v1817 = vadd.f32 %v1777, %v1816
        %v1818 = vpop.f32.mrf.mxu0
        %1819 = vdwg.mxu0
        %v1820 = vmul.f32 %v1233, %v1814
        %v1821 = vmul.f32 %v1234, %v1817
        %v1823 = vlaneseq
        %v1824 = vshrl.u32 %v1823, 7
        %v1825 = vsub.s32 0, %v1824
        %v1826 = vrot.slane %v1607, %v1825
        %v1828 = vadd.f32 %v1820, %v1826
        %v1829 = vadd.f32 %v1821, %v1826
        %v1830 = vmax.f32 %v1828, 0.0
        %v1831 = vmax.f32 %v1829, 0.0
        %v1832 = vmul.f32 %v1830, %v1365
        %v1833 = vmul.f32 %v1831, %v1370
        %v1834 = vpack.c.bf16 %v1833, %v1832
        %v1839 = vunpack.c.l.b16 %v1612
        %v1840 = vunpack.c.l.b16 %v1613
        %v1841 = vunpack.c.l.b16 %v1614
        %v1842 = vunpack.c.l.b16 %v1615
        %v1843 = vpack.c.b16 %v1840, %v1839
        %v1844 = vpack.c.b16 %v1842, %v1841
        %v1848 = vsel %vm1387, %v1834, 0
        %1850 = vmatprep.subr.bf16.mxu0 0
        %1851 = vmatpush1.bf16.msra.mxu0 0
        %1852 = vmatprep.subr.bf16.mxu0 0
        %1853 = vmatpush1.bf16.msra.mxu0 0
        %1854 = vmatprep.subr.bf16.mxu0 0
        %1855 = vmatpush1.bf16.msra.mxu0 0
        %1856 = vmatprep.subr.bf16.mxu0 0
        %1857 = vmatpush1.bf16.msra.mxu0 0
        %1858 = vmatprep.subr.bf16.mxu0 0
        %1859 = vmatpush1.bf16.msra.mxu0 0
        %1860 = vmatprep.subr.bf16.mxu0 0
        %1861 = vmatpush1.bf16.msra.mxu0 0
        %1862 = vmatprep.subr.bf16.mxu0 0
        %1863 = vmatpush1.bf16.msra.mxu0 %v1844
        %1864 = vmatprep.subr.bf16.mxu0 0
        %1865 = vmatpush1.bf16.msra.mxu0 %v1843
        %1866 = vmatprep.subr.bf16.mxu0 0
        %1867 = vmatpush2.bf16.msra.mxu0 0
        %1868 = vmatprep.subr.bf16.mxu0 0
        %1869 = vmatpush2.bf16.msra.mxu0 0
        %1870 = vmatprep.subr.bf16.mxu0 0
        %1871 = vmatpush2.bf16.msra.mxu0 0
        %1872 = vmatprep.subr.bf16.mxu0 0
        %1873 = vmatpush2.bf16.msra.mxu0 0
        %1874 = vmatprep.subr.bf16.mxu0 0
        %1875 = vmatpush2.bf16.msra.mxu0 0
        %1876 = vmatprep.subr.bf16.mxu0 0
        %1877 = vmatpush2.bf16.msra.mxu0 0
        %1878 = vmatprep.subr.bf16.mxu0 0
        %1879 = vmatpush2.bf16.msra.mxu0 0
        %1880 = vmatprep.subr.bf16.mxu0 0
        %1881 = vmatpush2.bf16.msra.mxu0 0
        %1882 = vmatprep.mubr.bf16.mxu0 0
        %1883 = vmatmul.mubr.bf16.gmra.mxu0 %v1848
        %v1884 = vpop.f32.mrf.mxu0
        %v1885 = vadd.f32 0.0, %v1884
        %v1886 = vpop.f32.mrf.mxu0
        %v1887 = vpop.f32.mrf.mxu0
        %v1888 = vadd.f32 0.0, %v1887
        %v1889 = vpop.f32.mrf.mxu0
        %1890 = vdwg.mxu0
        %v1895 = vunpack.c.l.b16 %v1608
        %v1896 = vunpack.c.l.b16 %v1609
        %v1897 = vunpack.c.l.b16 %v1610
        %v1898 = vunpack.c.l.b16 %v1611
        %v1899 = vpack.c.b16 %v1896, %v1895
        %v1900 = vpack.c.b16 %v1898, %v1897
        %1903 = vmatprep.subr.bf16.mxu0 0
        %1904 = vmatpush1.bf16.msra.mxu0 0
        %1905 = vmatprep.subr.bf16.mxu0 0
        %1906 = vmatpush1.bf16.msra.mxu0 0
        %1907 = vmatprep.subr.bf16.mxu0 0
        %1908 = vmatpush1.bf16.msra.mxu0 0
        %1909 = vmatprep.subr.bf16.mxu0 0
        %1910 = vmatpush1.bf16.msra.mxu0 0
        %1911 = vmatprep.subr.bf16.mxu0 0
        %1912 = vmatpush1.bf16.msra.mxu0 0
        %1913 = vmatprep.subr.bf16.mxu0 0
        %1914 = vmatpush1.bf16.msra.mxu0 0
        %1915 = vmatprep.subr.bf16.mxu0 0
        %1916 = vmatpush1.bf16.msra.mxu0 %v1900
        %1917 = vmatprep.subr.bf16.mxu0 0
        %1918 = vmatpush1.bf16.msra.mxu0 %v1899
        %1919 = vmatprep.subr.bf16.mxu0 0
        %1920 = vmatpush2.bf16.msra.mxu0 0
        %1921 = vmatprep.subr.bf16.mxu0 0
        %1922 = vmatpush2.bf16.msra.mxu0 0
        %1923 = vmatprep.subr.bf16.mxu0 0
        %1924 = vmatpush2.bf16.msra.mxu0 0
        %1925 = vmatprep.subr.bf16.mxu0 0
        %1926 = vmatpush2.bf16.msra.mxu0 0
        %1927 = vmatprep.subr.bf16.mxu0 0
        %1928 = vmatpush2.bf16.msra.mxu0 0
        %1929 = vmatprep.subr.bf16.mxu0 0
        %1930 = vmatpush2.bf16.msra.mxu0 0
        %1931 = vmatprep.subr.bf16.mxu0 0
        %1932 = vmatpush2.bf16.msra.mxu0 0
        %1933 = vmatprep.subr.bf16.mxu0 0
        %1934 = vmatpush2.bf16.msra.mxu0 0
        %1935 = vmatprep.mubr.bf16.mxu0 0
        %1936 = vmatmul.mubr.bf16.gmra.mxu0 %v1733
        %v1937 = vpop.f32.mrf.mxu0
        %v1938 = vadd.f32 %v1885, %v1937
        %v1939 = vpop.f32.mrf.mxu0
        %v1940 = vpop.f32.mrf.mxu0
        %v1941 = vadd.f32 %v1888, %v1940
        %v1942 = vpop.f32.mrf.mxu0
        %1943 = vdwg.mxu0
        %v1945 = vlaneseq
        %v1946 = vshrl.u32 %v1945, 7
        %v1947 = vsub.s32 0, %v1946
        %v1948 = vrot.slane %v1616, %v1947
        %v1950 = vadd.f32 %v1938, %v1948
        %v1951 = vadd.f32 %v1941, %v1948
        %v1952 = vmax.f32 %v1950, 0.0
        %v1953 = vmax.f32 %v1951, 0.0
        %v1954 = vsel %vm1387, %v1952, 0.0
        %v1955 = vsel %vm1387, %v1953, 0.0
        %v1956 = vadd.f32 %v1954, %v1955
        %v1957 = vrot.slane %v1956, 4
        %v1958 = vadd.f32 %v1956, %v1957
        %v1959 = vrot.slane %v1958, 2
        %v1960 = vadd.f32 %v1958, %v1959
        %v1961 = vrot.slane %v1960, 1
        %v1962 = vadd.f32 %v1960, %v1961
        %v1963 = vmul.f32 %v1962, 0.0625
        %v1964 = vsel %vm1491, %v1599, -inf
        %1965 = vmax.xlane.f32.xlu0 %v1964
        %v1966 = vpop.xlane.xlu0 %1965
        %v1967 = vsel %vm1491, %v1600, -inf
        %1968 = vmax.xlane.f32.xlu0 %v1967
        %v1969 = vpop.xlane.xlu0 %1968
        %v1970 = vsub.f32 %v1599, %v1966
        %v1971 = vsub.f32 %v1600, %v1969
        %v1972 = vmul.f32 %v1970, 1.442695
        %v1973 = vpow.pop %v1972
        %v1974 = vmul.f32 %v1971, 1.442695
        %v1975 = vpow.pop %v1974
        %v1976 = vsel %vm1491, %v1973, 0.0
        %1977 = vadd.xlane.f32.xlu0 %v1976
        %v1978 = vpop.xlane.xlu0 %1977
        %v1979 = vsel %vm1491, %v1975, 0.0
        %1980 = vadd.xlane.f32.xlu0 %v1979
        %v1981 = vpop.xlane.xlu0 %1980
        %v1982 = vrcp.pop %v1978
        %v1983 = vrcp.pop %v1981
        %v1984 = vmul.f32 %v1973, %v1982
        %v1985 = vmul.f32 %v1975, %v1983
        %v1986 = vmul.f32 %v1984, %v1365
        %v1987 = vmul.f32 %v1985, %v1370
        %v1988 = vpack.c.bf16 %v1987, %v1986
        %v1989 = vmul.f32 %v1986, %v1986
        %v1990 = vmul.f32 %v1987, %v1987
        %v1991 = vsel %vm1491, %v1989, 0.0
        %v1992 = vsel %vm1491, %v1990, 0.0
        %v1993 = vadd.f32 %v1991, %v1992
        %v1994 = vrot.slane %v1993, 4
        %v1995 = vadd.f32 %v1993, %v1994
        %v1996 = vrot.slane %v1995, 2
        %v1997 = vadd.f32 %v1995, %v1996
        %v1998 = vrot.slane %v1997, 1
        %v1999 = vadd.f32 %v1997, %v1998
        %v2000 = vadd.f32 %v1999, 1e-10
        %v2001 = vrcp.pop %v2000
        %v2002 = vmul.f32 %v1986, %v2001
        %v2003 = vmul.f32 %v1987, %v2001
        %v2004 = vpack.c.bf16 %v2003, %v2002
        %v2005 = vpack.c.bf16 %v1953, %v1952
        %2006 = vxpose.xlu0.c.b16.start [1/8] %v2004, 128
        %2007 = vxpose.xlu0.c.b16.cont [2/8] 0, 128
        %2008 = vxpose.xlu0.c.b16.cont [3/8] 0, 128
        %2009 = vxpose.xlu0.c.b16.cont [4/8] 0, 128
        %2010 = vxpose.xlu0.c.b16.cont [5/8] 0, 128
        %2011 = vxpose.xlu0.c.b16.cont [6/8] 0, 128
        %2012 = vxpose.xlu0.c.b16.cont [7/8] 0, 128
        %2013 = vxpose.xlu0.c.b16.end [8/8] 0, 128
        %v2014 = vpop.trf.xlu0
        %v2015 = vpop.trf.xlu0
        %v2016 = vpop.trf.xlu0
        %v2017 = vpop.trf.xlu0
        %v2018 = vpop.trf.xlu0
        %v2019 = vpop.trf.xlu0
        %v2020 = vpop.trf.xlu0
        %v2021 = vpop.trf.xlu0
        %v2023 = vsel %vm1224, %v2014, 0
        %2025 = vmatprep.subr.bf16.mxu0 0
        %2026 = vmatpush1.bf16.msra.mxu0 0
        %2027 = vmatprep.subr.bf16.mxu0 0
        %2028 = vmatpush1.bf16.msra.mxu0 0
        %2029 = vmatprep.subr.bf16.mxu0 0
        %2030 = vmatpush1.bf16.msra.mxu0 0
        %2031 = vmatprep.subr.bf16.mxu0 0
        %2032 = vmatpush1.bf16.msra.mxu0 0
        %2033 = vmatprep.subr.bf16.mxu0 0
        %2034 = vmatpush1.bf16.msra.mxu0 0
        %2035 = vmatprep.subr.bf16.mxu0 0
        %2036 = vmatpush1.bf16.msra.mxu0 0
        %2037 = vmatprep.subr.bf16.mxu0 0
        %2038 = vmatpush1.bf16.msra.mxu0 0
        %2039 = vmatprep.subr.bf16.mxu0 0
        %2040 = vmatpush1.bf16.msra.mxu0 %v2005
        %2041 = vmatprep.subr.bf16.mxu0 0
        %2042 = vmatpush2.bf16.msra.mxu0 0
        %2043 = vmatprep.subr.bf16.mxu0 0
        %2044 = vmatpush2.bf16.msra.mxu0 0
        %2045 = vmatprep.subr.bf16.mxu0 0
        %2046 = vmatpush2.bf16.msra.mxu0 0
        %2047 = vmatprep.subr.bf16.mxu0 0
        %2048 = vmatpush2.bf16.msra.mxu0 0
        %2049 = vmatprep.subr.bf16.mxu0 0
        %2050 = vmatpush2.bf16.msra.mxu0 0
        %2051 = vmatprep.subr.bf16.mxu0 0
        %2052 = vmatpush2.bf16.msra.mxu0 0
        %2053 = vmatprep.subr.bf16.mxu0 0
        %2054 = vmatpush2.bf16.msra.mxu0 0
        %2055 = vmatprep.subr.bf16.mxu0 0
        %2056 = vmatpush2.bf16.msra.mxu0 0
        %2057 = vmatprep.mubr.bf16.mxu0 0
        %2058 = vmatmul.mubr.bf16.gmra.mxu0 %v2023
        %v2059 = vpop.f32.mrf.mxu0
        %v2060 = vadd.f32 0.0, %v2059
        %v2061 = vpop.f32.mrf.mxu0
        %v2062 = vpop.f32.mrf.mxu0
        %v2063 = vpop.f32.mrf.mxu0
        %2064 = vdwg.mxu0
        %2065 = vxpose.xlu0.c.b16.start [1/8] %v1988, 128
        %2066 = vxpose.xlu0.c.b16.cont [2/8] 0, 128
        %2067 = vxpose.xlu0.c.b16.cont [3/8] 0, 128
        %2068 = vxpose.xlu0.c.b16.cont [4/8] 0, 128
        %2069 = vxpose.xlu0.c.b16.cont [5/8] 0, 128
        %2070 = vxpose.xlu0.c.b16.cont [6/8] 0, 128
        %2071 = vxpose.xlu0.c.b16.cont [7/8] 0, 128
        %2072 = vxpose.xlu0.c.b16.end [8/8] 0, 128
        %v2073 = vpop.trf.xlu0
        %v2074 = vpop.trf.xlu0
        %v2075 = vpop.trf.xlu0
        %v2076 = vpop.trf.xlu0
        %v2077 = vpop.trf.xlu0
        %v2078 = vpop.trf.xlu0
        %v2079 = vpop.trf.xlu0
        %v2080 = vpop.trf.xlu0
        %v2083 = vsel %vm1224, %v2073, 0
        %2085 = vmatprep.subr.bf16.mxu0 0
        %2086 = vmatpush1.bf16.msra.mxu0 0
        %2087 = vmatprep.subr.bf16.mxu0 0
        %2088 = vmatpush1.bf16.msra.mxu0 0
        %2089 = vmatprep.subr.bf16.mxu0 0
        %2090 = vmatpush1.bf16.msra.mxu0 0
        %2091 = vmatprep.subr.bf16.mxu0 0
        %2092 = vmatpush1.bf16.msra.mxu0 0
        %2093 = vmatprep.subr.bf16.mxu0 0
        %2094 = vmatpush1.bf16.msra.mxu0 0
        %2095 = vmatprep.subr.bf16.mxu0 0
        %2096 = vmatpush1.bf16.msra.mxu0 0
        %2097 = vmatprep.subr.bf16.mxu0 0
        %2098 = vmatpush1.bf16.msra.mxu0 0
        %2099 = vmatprep.subr.bf16.mxu0 0
        %2100 = vmatpush1.bf16.msra.mxu0 %v1305
        %2101 = vmatprep.subr.bf16.mxu0 0
        %2102 = vmatpush2.bf16.msra.mxu0 0
        %2103 = vmatprep.subr.bf16.mxu0 0
        %2104 = vmatpush2.bf16.msra.mxu0 0
        %2105 = vmatprep.subr.bf16.mxu0 0
        %2106 = vmatpush2.bf16.msra.mxu0 0
        %2107 = vmatprep.subr.bf16.mxu0 0
        %2108 = vmatpush2.bf16.msra.mxu0 0
        %2109 = vmatprep.subr.bf16.mxu0 0
        %2110 = vmatpush2.bf16.msra.mxu0 0
        %2111 = vmatprep.subr.bf16.mxu0 0
        %2112 = vmatpush2.bf16.msra.mxu0 0
        %2113 = vmatprep.subr.bf16.mxu0 0
        %2114 = vmatpush2.bf16.msra.mxu0 0
        %2115 = vmatprep.subr.bf16.mxu0 0
        %2116 = vmatpush2.bf16.msra.mxu0 0
        %2117 = vmatprep.mubr.bf16.mxu0 0
        %2118 = vmatmul.mubr.bf16.gmra.mxu0 %v2083
        %v2119 = vpop.f32.mrf.mxu0
        %v2120 = vadd.f32 0.0, %v2119
        %v2121 = vpop.f32.mrf.mxu0
        %v2122 = vpop.f32.mrf.mxu0
        %v2123 = vpop.f32.mrf.mxu0
        %2124 = vdwg.mxu0
        %v2125 = vpack.c.bf16 %v2120, %v2120
        %v2127 = vsel %vm1224, %v2125, 0
        %2129 = vmatprep.subr.bf16.mxu0 0
        %2130 = vmatpush1.bf16.msra.mxu0 0
        %2131 = vmatprep.subr.bf16.mxu0 0
        %2132 = vmatpush1.bf16.msra.mxu0 0
        %2133 = vmatprep.subr.bf16.mxu0 0
        %2134 = vmatpush1.bf16.msra.mxu0 0
        %2135 = vmatprep.subr.bf16.mxu0 0
        %2136 = vmatpush1.bf16.msra.mxu0 0
        %2137 = vmatprep.subr.bf16.mxu0 0
        %2138 = vmatpush1.bf16.msra.mxu0 0
        %2139 = vmatprep.subr.bf16.mxu0 0
        %2140 = vmatpush1.bf16.msra.mxu0 0
        %2141 = vmatprep.subr.bf16.mxu0 0
        %2142 = vmatpush1.bf16.msra.mxu0 0
        %2143 = vmatprep.subr.bf16.mxu0 0
        %2144 = vmatpush1.bf16.msra.mxu0 %v1988
        %2145 = vmatprep.subr.bf16.mxu0 0
        %2146 = vmatpush2.bf16.msra.mxu0 0
        %2147 = vmatprep.subr.bf16.mxu0 0
        %2148 = vmatpush2.bf16.msra.mxu0 0
        %2149 = vmatprep.subr.bf16.mxu0 0
        %2150 = vmatpush2.bf16.msra.mxu0 0
        %2151 = vmatprep.subr.bf16.mxu0 0
        %2152 = vmatpush2.bf16.msra.mxu0 0
        %2153 = vmatprep.subr.bf16.mxu0 0
        %2154 = vmatpush2.bf16.msra.mxu0 0
        %2155 = vmatprep.subr.bf16.mxu0 0
        %2156 = vmatpush2.bf16.msra.mxu0 0
        %2157 = vmatprep.subr.bf16.mxu0 0
        %2158 = vmatpush2.bf16.msra.mxu0 0
        %2159 = vmatprep.subr.bf16.mxu0 0
        %2160 = vmatpush2.bf16.msra.mxu0 0
        %2161 = vmatprep.mubr.bf16.mxu0 0
        %2162 = vmatmul.mubr.bf16.gmra.mxu0 %v2127
        %v2163 = vpop.f32.mrf.mxu0
        %v2164 = vadd.f32 0.0, %v2163
        %v2165 = vpop.f32.mrf.mxu0
        %v2166 = vpop.f32.mrf.mxu0
        %v2167 = vpop.f32.mrf.mxu0
        %2168 = vdwg.mxu0
        %v2169 = vmul.f32 %v1986, %v1227
        %v2170 = vmul.f32 %v1987, %v1230
        %v2171 = vpack.c.bf16 %v2170, %v2169
        %2172 = vxpose.xlu0.c.b16.start [1/8] %v2171, 128
        %2173 = vxpose.xlu0.c.b16.cont [2/8] 0, 128
        %2174 = vxpose.xlu0.c.b16.cont [3/8] 0, 128
        %2175 = vxpose.xlu0.c.b16.cont [4/8] 0, 128
        %2176 = vxpose.xlu0.c.b16.cont [5/8] 0, 128
        %2177 = vxpose.xlu0.c.b16.cont [6/8] 0, 128
        %2178 = vxpose.xlu0.c.b16.cont [7/8] 0, 128
        %2179 = vxpose.xlu0.c.b16.end [8/8] 0, 128
        %v2180 = vpop.trf.xlu0
        %v2181 = vpop.trf.xlu0
        %v2182 = vpop.trf.xlu0
        %v2183 = vpop.trf.xlu0
        %v2184 = vpop.trf.xlu0
        %v2185 = vpop.trf.xlu0
        %v2186 = vpop.trf.xlu0
        %v2187 = vpop.trf.xlu0
        %v2189 = vsel %vm1224, %v2180, 0
        %2191 = vmatprep.subr.bf16.mxu0 0
        %2192 = vmatpush1.bf16.msra.mxu0 0
        %2193 = vmatprep.subr.bf16.mxu0 0
        %2194 = vmatpush1.bf16.msra.mxu0 0
        %2195 = vmatprep.subr.bf16.mxu0 0
        %2196 = vmatpush1.bf16.msra.mxu0 0
        %2197 = vmatprep.subr.bf16.mxu0 0
        %2198 = vmatpush1.bf16.msra.mxu0 0
        %2199 = vmatprep.subr.bf16.mxu0 0
        %2200 = vmatpush1.bf16.msra.mxu0 0
        %2201 = vmatprep.subr.bf16.mxu0 0
        %2202 = vmatpush1.bf16.msra.mxu0 0
        %2203 = vmatprep.subr.bf16.mxu0 0
        %2204 = vmatpush1.bf16.msra.mxu0 0
        %2205 = vmatprep.subr.bf16.mxu0 0
        %2206 = vmatpush1.bf16.msra.mxu0 %v1988
        %2207 = vmatprep.subr.bf16.mxu0 0
        %2208 = vmatpush2.bf16.msra.mxu0 0
        %2209 = vmatprep.subr.bf16.mxu0 0
        %2210 = vmatpush2.bf16.msra.mxu0 0
        %2211 = vmatprep.subr.bf16.mxu0 0
        %2212 = vmatpush2.bf16.msra.mxu0 0
        %2213 = vmatprep.subr.bf16.mxu0 0
        %2214 = vmatpush2.bf16.msra.mxu0 0
        %2215 = vmatprep.subr.bf16.mxu0 0
        %2216 = vmatpush2.bf16.msra.mxu0 0
        %2217 = vmatprep.subr.bf16.mxu0 0
        %2218 = vmatpush2.bf16.msra.mxu0 0
        %2219 = vmatprep.subr.bf16.mxu0 0
        %2220 = vmatpush2.bf16.msra.mxu0 0
        %2221 = vmatprep.subr.bf16.mxu0 0
        %2222 = vmatpush2.bf16.msra.mxu0 0
        %2223 = vmatprep.mubr.bf16.mxu0 0
        %2224 = vmatmul.mubr.bf16.gmra.mxu0 %v2189
        %v2225 = vpop.f32.mrf.mxu0
        %v2226 = vadd.f32 0.0, %v2225
        %v2227 = vpop.f32.mrf.mxu0
        %v2228 = vpop.f32.mrf.mxu0
        %v2229 = vpop.f32.mrf.mxu0
        %2230 = vdwg.mxu0
        %v2231 = vsub.f32 %v2226, %v2164
        %v2232 = vlaneseq
        %v2233 = vshrl.u32 %v2232, 7
        %v2234 = vlaneseq
        %v2235 = vand.u32 %v2234, 127
        %vm2236 = vcmp.ne.s32.totalorder %v2233, %v2235
        %v2237 = vsel %vm2236, 1, 0
        %v2238 = vcvt.s32.f32 %v2237
        %v2239 = vmul.f32 %v2164, %v2238
        %v2240 = vpack.c.bf16 %v2239, %v2239
        %vm2241 = vcmask 27648
        %v2242 = vsel %vm2241, %v2239, 0.0
        %2243 = vadd.xlane.f32.xlu0 %v2242
        %v2244 = vpop.xlane.xlu0 %2243
        %v2245 = vadd.f32 %v2244, 1.0
        %v2246 = vrsqrt.pop %v2245
        %v2247 = vld [vmem:[%s49] sm:$0xf]
        %v2248 = vld [vmem:[%s49 + $0x4] sm:$0xf]
        %v2249 = vld [vmem:[%s49 + $0x8] sm:$0xf]
        %v2250 = vld [vmem:[%s49 + $0xc] sm:$0xf]
        %v2251 = vld [vmem:[%s51] sm:$0x1]
        %v2252 = vld [vmem:[%s53] sm:$0xf]
        %v2253 = vld [vmem:[%s53 + $0x4] sm:$0xf]
        %v2254 = vld [vmem:[%s53 + $0x8] sm:$0xf]
        %v2255 = vld [vmem:[%s53 + $0xc] sm:$0xf]
        %v2256 = vld [vmem:[%s55] sm:$0x1]
        %v2257 = vld [vmem:[%s57] sm:$0xf]
        %v2258 = vld [vmem:[%s57 + $0x4] sm:$0xf]
        %v2259 = vld [vmem:[%s57 + $0x8] sm:$0xf]
        %v2260 = vld [vmem:[%s57 + $0xc] sm:$0xf]
        %v2261 = vld [vmem:[%s59] sm:$0xf]
        %v2262 = vld [vmem:[%s59 + $0x4] sm:$0xf]
        %v2263 = vld [vmem:[%s59 + $0x8] sm:$0xf]
        %v2264 = vld [vmem:[%s59 + $0xc] sm:$0xf]
        %v2265 = vld [vmem:[%s61] sm:$0x1]
        %v2266 = vpack.c.bf16 %v2060, %v2060
        %v2271 = vunpack.c.l.b16 %v2247
        %v2272 = vunpack.c.l.b16 %v2248
        %v2273 = vunpack.c.l.b16 %v2249
        %v2274 = vunpack.c.l.b16 %v2250
        %v2275 = vpack.c.b16 %v2272, %v2271
        %v2276 = vpack.c.b16 %v2274, %v2273
        %v2280 = vsel %vm1387, %v2266, 0
        %2282 = vmatprep.subr.bf16.mxu0 0
        %2283 = vmatpush1.bf16.msra.mxu0 0
        %2284 = vmatprep.subr.bf16.mxu0 0
        %2285 = vmatpush1.bf16.msra.mxu0 0
        %2286 = vmatprep.subr.bf16.mxu0 0
        %2287 = vmatpush1.bf16.msra.mxu0 0
        %2288 = vmatprep.subr.bf16.mxu0 0
        %2289 = vmatpush1.bf16.msra.mxu0 0
        %2290 = vmatprep.subr.bf16.mxu0 0
        %2291 = vmatpush1.bf16.msra.mxu0 0
        %2292 = vmatprep.subr.bf16.mxu0 0
        %2293 = vmatpush1.bf16.msra.mxu0 0
        %2294 = vmatprep.subr.bf16.mxu0 0
        %2295 = vmatpush1.bf16.msra.mxu0 %v2276
        %2296 = vmatprep.subr.bf16.mxu0 0
        %2297 = vmatpush1.bf16.msra.mxu0 %v2275
        %2298 = vmatprep.subr.bf16.mxu0 0
        %2299 = vmatpush2.bf16.msra.mxu0 0
        %2300 = vmatprep.subr.bf16.mxu0 0
        %2301 = vmatpush2.bf16.msra.mxu0 0
        %2302 = vmatprep.subr.bf16.mxu0 0
        %2303 = vmatpush2.bf16.msra.mxu0 0
        %2304 = vmatprep.subr.bf16.mxu0 0
        %2305 = vmatpush2.bf16.msra.mxu0 0
        %2306 = vmatprep.subr.bf16.mxu0 0
        %2307 = vmatpush2.bf16.msra.mxu0 0
        %2308 = vmatprep.subr.bf16.mxu0 0
        %2309 = vmatpush2.bf16.msra.mxu0 0
        %2310 = vmatprep.subr.bf16.mxu0 0
        %2311 = vmatpush2.bf16.msra.mxu0 0
        %2312 = vmatprep.subr.bf16.mxu0 0
        %2313 = vmatpush2.bf16.msra.mxu0 0
        %2314 = vmatprep.mubr.bf16.mxu0 0
        %2315 = vmatmul.mubr.bf16.gmra.mxu0 %v2280
        %v2316 = vpop.f32.mrf.mxu0
        %v2317 = vadd.f32 0.0, %v2316
        %v2318 = vpop.f32.mrf.mxu0
        %v2319 = vpop.f32.mrf.mxu0
        %v2320 = vpop.f32.mrf.mxu0
        %2321 = vdwg.mxu0
        %v2322 = vmul.f32 %v2246, %v2317
        %v2323 = vpack.c.bf16 %v2322, %v2322
        %v2325 = vsel %vm1491, %v2240, 0
        %v2328 = vsel %vm1495, %v2323, 0
        %2330 = vmatprep.subr.bf16.mxu0 0
        %2331 = vmatpush1.bf16.msra.mxu0 0
        %2332 = vmatprep.subr.bf16.mxu0 0
        %2333 = vmatpush1.bf16.msra.mxu0 0
        %2334 = vmatprep.subr.bf16.mxu0 0
        %2335 = vmatpush1.bf16.msra.mxu0 0
        %2336 = vmatprep.subr.bf16.mxu0 0
        %2337 = vmatpush1.bf16.msra.mxu0 0
        %2338 = vmatprep.subr.bf16.mxu0 0
        %2339 = vmatpush1.bf16.msra.mxu0 0
        %2340 = vmatprep.subr.bf16.mxu0 0
        %2341 = vmatpush1.bf16.msra.mxu0 0
        %2342 = vmatprep.subr.bf16.mxu0 0
        %2343 = vmatpush1.bf16.msra.mxu0 0
        %2344 = vmatprep.subr.bf16.mxu0 0
        %2345 = vmatpush1.bf16.msra.mxu0 %v2328
        %2346 = vmatprep.subr.bf16.mxu0 0
        %2347 = vmatpush2.bf16.msra.mxu0 0
        %2348 = vmatprep.subr.bf16.mxu0 0
        %2349 = vmatpush2.bf16.msra.mxu0 0
        %2350 = vmatprep.subr.bf16.mxu0 0
        %2351 = vmatpush2.bf16.msra.mxu0 0
        %2352 = vmatprep.subr.bf16.mxu0 0
        %2353 = vmatpush2.bf16.msra.mxu0 0
        %2354 = vmatprep.subr.bf16.mxu0 0
        %2355 = vmatpush2.bf16.msra.mxu0 0
        %2356 = vmatprep.subr.bf16.mxu0 0
        %2357 = vmatpush2.bf16.msra.mxu0 0
        %2358 = vmatprep.subr.bf16.mxu0 0
        %2359 = vmatpush2.bf16.msra.mxu0 0
        %2360 = vmatprep.subr.bf16.mxu0 0
        %2361 = vmatpush2.bf16.msra.mxu0 0
        %2362 = vmatprep.mubr.bf16.mxu0 0
        %2363 = vmatmul.mubr.bf16.gmra.mxu0 %v2325
        %v2364 = vpop.f32.mrf.mxu0
        %v2365 = vadd.f32 %v2322, %v2364
        %v2366 = vpop.f32.mrf.mxu0
        %v2367 = vpop.f32.mrf.mxu0
        %v2368 = vpop.f32.mrf.mxu0
        %2369 = vdwg.mxu0
        %v2370 = vmul.f32 %v2246, %v2365
        %v2372 = vlaneseq
        %v2373 = vshrl.u32 %v2372, 7
        %v2374 = vsub.s32 0, %v2373
        %v2375 = vrot.slane %v2251, %v2374
        %v2377 = vadd.f32 %v2370, %v2375
        %v2378 = vmax.f32 %v2377, 0.0
        %v2379 = vpack.c.bf16 %v2378, %v2378
        %v2384 = vunpack.c.l.b16 %v2252
        %v2385 = vunpack.c.l.b16 %v2253
        %v2386 = vunpack.c.l.b16 %v2254
        %v2387 = vunpack.c.l.b16 %v2255
        %v2388 = vpack.c.b16 %v2385, %v2384
        %v2389 = vpack.c.b16 %v2387, %v2386
        %v2393 = vsel %vm1387, %v2379, 0
        %2395 = vmatprep.subr.bf16.mxu0 0
        %2396 = vmatpush1.bf16.msra.mxu0 0
        %2397 = vmatprep.subr.bf16.mxu0 0
        %2398 = vmatpush1.bf16.msra.mxu0 0
        %2399 = vmatprep.subr.bf16.mxu0 0
        %2400 = vmatpush1.bf16.msra.mxu0 0
        %2401 = vmatprep.subr.bf16.mxu0 0
        %2402 = vmatpush1.bf16.msra.mxu0 0
        %2403 = vmatprep.subr.bf16.mxu0 0
        %2404 = vmatpush1.bf16.msra.mxu0 0
        %2405 = vmatprep.subr.bf16.mxu0 0
        %2406 = vmatpush1.bf16.msra.mxu0 0
        %2407 = vmatprep.subr.bf16.mxu0 0
        %2408 = vmatpush1.bf16.msra.mxu0 %v2389
        %2409 = vmatprep.subr.bf16.mxu0 0
        %2410 = vmatpush1.bf16.msra.mxu0 %v2388
        %2411 = vmatprep.subr.bf16.mxu0 0
        %2412 = vmatpush2.bf16.msra.mxu0 0
        %2413 = vmatprep.subr.bf16.mxu0 0
        %2414 = vmatpush2.bf16.msra.mxu0 0
        %2415 = vmatprep.subr.bf16.mxu0 0
        %2416 = vmatpush2.bf16.msra.mxu0 0
        %2417 = vmatprep.subr.bf16.mxu0 0
        %2418 = vmatpush2.bf16.msra.mxu0 0
        %2419 = vmatprep.subr.bf16.mxu0 0
        %2420 = vmatpush2.bf16.msra.mxu0 0
        %2421 = vmatprep.subr.bf16.mxu0 0
        %2422 = vmatpush2.bf16.msra.mxu0 0
        %2423 = vmatprep.subr.bf16.mxu0 0
        %2424 = vmatpush2.bf16.msra.mxu0 0
        %2425 = vmatprep.subr.bf16.mxu0 0
        %2426 = vmatpush2.bf16.msra.mxu0 0
        %2427 = vmatprep.mubr.bf16.mxu0 0
        %2428 = vmatmul.mubr.bf16.gmra.mxu0 %v2393
        %v2429 = vpop.f32.mrf.mxu0
        %v2430 = vadd.f32 0.0, %v2429
        %v2431 = vpop.f32.mrf.mxu0
        %v2432 = vpop.f32.mrf.mxu0
        %v2433 = vpop.f32.mrf.mxu0
        %2434 = vdwg.mxu0
        %v2435 = vmul.f32 %v2246, %v2430
        %v2436 = vpack.c.bf16 %v2435, %v2435
        %v2438 = vsel %vm1495, %v2436, 0
        %2440 = vmatprep.subr.bf16.mxu0 0
        %2441 = vmatpush1.bf16.msra.mxu0 0
        %2442 = vmatprep.subr.bf16.mxu0 0
        %2443 = vmatpush1.bf16.msra.mxu0 0
        %2444 = vmatprep.subr.bf16.mxu0 0
        %2445 = vmatpush1.bf16.msra.mxu0 0
        %2446 = vmatprep.subr.bf16.mxu0 0
        %2447 = vmatpush1.bf16.msra.mxu0 0
        %2448 = vmatprep.subr.bf16.mxu0 0
        %2449 = vmatpush1.bf16.msra.mxu0 0
        %2450 = vmatprep.subr.bf16.mxu0 0
        %2451 = vmatpush1.bf16.msra.mxu0 0
        %2452 = vmatprep.subr.bf16.mxu0 0
        %2453 = vmatpush1.bf16.msra.mxu0 0
        %2454 = vmatprep.subr.bf16.mxu0 0
        %2455 = vmatpush1.bf16.msra.mxu0 %v2438
        %2456 = vmatprep.subr.bf16.mxu0 0
        %2457 = vmatpush2.bf16.msra.mxu0 0
        %2458 = vmatprep.subr.bf16.mxu0 0
        %2459 = vmatpush2.bf16.msra.mxu0 0
        %2460 = vmatprep.subr.bf16.mxu0 0
        %2461 = vmatpush2.bf16.msra.mxu0 0
        %2462 = vmatprep.subr.bf16.mxu0 0
        %2463 = vmatpush2.bf16.msra.mxu0 0
        %2464 = vmatprep.subr.bf16.mxu0 0
        %2465 = vmatpush2.bf16.msra.mxu0 0
        %2466 = vmatprep.subr.bf16.mxu0 0
        %2467 = vmatpush2.bf16.msra.mxu0 0
        %2468 = vmatprep.subr.bf16.mxu0 0
        %2469 = vmatpush2.bf16.msra.mxu0 0
        %2470 = vmatprep.subr.bf16.mxu0 0
        %2471 = vmatpush2.bf16.msra.mxu0 0
        %2472 = vmatprep.mubr.bf16.mxu0 0
        %2473 = vmatmul.mubr.bf16.gmra.mxu0 %v2325
        %v2474 = vpop.f32.mrf.mxu0
        %v2475 = vadd.f32 %v2435, %v2474
        %v2476 = vpop.f32.mrf.mxu0
        %v2477 = vpop.f32.mrf.mxu0
        %v2478 = vpop.f32.mrf.mxu0
        %2479 = vdwg.mxu0
        %v2480 = vmul.f32 %v2246, %v2475
        %v2482 = vlaneseq
        %v2483 = vshrl.u32 %v2482, 7
        %v2484 = vsub.s32 0, %v2483
        %v2485 = vrot.slane %v2256, %v2484
        %v2487 = vadd.f32 %v2480, %v2485
        %v2488 = vmax.f32 %v2487, 0.0
        %v2489 = vpack.c.bf16 %v2488, %v2488
        %v2494 = vunpack.c.l.b16 %v2261
        %v2495 = vunpack.c.l.b16 %v2262
        %v2496 = vunpack.c.l.b16 %v2263
        %v2497 = vunpack.c.l.b16 %v2264
        %v2498 = vpack.c.b16 %v2495, %v2494
        %v2499 = vpack.c.b16 %v2497, %v2496
        %v2503 = vsel %vm1387, %v2489, 0
        %2505 = vmatprep.subr.bf16.mxu0 0
        %2506 = vmatpush1.bf16.msra.mxu0 0
        %2507 = vmatprep.subr.bf16.mxu0 0
        %2508 = vmatpush1.bf16.msra.mxu0 0
        %2509 = vmatprep.subr.bf16.mxu0 0
        %2510 = vmatpush1.bf16.msra.mxu0 0
        %2511 = vmatprep.subr.bf16.mxu0 0
        %2512 = vmatpush1.bf16.msra.mxu0 0
        %2513 = vmatprep.subr.bf16.mxu0 0
        %2514 = vmatpush1.bf16.msra.mxu0 0
        %2515 = vmatprep.subr.bf16.mxu0 0
        %2516 = vmatpush1.bf16.msra.mxu0 0
        %2517 = vmatprep.subr.bf16.mxu0 0
        %2518 = vmatpush1.bf16.msra.mxu0 %v2499
        %2519 = vmatprep.subr.bf16.mxu0 0
        %2520 = vmatpush1.bf16.msra.mxu0 %v2498
        %2521 = vmatprep.subr.bf16.mxu0 0
        %2522 = vmatpush2.bf16.msra.mxu0 0
        %2523 = vmatprep.subr.bf16.mxu0 0
        %2524 = vmatpush2.bf16.msra.mxu0 0
        %2525 = vmatprep.subr.bf16.mxu0 0
        %2526 = vmatpush2.bf16.msra.mxu0 0
        %2527 = vmatprep.subr.bf16.mxu0 0
        %2528 = vmatpush2.bf16.msra.mxu0 0
        %2529 = vmatprep.subr.bf16.mxu0 0
        %2530 = vmatpush2.bf16.msra.mxu0 0
        %2531 = vmatprep.subr.bf16.mxu0 0
        %2532 = vmatpush2.bf16.msra.mxu0 0
        %2533 = vmatprep.subr.bf16.mxu0 0
        %2534 = vmatpush2.bf16.msra.mxu0 0
        %2535 = vmatprep.subr.bf16.mxu0 0
        %2536 = vmatpush2.bf16.msra.mxu0 0
        %2537 = vmatprep.mubr.bf16.mxu0 0
        %2538 = vmatmul.mubr.bf16.gmra.mxu0 %v2503
        %v2539 = vpop.f32.mrf.mxu0
        %v2540 = vadd.f32 0.0, %v2539
        %v2541 = vpop.f32.mrf.mxu0
        %v2542 = vpop.f32.mrf.mxu0
        %v2543 = vpop.f32.mrf.mxu0
        %2544 = vdwg.mxu0
        %v2549 = vunpack.c.l.b16 %v2257
        %v2550 = vunpack.c.l.b16 %v2258
        %v2551 = vunpack.c.l.b16 %v2259
        %v2552 = vunpack.c.l.b16 %v2260
        %v2553 = vpack.c.b16 %v2550, %v2549
        %v2554 = vpack.c.b16 %v2552, %v2551
        %2557 = vmatprep.subr.bf16.mxu0 0
        %2558 = vmatpush1.bf16.msra.mxu0 0
        %2559 = vmatprep.subr.bf16.mxu0 0
        %2560 = vmatpush1.bf16.msra.mxu0 0
        %2561 = vmatprep.subr.bf16.mxu0 0
        %2562 = vmatpush1.bf16.msra.mxu0 0
        %2563 = vmatprep.subr.bf16.mxu0 0
        %2564 = vmatpush1.bf16.msra.mxu0 0
        %2565 = vmatprep.subr.bf16.mxu0 0
        %2566 = vmatpush1.bf16.msra.mxu0 0
        %2567 = vmatprep.subr.bf16.mxu0 0
        %2568 = vmatpush1.bf16.msra.mxu0 0
        %2569 = vmatprep.subr.bf16.mxu0 0
        %2570 = vmatpush1.bf16.msra.mxu0 %v2554
        %2571 = vmatprep.subr.bf16.mxu0 0
        %2572 = vmatpush1.bf16.msra.mxu0 %v2553
        %2573 = vmatprep.subr.bf16.mxu0 0
        %2574 = vmatpush2.bf16.msra.mxu0 0
        %2575 = vmatprep.subr.bf16.mxu0 0
        %2576 = vmatpush2.bf16.msra.mxu0 0
        %2577 = vmatprep.subr.bf16.mxu0 0
        %2578 = vmatpush2.bf16.msra.mxu0 0
        %2579 = vmatprep.subr.bf16.mxu0 0
        %2580 = vmatpush2.bf16.msra.mxu0 0
        %2581 = vmatprep.subr.bf16.mxu0 0
        %2582 = vmatpush2.bf16.msra.mxu0 0
        %2583 = vmatprep.subr.bf16.mxu0 0
        %2584 = vmatpush2.bf16.msra.mxu0 0
        %2585 = vmatprep.subr.bf16.mxu0 0
        %2586 = vmatpush2.bf16.msra.mxu0 0
        %2587 = vmatprep.subr.bf16.mxu0 0
        %2588 = vmatpush2.bf16.msra.mxu0 0
        %2589 = vmatprep.mubr.bf16.mxu0 0
        %2590 = vmatmul.mubr.bf16.gmra.mxu0 %v2393
        %v2591 = vpop.f32.mrf.mxu0
        %v2592 = vadd.f32 %v2540, %v2591
        %v2593 = vpop.f32.mrf.mxu0
        %v2594 = vpop.f32.mrf.mxu0
        %v2595 = vpop.f32.mrf.mxu0
        %2596 = vdwg.mxu0
        %v2598 = vlaneseq
        %v2599 = vshrl.u32 %v2598, 7
        %v2600 = vsub.s32 0, %v2599
        %v2601 = vrot.slane %v2265, %v2600
        %v2603 = vadd.f32 %v2592, %v2601
        %v2604 = vmax.f32 %v2603, 0.0
        %vm2605 = vcmask 257024
        %v2606 = vsel %vm2605, %v2604, 0.0
        %v2607 = vrot.slane %v2606, 4
        %v2608 = vadd.f32 %v2606, %v2607
        %v2609 = vrot.slane %v2608, 2
        %v2610 = vadd.f32 %v2608, %v2609
        %v2611 = vrot.slane %v2610, 1
        %v2612 = vadd.f32 %v2610, %v2611
        %v2613 = vmul.f32 %v2612, 0.25
        %v2614 = vmul.f32 %v1222, %v1222
        %v2615 = vmul.f32 %v1223, %v1223
        %v2616 = vadd.f32 %v2614, 0.0
        %v2617 = vadd.f32 %v2615, 0.0
        %vm2618 = vcmask 7168
        %v2619 = vsel %vm2618, %v2616, 0.0
        %v2620 = vsel %vm2618, %v2617, 0.0
        %v2621 = vadd.f32 %v2619, %v2620
        %v2622 = vrot.slane %v2621, 4
        %v2623 = vadd.f32 %v2621, %v2622
        %v2624 = vrot.slane %v2623, 2
        %v2625 = vadd.f32 %v2623, %v2624
        %v2626 = vrot.slane %v2625, 1
        %v2627 = vadd.f32 %v2625, %v2626
        %v2628 = vadd.f32 %v2627, 1e-10
        %v2629 = vrsqrt.pop %v2628
        %v2630 = vmul.f32 %v1222, %v2629
        %v2631 = vmul.f32 %v1223, %v2629
        %v2632 = vmul.f32 %v1227, %v2630
        %v2633 = vmul.f32 %v1230, %v2631
        %v2635 = vsel %vm1224, %v1220, 0
        %v2638 = vsel %vm1224, %v1221, 0
        %2640 = vmatprep.subr.mxu0 0.0
        %2641 = vmatpush1.msra.mxu0 0.0
        %2642 = vmatprep.subr.mxu0 0.0
        %2643 = vmatpush1.msra.mxu0 0.0
        %2644 = vmatprep.subr.mxu0 0.0
        %2645 = vmatpush1.msra.mxu0 0.0
        %2646 = vmatprep.subr.mxu0 0.0
        %2647 = vmatpush1.msra.mxu0 0.0
        %2648 = vmatprep.subr.mxu0 0.0
        %2649 = vmatpush1.msra.mxu0 0.0
        %2650 = vmatprep.subr.mxu0 0.0
        %2651 = vmatpush1.msra.mxu0 0.0
        %2652 = vmatprep.subr.mxu0 0.0
        %2653 = vmatpush1.msra.mxu0 0.0
        %2654 = vmatprep.subr.mxu0 0.0
        %2655 = vmatpush1.msra.mxu0 0.0
        %2656 = vmatprep.subr.mxu0 0.0
        %2657 = vmatpush1.msra.mxu0 0.0
        %2658 = vmatprep.subr.mxu0 0.0
        %2659 = vmatpush1.msra.mxu0 0.0
        %2660 = vmatprep.subr.mxu0 0.0
        %2661 = vmatpush1.msra.mxu0 0.0
        %2662 = vmatprep.subr.mxu0 0.0
        %2663 = vmatpush1.msra.mxu0 0.0
        %2664 = vmatprep.subr.mxu0 0.0
        %2665 = vmatpush1.msra.mxu0 0.0
        %2666 = vmatprep.subr.mxu0 0.0
        %2667 = vmatpush1.msra.mxu0 0.0
        %2668 = vmatprep.subr.mxu0 0.0
        %2669 = vmatpush1.msra.mxu0 %v2631
        %2670 = vmatprep.subr.mxu0 0.0
        %2671 = vmatpush1.msra.mxu0 %v2630
        %2672 = vmatprep.subr.mxu0 0.0
        %2673 = vmatpush2.msra.mxu0 0.0
        %2674 = vmatprep.subr.mxu0 0.0
        %2675 = vmatpush2.msra.mxu0 0.0
        %2676 = vmatprep.subr.mxu0 0.0
        %2677 = vmatpush2.msra.mxu0 0.0
        %2678 = vmatprep.subr.mxu0 0.0
        %2679 = vmatpush2.msra.mxu0 0.0
        %2680 = vmatprep.subr.mxu0 0.0
        %2681 = vmatpush2.msra.mxu0 0.0
        %2682 = vmatprep.subr.mxu0 0.0
        %2683 = vmatpush2.msra.mxu0 0.0
        %2684 = vmatprep.subr.mxu0 0.0
        %2685 = vmatpush2.msra.mxu0 0.0
        %2686 = vmatprep.subr.mxu0 0.0
        %2687 = vmatpush2.msra.mxu0 0.0
        %2688 = vmatprep.subr.mxu0 0.0
        %2689 = vmatpush2.msra.mxu0 0.0
        %2690 = vmatprep.subr.mxu0 0.0
        %2691 = vmatpush2.msra.mxu0 0.0
        %2692 = vmatprep.subr.mxu0 0.0
        %2693 = vmatpush2.msra.mxu0 0.0
        %2694 = vmatprep.subr.mxu0 0.0
        %2695 = vmatpush2.msra.mxu0 0.0
        %2696 = vmatprep.subr.mxu0 0.0
        %2697 = vmatpush2.msra.mxu0 0.0
        %2698 = vmatprep.subr.mxu0 0.0
        %2699 = vmatpush2.msra.mxu0 0.0
        %2700 = vmatprep.subr.mxu0 0.0
        %2701 = vmatpush2.msra.mxu0 0.0
        %2702 = vmatprep.subr.mxu0 0.0
        %2703 = vmatpush2.msra.mxu0 0.0
        %2704 = vmatprep.mubr.f32.mxu0 0.0
        %2705 = vmatmul.mubr.f32.gmra.mxu0 %v2635
        %v2706 = vpop.f32.mrf.mxu0
        %v2707 = vadd.f32 0.0, %v2706
        %v2708 = vpop.f32.mrf.mxu0
        %2709 = vmatprep.mubr.f32.mxu0 0.0
        %2710 = vmatmul.mubr.f32.gmra.mxu0 %v2638
        %v2711 = vpop.f32.mrf.mxu0
        %v2712 = vadd.f32 0.0, %v2711
        %v2713 = vpop.f32.mrf.mxu0
        %2714 = vdwg.mxu0
        %v2715 = vsub.f32 %v2632, %v2707
        %v2716 = vsub.f32 %v2633, %v2712
        %v2717 = vmul.f32 %v2715, %v1222
        %v2718 = vmul.f32 %v2716, %v1223
        %v2719 = vmul.f32 %v2717, %v2717
        %v2720 = vmul.f32 %v2718, %v2718
        %v2721 = vadd.f32 %v2719, 0.0
        %v2722 = vadd.f32 %v2720, 0.0
        %v2723 = vsel %vm2618, %v2721, 0.0
        %v2724 = vsel %vm2618, %v2722, 0.0
        %v2725 = vadd.f32 %v2723, %v2724
        %v2726 = vrot.slane %v2725, 4
        %v2727 = vadd.f32 %v2725, %v2726
        %v2728 = vrot.slane %v2727, 2
        %v2729 = vadd.f32 %v2727, %v2728
        %v2730 = vrot.slane %v2729, 1
        %v2731 = vadd.f32 %v2729, %v2730
        %v2732 = vadd.f32 %v2731, 1e-10
        %v2733 = vrsqrt.pop %v2732
        %v2734 = vmul.f32 %v2717, %v2733
        %v2735 = vmul.f32 %v2718, %v2733
        %v2736 = vmul.f32 %v1227, %v2734
        %v2737 = vmul.f32 %v1230, %v2735
        %2738 = vmatprep.subr.mxu0 0.0
        %2739 = vmatpush1.msra.mxu0 0.0
        %2740 = vmatprep.subr.mxu0 0.0
        %2741 = vmatpush1.msra.mxu0 0.0
        %2742 = vmatprep.subr.mxu0 0.0
        %2743 = vmatpush1.msra.mxu0 0.0
        %2744 = vmatprep.subr.mxu0 0.0
        %2745 = vmatpush1.msra.mxu0 0.0
        %2746 = vmatprep.subr.mxu0 0.0
        %2747 = vmatpush1.msra.mxu0 0.0
        %2748 = vmatprep.subr.mxu0 0.0
        %2749 = vmatpush1.msra.mxu0 0.0
        %2750 = vmatprep.subr.mxu0 0.0
        %2751 = vmatpush1.msra.mxu0 0.0
        %2752 = vmatprep.subr.mxu0 0.0
        %2753 = vmatpush1.msra.mxu0 0.0
        %2754 = vmatprep.subr.mxu0 0.0
        %2755 = vmatpush1.msra.mxu0 0.0
        %2756 = vmatprep.subr.mxu0 0.0
        %2757 = vmatpush1.msra.mxu0 0.0
        %2758 = vmatprep.subr.mxu0 0.0
        %2759 = vmatpush1.msra.mxu0 0.0
        %2760 = vmatprep.subr.mxu0 0.0
        %2761 = vmatpush1.msra.mxu0 0.0
        %2762 = vmatprep.subr.mxu0 0.0
        %2763 = vmatpush1.msra.mxu0 0.0
        %2764 = vmatprep.subr.mxu0 0.0
        %2765 = vmatpush1.msra.mxu0 0.0
        %2766 = vmatprep.subr.mxu0 0.0
        %2767 = vmatpush1.msra.mxu0 %v2735
        %2768 = vmatprep.subr.mxu0 0.0
        %2769 = vmatpush1.msra.mxu0 %v2734
        %2770 = vmatprep.subr.mxu0 0.0
        %2771 = vmatpush2.msra.mxu0 0.0
        %2772 = vmatprep.subr.mxu0 0.0
        %2773 = vmatpush2.msra.mxu0 0.0
        %2774 = vmatprep.subr.mxu0 0.0
        %2775 = vmatpush2.msra.mxu0 0.0
        %2776 = vmatprep.subr.mxu0 0.0
        %2777 = vmatpush2.msra.mxu0 0.0
        %2778 = vmatprep.subr.mxu0 0.0
        %2779 = vmatpush2.msra.mxu0 0.0
        %2780 = vmatprep.subr.mxu0 0.0
        %2781 = vmatpush2.msra.mxu0 0.0
        %2782 = vmatprep.subr.mxu0 0.0
        %2783 = vmatpush2.msra.mxu0 0.0
        %2784 = vmatprep.subr.mxu0 0.0
        %2785 = vmatpush2.msra.mxu0 0.0
        %2786 = vmatprep.subr.mxu0 0.0
        %2787 = vmatpush2.msra.mxu0 0.0
        %2788 = vmatprep.subr.mxu0 0.0
        %2789 = vmatpush2.msra.mxu0 0.0
        %2790 = vmatprep.subr.mxu0 0.0
        %2791 = vmatpush2.msra.mxu0 0.0
        %2792 = vmatprep.subr.mxu0 0.0
        %2793 = vmatpush2.msra.mxu0 0.0
        %2794 = vmatprep.subr.mxu0 0.0
        %2795 = vmatpush2.msra.mxu0 0.0
        %2796 = vmatprep.subr.mxu0 0.0
        %2797 = vmatpush2.msra.mxu0 0.0
        %2798 = vmatprep.subr.mxu0 0.0
        %2799 = vmatpush2.msra.mxu0 0.0
        %2800 = vmatprep.subr.mxu0 0.0
        %2801 = vmatpush2.msra.mxu0 0.0
        %2802 = vmatprep.mubr.f32.mxu0 0.0
        %2803 = vmatmul.mubr.f32.gmra.mxu0 %v2635
        %v2804 = vpop.f32.mrf.mxu0
        %v2805 = vadd.f32 0.0, %v2804
        %v2806 = vpop.f32.mrf.mxu0
        %2807 = vmatprep.mubr.f32.mxu0 0.0
        %2808 = vmatmul.mubr.f32.gmra.mxu0 %v2638
        %v2809 = vpop.f32.mrf.mxu0
        %v2810 = vadd.f32 0.0, %v2809
        %v2811 = vpop.f32.mrf.mxu0
        %2812 = vdwg.mxu0
        %v2813 = vsub.f32 %v2736, %v2805
        %v2814 = vsub.f32 %v2737, %v2810
        %v2815 = vmul.f32 %v2813, %v1222
        %v2816 = vmul.f32 %v2814, %v1223
        %v2817 = vmul.f32 %v2815, %v2815
        %v2818 = vmul.f32 %v2816, %v2816
        %v2819 = vadd.f32 %v2817, 0.0
        %v2820 = vadd.f32 %v2818, 0.0
        %v2821 = vsel %vm2618, %v2819, 0.0
        %v2822 = vsel %vm2618, %v2820, 0.0
        %v2823 = vadd.f32 %v2821, %v2822
        %v2824 = vrot.slane %v2823, 4
        %v2825 = vadd.f32 %v2823, %v2824
        %v2826 = vrot.slane %v2825, 2
        %v2827 = vadd.f32 %v2825, %v2826
        %v2828 = vrot.slane %v2827, 1
        %v2829 = vadd.f32 %v2827, %v2828
        %v2830 = vadd.f32 %v2829, 1e-10
        %v2831 = vrsqrt.pop %v2830
        %v2832 = vmul.f32 %v2815, %v2831
        %v2833 = vmul.f32 %v2816, %v2831
        %v2834 = vmul.f32 %v1227, %v2832
        %v2835 = vmul.f32 %v1230, %v2833
        %2836 = vmatprep.subr.mxu0 0.0
        %2837 = vmatpush1.msra.mxu0 0.0
        %2838 = vmatprep.subr.mxu0 0.0
        %2839 = vmatpush1.msra.mxu0 0.0
        %2840 = vmatprep.subr.mxu0 0.0
        %2841 = vmatpush1.msra.mxu0 0.0
        %2842 = vmatprep.subr.mxu0 0.0
        %2843 = vmatpush1.msra.mxu0 0.0
        %2844 = vmatprep.subr.mxu0 0.0
        %2845 = vmatpush1.msra.mxu0 0.0
        %2846 = vmatprep.subr.mxu0 0.0
        %2847 = vmatpush1.msra.mxu0 0.0
        %2848 = vmatprep.subr.mxu0 0.0
        %2849 = vmatpush1.msra.mxu0 0.0
        %2850 = vmatprep.subr.mxu0 0.0
        %2851 = vmatpush1.msra.mxu0 0.0
        %2852 = vmatprep.subr.mxu0 0.0
        %2853 = vmatpush1.msra.mxu0 0.0
        %2854 = vmatprep.subr.mxu0 0.0
        %2855 = vmatpush1.msra.mxu0 0.0
        %2856 = vmatprep.subr.mxu0 0.0
        %2857 = vmatpush1.msra.mxu0 0.0
        %2858 = vmatprep.subr.mxu0 0.0
        %2859 = vmatpush1.msra.mxu0 0.0
        %2860 = vmatprep.subr.mxu0 0.0
        %2861 = vmatpush1.msra.mxu0 0.0
        %2862 = vmatprep.subr.mxu0 0.0
        %2863 = vmatpush1.msra.mxu0 0.0
        %2864 = vmatprep.subr.mxu0 0.0
        %2865 = vmatpush1.msra.mxu0 %v2833
        %2866 = vmatprep.subr.mxu0 0.0
        %2867 = vmatpush1.msra.mxu0 %v2832
        %2868 = vmatprep.subr.mxu0 0.0
        %2869 = vmatpush2.msra.mxu0 0.0
        %2870 = vmatprep.subr.mxu0 0.0
        %2871 = vmatpush2.msra.mxu0 0.0
        %2872 = vmatprep.subr.mxu0 0.0
        %2873 = vmatpush2.msra.mxu0 0.0
        %2874 = vmatprep.subr.mxu0 0.0
        %2875 = vmatpush2.msra.mxu0 0.0
        %2876 = vmatprep.subr.mxu0 0.0
        %2877 = vmatpush2.msra.mxu0 0.0
        %2878 = vmatprep.subr.mxu0 0.0
        %2879 = vmatpush2.msra.mxu0 0.0
        %2880 = vmatprep.subr.mxu0 0.0
        %2881 = vmatpush2.msra.mxu0 0.0
        %2882 = vmatprep.subr.mxu0 0.0
        %2883 = vmatpush2.msra.mxu0 0.0
        %2884 = vmatprep.subr.mxu0 0.0
        %2885 = vmatpush2.msra.mxu0 0.0
        %2886 = vmatprep.subr.mxu0 0.0
        %2887 = vmatpush2.msra.mxu0 0.0
        %2888 = vmatprep.subr.mxu0 0.0
        %2889 = vmatpush2.msra.mxu0 0.0
        %2890 = vmatprep.subr.mxu0 0.0
        %2891 = vmatpush2.msra.mxu0 0.0
        %2892 = vmatprep.subr.mxu0 0.0
        %2893 = vmatpush2.msra.mxu0 0.0
        %2894 = vmatprep.subr.mxu0 0.0
        %2895 = vmatpush2.msra.mxu0 0.0
        %2896 = vmatprep.subr.mxu0 0.0
        %2897 = vmatpush2.msra.mxu0 0.0
        %2898 = vmatprep.subr.mxu0 0.0
        %2899 = vmatpush2.msra.mxu0 0.0
        %2900 = vmatprep.mubr.f32.mxu0 0.0
        %2901 = vmatmul.mubr.f32.gmra.mxu0 %v2635
        %v2902 = vpop.f32.mrf.mxu0
        %v2903 = vadd.f32 0.0, %v2902
        %v2904 = vpop.f32.mrf.mxu0
        %2905 = vmatprep.mubr.f32.mxu0 0.0
        %2906 = vmatmul.mubr.f32.gmra.mxu0 %v2638
        %v2907 = vpop.f32.mrf.mxu0
        %v2908 = vadd.f32 0.0, %v2907
        %v2909 = vpop.f32.mrf.mxu0
        %2910 = vdwg.mxu0
        %v2911 = vsub.f32 %v2834, %v2903
        %v2912 = vsub.f32 %v2835, %v2908
        %v2913 = vmul.f32 %v2911, %v1222
        %v2914 = vmul.f32 %v2912, %v1223
        %v2915 = vmul.f32 %v2913, %v2913
        %v2916 = vmul.f32 %v2914, %v2914
        %v2917 = vadd.f32 %v2915, 0.0
        %v2918 = vadd.f32 %v2916, 0.0
        %v2919 = vsel %vm2618, %v2917, 0.0
        %v2920 = vsel %vm2618, %v2918, 0.0
        %v2921 = vadd.f32 %v2919, %v2920
        %v2922 = vrot.slane %v2921, 4
        %v2923 = vadd.f32 %v2921, %v2922
        %v2924 = vrot.slane %v2923, 2
        %v2925 = vadd.f32 %v2923, %v2924
        %v2926 = vrot.slane %v2925, 1
        %v2927 = vadd.f32 %v2925, %v2926
        %v2928 = vadd.f32 %v2927, 1e-10
        %v2929 = vrsqrt.pop %v2928
        %v2930 = vmul.f32 %v2913, %v2929
        %v2931 = vmul.f32 %v2914, %v2929
        %v2932 = vmul.f32 %v1227, %v2930
        %v2933 = vmul.f32 %v1230, %v2931
        %2934 = vmatprep.subr.mxu0 0.0
        %2935 = vmatpush1.msra.mxu0 0.0
        %2936 = vmatprep.subr.mxu0 0.0
        %2937 = vmatpush1.msra.mxu0 0.0
        %2938 = vmatprep.subr.mxu0 0.0
        %2939 = vmatpush1.msra.mxu0 0.0
        %2940 = vmatprep.subr.mxu0 0.0
        %2941 = vmatpush1.msra.mxu0 0.0
        %2942 = vmatprep.subr.mxu0 0.0
        %2943 = vmatpush1.msra.mxu0 0.0
        %2944 = vmatprep.subr.mxu0 0.0
        %2945 = vmatpush1.msra.mxu0 0.0
        %2946 = vmatprep.subr.mxu0 0.0
        %2947 = vmatpush1.msra.mxu0 0.0
        %2948 = vmatprep.subr.mxu0 0.0
        %2949 = vmatpush1.msra.mxu0 0.0
        %2950 = vmatprep.subr.mxu0 0.0
        %2951 = vmatpush1.msra.mxu0 0.0
        %2952 = vmatprep.subr.mxu0 0.0
        %2953 = vmatpush1.msra.mxu0 0.0
        %2954 = vmatprep.subr.mxu0 0.0
        %2955 = vmatpush1.msra.mxu0 0.0
        %2956 = vmatprep.subr.mxu0 0.0
        %2957 = vmatpush1.msra.mxu0 0.0
        %2958 = vmatprep.subr.mxu0 0.0
        %2959 = vmatpush1.msra.mxu0 0.0
        %2960 = vmatprep.subr.mxu0 0.0
        %2961 = vmatpush1.msra.mxu0 0.0
        %2962 = vmatprep.subr.mxu0 0.0
        %2963 = vmatpush1.msra.mxu0 %v2931
        %2964 = vmatprep.subr.mxu0 0.0
        %2965 = vmatpush1.msra.mxu0 %v2930
        %2966 = vmatprep.subr.mxu0 0.0
        %2967 = vmatpush2.msra.mxu0 0.0
        %2968 = vmatprep.subr.mxu0 0.0
        %2969 = vmatpush2.msra.mxu0 0.0
        %2970 = vmatprep.subr.mxu0 0.0
        %2971 = vmatpush2.msra.mxu0 0.0
        %2972 = vmatprep.subr.mxu0 0.0
        %2973 = vmatpush2.msra.mxu0 0.0
        %2974 = vmatprep.subr.mxu0 0.0
        %2975 = vmatpush2.msra.mxu0 0.0
        %2976 = vmatprep.subr.mxu0 0.0
        %2977 = vmatpush2.msra.mxu0 0.0
        %2978 = vmatprep.subr.mxu0 0.0
        %2979 = vmatpush2.msra.mxu0 0.0
        %2980 = vmatprep.subr.mxu0 0.0
        %2981 = vmatpush2.msra.mxu0 0.0
        %2982 = vmatprep.subr.mxu0 0.0
        %2983 = vmatpush2.msra.mxu0 0.0
        %2984 = vmatprep.subr.mxu0 0.0
        %2985 = vmatpush2.msra.mxu0 0.0
        %2986 = vmatprep.subr.mxu0 0.0
        %2987 = vmatpush2.msra.mxu0 0.0
        %2988 = vmatprep.subr.mxu0 0.0
        %2989 = vmatpush2.msra.mxu0 0.0
        %2990 = vmatprep.subr.mxu0 0.0
        %2991 = vmatpush2.msra.mxu0 0.0
        %2992 = vmatprep.subr.mxu0 0.0
        %2993 = vmatpush2.msra.mxu0 0.0
        %2994 = vmatprep.subr.mxu0 0.0
        %2995 = vmatpush2.msra.mxu0 0.0
        %2996 = vmatprep.subr.mxu0 0.0
        %2997 = vmatpush2.msra.mxu0 0.0
        %2998 = vmatprep.mubr.f32.mxu0 0.0
        %2999 = vmatmul.mubr.f32.gmra.mxu0 %v2635
        %v3000 = vpop.f32.mrf.mxu0
        %v3001 = vadd.f32 0.0, %v3000
        %v3002 = vpop.f32.mrf.mxu0
        %3003 = vmatprep.mubr.f32.mxu0 0.0
        %3004 = vmatmul.mubr.f32.gmra.mxu0 %v2638
        %v3005 = vpop.f32.mrf.mxu0
        %v3006 = vadd.f32 0.0, %v3005
        %v3007 = vpop.f32.mrf.mxu0
        %3008 = vdwg.mxu0
        %v3009 = vsub.f32 %v2932, %v3001
        %v3010 = vsub.f32 %v2933, %v3006
        %v3011 = vmul.f32 %v2930, %v3009
        %v3012 = vmul.f32 %v2931, %v3010
        %v3013 = vadd.f32 %v3011, 0.0
        %v3014 = vadd.f32 %v3012, 0.0
        %v3015 = vsel %vm2618, %v3013, 0.0
        %v3016 = vsel %vm2618, %v3014, 0.0
        %v3017 = vadd.f32 %v3015, %v3016
        %v3018 = vrot.slane %v3017, 4
        %v3019 = vadd.f32 %v3017, %v3018
        %v3020 = vrot.slane %v3019, 2
        %v3021 = vadd.f32 %v3019, %v3020
        %v3022 = vrot.slane %v3021, 1
        %v3023 = vadd.f32 %v3021, %v3022
        %3025 = vset.pattern.permute.xlu0 0
        %3026 = vperm.xlu0 %3025, %v2930
        %v3027 = vpop.permute.xlu0 %3026
        %3030 = vset.pattern.permute.xlu0 0
        %3031 = vperm.xlu0 %3030, %v2931
        %v3032 = vpop.permute.xlu0 %3031
        %v3034 = vmul.f32 %v3027, %v2002
        %v3035 = vmul.f32 %v3032, %v2003
        %v3036 = vsel %vm1491, %v3034, 0.0
        %v3037 = vsel %vm1491, %v3035, 0.0
        %v3038 = vadd.f32 %v3036, %v3037
        %v3039 = vrot.slane %v3038, 4
        %v3040 = vadd.f32 %v3038, %v3039
        %v3041 = vrot.slane %v3040, 2
        %v3042 = vadd.f32 %v3040, %v3041
        %v3043 = vrot.slane %v3042, 1
        %v3044 = vadd.f32 %v3042, %v3043
        %v3046 = vsel %vm1491, %v3044, 0
        %v3049 = vsel %vm1491, %v2231, 0
        %3051 = vmatprep.subr.mxu0 0.0
        %3052 = vmatpush1.xpose.msra.mxu0 0.0
        %3053 = vmatprep.subr.mxu0 0.0
        %3054 = vmatpush1.xpose.msra.mxu0 0.0
        %3055 = vmatprep.subr.mxu0 0.0
        %3056 = vmatpush1.xpose.msra.mxu0 0.0
        %3057 = vmatprep.subr.mxu0 0.0
        %3058 = vmatpush1.xpose.msra.mxu0 0.0
        %3059 = vmatprep.subr.mxu0 0.0
        %3060 = vmatpush1.xpose.msra.mxu0 0.0
        %3061 = vmatprep.subr.mxu0 0.0
        %3062 = vmatpush1.xpose.msra.mxu0 0.0
        %3063 = vmatprep.subr.mxu0 0.0
        %3064 = vmatpush1.xpose.msra.mxu0 0.0
        %3065 = vmatprep.subr.mxu0 0.0
        %3066 = vmatpush1.xpose.msra.mxu0 0.0
        %3067 = vmatprep.subr.mxu0 0.0
        %3068 = vmatpush1.xpose.msra.mxu0 0.0
        %3069 = vmatprep.subr.mxu0 0.0
        %3070 = vmatpush1.xpose.msra.mxu0 0.0
        %3071 = vmatprep.subr.mxu0 0.0
        %3072 = vmatpush1.xpose.msra.mxu0 0.0
        %3073 = vmatprep.subr.mxu0 0.0
        %3074 = vmatpush1.xpose.msra.mxu0 0.0
        %3075 = vmatprep.subr.mxu0 0.0
        %3076 = vmatpush1.xpose.msra.mxu0 0.0
        %3077 = vmatprep.subr.mxu0 0.0
        %3078 = vmatpush1.xpose.msra.mxu0 0.0
        %3079 = vmatprep.subr.mxu0 0.0
        %3080 = vmatpush1.xpose.msra.mxu0 0.0
        %3081 = vmatprep.subr.mxu0 0.0
        %3082 = vmatpush1.xpose.msra.mxu0 %v3049
        %3083 = vmatprep.subr.mxu0 0.0
        %3084 = vmatpush2.xpose.msra.mxu0 0.0
        %3085 = vmatprep.subr.mxu0 0.0
        %3086 = vmatpush2.xpose.msra.mxu0 0.0
        %3087 = vmatprep.subr.mxu0 0.0
        %3088 = vmatpush2.xpose.msra.mxu0 0.0
        %3089 = vmatprep.subr.mxu0 0.0
        %3090 = vmatpush2.xpose.msra.mxu0 0.0
        %3091 = vmatprep.subr.mxu0 0.0
        %3092 = vmatpush2.xpose.msra.mxu0 0.0
        %3093 = vmatprep.subr.mxu0 0.0
        %3094 = vmatpush2.xpose.msra.mxu0 0.0
        %3095 = vmatprep.subr.mxu0 0.0
        %3096 = vmatpush2.xpose.msra.mxu0 0.0
        %3097 = vmatprep.subr.mxu0 0.0
        %3098 = vmatpush2.xpose.msra.mxu0 0.0
        %3099 = vmatprep.subr.mxu0 0.0
        %3100 = vmatpush2.xpose.msra.mxu0 0.0
        %3101 = vmatprep.subr.mxu0 0.0
        %3102 = vmatpush2.xpose.msra.mxu0 0.0
        %3103 = vmatprep.subr.mxu0 0.0
        %3104 = vmatpush2.xpose.msra.mxu0 0.0
        %3105 = vmatprep.subr.mxu0 0.0
        %3106 = vmatpush2.xpose.msra.mxu0 0.0
        %3107 = vmatprep.subr.mxu0 0.0
        %3108 = vmatpush2.xpose.msra.mxu0 0.0
        %3109 = vmatprep.subr.mxu0 0.0
        %3110 = vmatpush2.xpose.msra.mxu0 0.0
        %3111 = vmatprep.subr.mxu0 0.0
        %3112 = vmatpush2.xpose.msra.mxu0 0.0
        %3113 = vmatprep.subr.mxu0 0.0
        %3114 = vmatpush2.xpose.msra.mxu0 0.0
        %3115 = vmatprep.mubr.f32.mxu0 0.0
        %3116 = vmatmul.mubr.f32.gmra.mxu0 %v3046
        %v3117 = vpop.f32.mrf.mxu0
        %v3118 = vadd.f32 0.0, %v3117
        %v3119 = vpop.f32.mrf.mxu0
        %3120 = vdwg.mxu0
        %v3121 = vmul.f32 %v3044, %v3118
        %vm3122 = vcmask 24576
        %v3123 = vsel %vm3122, %v3121, 0.0
        %3124 = vadd.xlane.f32.xlu0 %v3123
        %v3125 = vpop.xlane.xlu0 %3124
        %v3126 = vadd.f32 %v3125, 0.0
        %v3127 = vsub.f32 %v3023, %v3126
        %v3128 = vand.u32 2147483647, %v3127
        %vm3129 = vcmask 0
        %3130 = vst.msk [vmem:[%s1211] sm:$0x1] %vm3129, %v3128
        %3131 = vmatprep.subr.bf16.mxu0 0
        %3132 = vmatpush1.bf16.msra.mxu0 0
        %3133 = vmatprep.subr.bf16.mxu0 0
        %3134 = vmatpush1.bf16.msra.mxu0 0
        %3135 = vmatprep.subr.bf16.mxu0 0
        %3136 = vmatpush1.bf16.msra.mxu0 0
        %3137 = vmatprep.subr.bf16.mxu0 0
        %3138 = vmatpush1.bf16.msra.mxu0 0
        %3139 = vmatprep.subr.bf16.mxu0 0
        %3140 = vmatpush1.bf16.msra.mxu0 0
        %3141 = vmatprep.subr.bf16.mxu0 0
        %3142 = vmatpush1.bf16.msra.mxu0 0
        %3143 = vmatprep.subr.bf16.mxu0 0
        %3144 = vmatpush1.bf16.msra.mxu0 0
        %3145 = vmatprep.subr.bf16.mxu0 0
        %3146 = vmatpush1.bf16.msra.mxu0 %v1988
        %3147 = vmatprep.subr.bf16.mxu0 0
        %3148 = vmatpush2.bf16.msra.mxu0 0
        %3149 = vmatprep.subr.bf16.mxu0 0
        %3150 = vmatpush2.bf16.msra.mxu0 0
        %3151 = vmatprep.subr.bf16.mxu0 0
        %3152 = vmatpush2.bf16.msra.mxu0 0
        %3153 = vmatprep.subr.bf16.mxu0 0
        %3154 = vmatpush2.bf16.msra.mxu0 0
        %3155 = vmatprep.subr.bf16.mxu0 0
        %3156 = vmatpush2.bf16.msra.mxu0 0
        %3157 = vmatprep.subr.bf16.mxu0 0
        %3158 = vmatpush2.bf16.msra.mxu0 0
        %3159 = vmatprep.subr.bf16.mxu0 0
        %3160 = vmatpush2.bf16.msra.mxu0 0
        %3161 = vmatprep.subr.bf16.mxu0 0
        %3162 = vmatpush2.bf16.msra.mxu0 0
        %3163 = vmatprep.mubr.bf16.mxu0 0
        %3164 = vmatmul.mubr.bf16.gmra.mxu0 %v2083
        %v3165 = vpop.f32.mrf.mxu0
        %v3166 = vadd.f32 0.0, %v3165
        %v3167 = vpop.f32.mrf.mxu0
        %v3168 = vpop.f32.mrf.mxu0
        %v3169 = vpop.f32.mrf.mxu0
        %3170 = vdwg.mxu0
        %3171 = vmatprep.subr.bf16.mxu0 0
        %3172 = vmatpush1.bf16.msra.mxu0 0
        %3173 = vmatprep.subr.bf16.mxu0 0
        %3174 = vmatpush1.bf16.msra.mxu0 0
        %3175 = vmatprep.subr.bf16.mxu0 0
        %3176 = vmatpush1.bf16.msra.mxu0 0
        %3177 = vmatprep.subr.bf16.mxu0 0
        %3178 = vmatpush1.bf16.msra.mxu0 0
        %3179 = vmatprep.subr.bf16.mxu0 0
        %3180 = vmatpush1.bf16.msra.mxu0 0
        %3181 = vmatprep.subr.bf16.mxu0 0
        %3182 = vmatpush1.bf16.msra.mxu0 0
        %3183 = vmatprep.subr.bf16.mxu0 0
        %3184 = vmatpush1.bf16.msra.mxu0 0
        %3185 = vmatprep.subr.bf16.mxu0 0
        %3186 = vmatpush1.bf16.msra.mxu0 %v1988
        %3187 = vmatprep.subr.bf16.mxu0 0
        %3188 = vmatpush2.bf16.msra.mxu0 0
        %3189 = vmatprep.subr.bf16.mxu0 0
        %3190 = vmatpush2.bf16.msra.mxu0 0
        %3191 = vmatprep.subr.bf16.mxu0 0
        %3192 = vmatpush2.bf16.msra.mxu0 0
        %3193 = vmatprep.subr.bf16.mxu0 0
        %3194 = vmatpush2.bf16.msra.mxu0 0
        %3195 = vmatprep.subr.bf16.mxu0 0
        %3196 = vmatpush2.bf16.msra.mxu0 0
        %3197 = vmatprep.subr.bf16.mxu0 0
        %3198 = vmatpush2.bf16.msra.mxu0 0
        %3199 = vmatprep.subr.bf16.mxu0 0
        %3200 = vmatpush2.bf16.msra.mxu0 0
        %3201 = vmatprep.subr.bf16.mxu0 0
        %3202 = vmatpush2.bf16.msra.mxu0 0
        %3203 = vmatprep.mubr.bf16.mxu0 0
        %3204 = vmatmul.mubr.bf16.gmra.mxu0 %v1307
        %v3205 = vpop.f32.mrf.mxu0
        %v3206 = vadd.f32 0.0, %v3205
        %v3207 = vpop.f32.mrf.mxu0
        %v3208 = vpop.f32.mrf.mxu0
        %v3209 = vadd.f32 0.0, %v3208
        %v3210 = vpop.f32.mrf.mxu0
        %3211 = vdwg.mxu0
        %v3212 = vmul.f32 %v1220, %v1220
        %v3213 = vmul.f32 %v1221, %v1221
        %v3214 = vsel %vm1224, %v3212, 0.0
        %3215 = vadd.xlane.f32.xlu0 %v3214
        %v3216 = vpop.xlane.xlu0 %3215
        %v3217 = vsel %vm1224, %v3213, 0.0
        %3218 = vadd.xlane.f32.xlu0 %v3217
        %v3219 = vpop.xlane.xlu0 %3218
        %v3220 = vadd.f32 %v3216, %v3219
        %v3221 = vrot.slane %v3220, 4
        %v3222 = vadd.f32 %v3220, %v3221
        %v3223 = vrot.slane %v3222, 2
        %v3224 = vadd.f32 %v3222, %v3223
        %v3225 = vrot.slane %v3224, 1
        %v3226 = vadd.f32 %v3224, %v3225
        %v3227 = vadd.f32 %v1222, 0.0
        %v3228 = vadd.f32 %v1223, 0.0
        %v3229 = vsel %vm2618, %v3227, 0.0
        %v3230 = vsel %vm2618, %v3228, 0.0
        %v3231 = vadd.f32 %v3229, %v3230
        %v3232 = vrot.slane %v3231, 4
        %v3233 = vadd.f32 %v3231, %v3232
        %v3234 = vrot.slane %v3233, 2
        %v3235 = vadd.f32 %v3233, %v3234
        %v3236 = vrot.slane %v3235, 1
        %v3237 = vadd.f32 %v3235, %v3236
        %v3238 = vadd.f32 %v3226, %v3237
        %v3239 = vmul.f32 %v3166, %v3166
        %v3240 = vsel %vm2241, %v3239, 0.0
        %3241 = vadd.xlane.f32.xlu0 %v3240
        %v3242 = vpop.xlane.xlu0 %3241
        %v3243 = vsel %vm1253, %v3242, 0.0
        %v3244 = vrot.slane %v3243, 4
        %v3245 = vadd.f32 %v3243, %v3244
        %v3246 = vrot.slane %v3245, 2
        %v3247 = vadd.f32 %v3245, %v3246
        %v3248 = vrot.slane %v3247, 1
        %v3249 = vadd.f32 %v3247, %v3248
        %v3250 = vadd.f32 %v3238, %v3249
        %v3251 = vmul.f32 %v3206, %v1986
        %v3252 = vmul.f32 %v3209, %v1987
        %v3253 = vsel %vm1491, %v3251, 0.0
        %3254 = vadd.xlane.f32.xlu0 %v3253
        %v3255 = vpop.xlane.xlu0 %3254
        %v3256 = vsel %vm1491, %v3252, 0.0
        %3257 = vadd.xlane.f32.xlu0 %v3256
        %v3258 = vpop.xlane.xlu0 %3257
        %v3259 = vadd.f32 %v3255, %v3258
        %v3260 = vrot.slane %v3259, 4
        %v3261 = vadd.f32 %v3259, %v3260
        %v3262 = vrot.slane %v3261, 2
        %v3263 = vadd.f32 %v3261, %v3262
        %v3264 = vrot.slane %v3263, 1
        %v3265 = vadd.f32 %v3263, %v3264
        %v3266 = vmul.f32 %v3265, 2.0
        %v3267 = vsub.f32 %v3250, %v3266
        %3268 = vadd.xlane.f32.xlu0 %v1991
        %v3269 = vpop.xlane.xlu0 %3268
        %3270 = vadd.xlane.f32.xlu0 %v1992
        %v3271 = vpop.xlane.xlu0 %3270
        %v3272 = vadd.f32 %v3269, %v3271
        %v3273 = vrot.slane %v3272, 4
        %v3274 = vadd.f32 %v3272, %v3273
        %v3275 = vrot.slane %v3274, 2
        %v3276 = vadd.f32 %v3274, %v3275
        %v3277 = vrot.slane %v3276, 1
        %v3278 = vadd.f32 %v3276, %v3277
        %v3279 = vmul.f32 %v3278, 2.0
        %v3280 = vsub.f32 %v3267, %v3279
        %v3281 = vmax.f32 %v3280, 0.0
        %v3282 = vrsqrt.pop %v3281
        %v3283 = vmul.f32 %v3281, %v3282
        %vm3284 = vcmp.eq.f32.partialorder %v3281, inf
        %v3285 = vsel %vm3284, %v3281, %v3283
        %vm3286 = vcmp.eq.f32.partialorder %v3281, 0.0
        %v3287 = vand.u32 %v3281, 2147483648
        %v3288 = vsel %vm3286, %v3287, %v3285
        %3289 = vst.msk [vmem:[%s1214] sm:$0x1] %vm3129, %v3288
        %v3290 = vld [vmem:[%s67] sm:$0x1]
        %v3291 = vpack.c.bf16 %v1963, %v1963
        %v3292 = vld [vmem:[%s63] sm:$0xf]
        %v3293 = vld [vmem:[%s63 + $0x4] sm:$0xf]
        %v3294 = vld [vmem:[%s63 + $0x8] sm:$0xf]
        %v3295 = vld [vmem:[%s63 + $0xc] sm:$0xf]
        %v3300 = vunpack.c.l.b16 %v3292
        %v3301 = vunpack.c.l.b16 %v3293
        %v3302 = vunpack.c.l.b16 %v3294
        %v3303 = vunpack.c.l.b16 %v3295
        %v3304 = vpack.c.b16 %v3301, %v3300
        %v3305 = vpack.c.b16 %v3303, %v3302
        %v3309 = vsel %vm1387, %v3291, 0
        %3311 = vmatprep.subr.bf16.mxu0 0
        %3312 = vmatpush1.bf16.msra.mxu0 0
        %3313 = vmatprep.subr.bf16.mxu0 0
        %3314 = vmatpush1.bf16.msra.mxu0 0
        %3315 = vmatprep.subr.bf16.mxu0 0
        %3316 = vmatpush1.bf16.msra.mxu0 0
        %3317 = vmatprep.subr.bf16.mxu0 0
        %3318 = vmatpush1.bf16.msra.mxu0 0
        %3319 = vmatprep.subr.bf16.mxu0 0
        %3320 = vmatpush1.bf16.msra.mxu0 0
        %3321 = vmatprep.subr.bf16.mxu0 0
        %3322 = vmatpush1.bf16.msra.mxu0 0
        %3323 = vmatprep.subr.bf16.mxu0 0
        %3324 = vmatpush1.bf16.msra.mxu0 %v3305
        %3325 = vmatprep.subr.bf16.mxu0 0
        %3326 = vmatpush1.bf16.msra.mxu0 %v3304
        %3327 = vmatprep.subr.bf16.mxu0 0
        %3328 = vmatpush2.bf16.msra.mxu0 0
        %3329 = vmatprep.subr.bf16.mxu0 0
        %3330 = vmatpush2.bf16.msra.mxu0 0
        %3331 = vmatprep.subr.bf16.mxu0 0
        %3332 = vmatpush2.bf16.msra.mxu0 0
        %3333 = vmatprep.subr.bf16.mxu0 0
        %3334 = vmatpush2.bf16.msra.mxu0 0
        %3335 = vmatprep.subr.bf16.mxu0 0
        %3336 = vmatpush2.bf16.msra.mxu0 0
        %3337 = vmatprep.subr.bf16.mxu0 0
        %3338 = vmatpush2.bf16.msra.mxu0 0
        %3339 = vmatprep.subr.bf16.mxu0 0
        %3340 = vmatpush2.bf16.msra.mxu0 0
        %3341 = vmatprep.subr.bf16.mxu0 0
        %3342 = vmatpush2.bf16.msra.mxu0 0
        %3343 = vmatprep.mubr.bf16.mxu0 0
        %3344 = vmatmul.mubr.bf16.gmra.mxu0 %v3309
        %v3345 = vpop.f32.mrf.mxu0
        %v3346 = vadd.f32 0.0, %v3345
        %v3347 = vpop.f32.mrf.mxu0
        %v3348 = vpop.f32.mrf.mxu0
        %v3349 = vpop.f32.mrf.mxu0
        %3350 = vdwg.mxu0
        %v3351 = vadd.f32 %v3290, %v3346
        %v3352 = vpack.c.bf16 %v2613, %v2613
        %v3353 = vld [vmem:[%s65] sm:$0xf]
        %v3354 = vld [vmem:[%s65 + $0x4] sm:$0xf]
        %v3355 = vld [vmem:[%s65 + $0x8] sm:$0xf]
        %v3356 = vld [vmem:[%s65 + $0xc] sm:$0xf]
        %v3361 = vunpack.c.l.b16 %v3353
        %v3362 = vunpack.c.l.b16 %v3354
        %v3363 = vunpack.c.l.b16 %v3355
        %v3364 = vunpack.c.l.b16 %v3356
        %v3365 = vpack.c.b16 %v3362, %v3361
        %v3366 = vpack.c.b16 %v3364, %v3363
        %v3370 = vsel %vm1387, %v3352, 0
        %3372 = vmatprep.subr.bf16.mxu0 0
        %3373 = vmatpush1.bf16.msra.mxu0 0
        %3374 = vmatprep.subr.bf16.mxu0 0
        %3375 = vmatpush1.bf16.msra.mxu0 0
        %3376 = vmatprep.subr.bf16.mxu0 0
        %3377 = vmatpush1.bf16.msra.mxu0 0
        %3378 = vmatprep.subr.bf16.mxu0 0
        %3379 = vmatpush1.bf16.msra.mxu0 0
        %3380 = vmatprep.subr.bf16.mxu0 0
        %3381 = vmatpush1.bf16.msra.mxu0 0
        %3382 = vmatprep.subr.bf16.mxu0 0
        %3383 = vmatpush1.bf16.msra.mxu0 0
        %3384 = vmatprep.subr.bf16.mxu0 0
        %3385 = vmatpush1.bf16.msra.mxu0 %v3366
        %3386 = vmatprep.subr.bf16.mxu0 0
        %3387 = vmatpush1.bf16.msra.mxu0 %v3365
        %3388 = vmatprep.subr.bf16.mxu0 0
        %3389 = vmatpush2.bf16.msra.mxu0 0
        %3390 = vmatprep.subr.bf16.mxu0 0
        %3391 = vmatpush2.bf16.msra.mxu0 0
        %3392 = vmatprep.subr.bf16.mxu0 0
        %3393 = vmatpush2.bf16.msra.mxu0 0
        %3394 = vmatprep.subr.bf16.mxu0 0
        %3395 = vmatpush2.bf16.msra.mxu0 0
        %3396 = vmatprep.subr.bf16.mxu0 0
        %3397 = vmatpush2.bf16.msra.mxu0 0
        %3398 = vmatprep.subr.bf16.mxu0 0
        %3399 = vmatpush2.bf16.msra.mxu0 0
        %3400 = vmatprep.subr.bf16.mxu0 0
        %3401 = vmatpush2.bf16.msra.mxu0 0
        %3402 = vmatprep.subr.bf16.mxu0 0
        %3403 = vmatpush2.bf16.msra.mxu0 0
        %3404 = vmatprep.mubr.bf16.mxu0 0
        %3405 = vmatmul.mubr.bf16.gmra.mxu0 %v3370
        %v3406 = vpop.f32.mrf.mxu0
        %v3407 = vadd.f32 0.0, %v3406
        %v3408 = vpop.f32.mrf.mxu0
        %v3409 = vpop.f32.mrf.mxu0
        %v3410 = vpop.f32.mrf.mxu0
        %3411 = vdwg.mxu0
        %v3412 = vadd.f32 %v3351, %v3407
        %v3413 = vmax.f32 %v3412, 0.0
        %v3414 = vpack.c.bf16 %v3413, %v3413
        %v3415 = vld [vmem:[%s69] sm:$0xf]
        %v3416 = vld [vmem:[%s69 + $0x4] sm:$0xf]
        %v3417 = vld [vmem:[%s69 + $0x8] sm:$0xf]
        %v3418 = vld [vmem:[%s69 + $0xc] sm:$0xf]
        %v3419 = vld [vmem:[%s71] sm:$0x1]
        %v3424 = vunpack.c.l.b16 %v3415
        %v3425 = vunpack.c.l.b16 %v3416
        %v3426 = vunpack.c.l.b16 %v3417
        %v3427 = vunpack.c.l.b16 %v3418
        %v3428 = vpack.c.b16 %v3425, %v3424
        %v3429 = vpack.c.b16 %v3427, %v3426
        %v3433 = vsel %vm1387, %v3414, 0
        %3435 = vmatprep.subr.bf16.mxu0 0
        %3436 = vmatpush1.bf16.msra.mxu0 0
        %3437 = vmatprep.subr.bf16.mxu0 0
        %3438 = vmatpush1.bf16.msra.mxu0 0
        %3439 = vmatprep.subr.bf16.mxu0 0
        %3440 = vmatpush1.bf16.msra.mxu0 0
        %3441 = vmatprep.subr.bf16.mxu0 0
        %3442 = vmatpush1.bf16.msra.mxu0 0
        %3443 = vmatprep.subr.bf16.mxu0 0
        %3444 = vmatpush1.bf16.msra.mxu0 0
        %3445 = vmatprep.subr.bf16.mxu0 0
        %3446 = vmatpush1.bf16.msra.mxu0 0
        %3447 = vmatprep.subr.bf16.mxu0 0
        %3448 = vmatpush1.bf16.msra.mxu0 %v3429
        %3449 = vmatprep.subr.bf16.mxu0 0
        %3450 = vmatpush1.bf16.msra.mxu0 %v3428
        %3451 = vmatprep.subr.bf16.mxu0 0
        %3452 = vmatpush2.bf16.msra.mxu0 0
        %3453 = vmatprep.subr.bf16.mxu0 0
        %3454 = vmatpush2.bf16.msra.mxu0 0
        %3455 = vmatprep.subr.bf16.mxu0 0
        %3456 = vmatpush2.bf16.msra.mxu0 0
        %3457 = vmatprep.subr.bf16.mxu0 0
        %3458 = vmatpush2.bf16.msra.mxu0 0
        %3459 = vmatprep.subr.bf16.mxu0 0
        %3460 = vmatpush2.bf16.msra.mxu0 0
        %3461 = vmatprep.subr.bf16.mxu0 0
        %3462 = vmatpush2.bf16.msra.mxu0 0
        %3463 = vmatprep.subr.bf16.mxu0 0
        %3464 = vmatpush2.bf16.msra.mxu0 0
        %3465 = vmatprep.subr.bf16.mxu0 0
        %3466 = vmatpush2.bf16.msra.mxu0 0
        %3467 = vmatprep.mubr.bf16.mxu0 0
        %3468 = vmatmul.mubr.bf16.gmra.mxu0 %v3433
        %v3469 = vpop.f32.mrf.mxu0
        %v3470 = vadd.f32 %v3419, %v3469
        %v3471 = vpop.f32.mrf.mxu0
        %v3472 = vpop.f32.mrf.mxu0
        %v3473 = vpop.f32.mrf.mxu0
        %3474 = vdwg.mxu0
        %vm3475 = vcmask 16384
        %v3476 = vsel %vm3475, %v3470, -inf
        %3477 = vmax.xlane.f32.xlu0 %v3476
        %v3478 = vpop.xlane.xlu0 %3477
        %v3479 = vsub.f32 %v3470, %v3478
        %v3480 = vmul.f32 %v3479, 1.442695
        %v3481 = vpow.pop %v3480
        %v3482 = vsel %vm3475, %v3481, 0.0
        %3483 = vadd.xlane.f32.xlu0 %v3482
        %v3484 = vpop.xlane.xlu0 %3483
        %v3485 = vlog2.pop %v3484
        %v3486 = vmul.f32 %v3485, 0.6931472
        %v3487 = vadd.f32 %v3478, %v3486
        %v3488 = vsub.f32 %v3470, %v3487
        %3489 = vst.msk [vmem:[%s1183] sm:$0x1] %vm3475, %v3488
        %s3490 = sand.u32 %s877, 1
        %s3491 = scalar_lea.sflag [#allocation6], %s3490
        %s3492 = sand.u32 %s877, 1
        %s3493 = scalar_lea.vmem [#allocation5], %s3492
        %p3494 = scmp.lt.s32.totalorder %s98, 1
        %s3495 = scalar_select %p3494, %s98, 1
        %s3496 = scalar_lea.vmem %s75, %s3495
        %p3497 = scmp.lt.s32.totalorder %s98, 1
        %s3498 = scalar_select %p3497, %s98, 1
        %s3499 = scalar_lea.vmem %s77, %s3498
        // Predicated region
        $region165: #{ssgpool_forward.1} parent=163 // pred_check
          %p3500 = pneg %p887
        $region166: #{ssgpool_forward.1} parent=163 // pred_check_branch
          %3502 = sbr.rel (%p3500) target = $region168
        $region167: #{ssgpool_forward.1} parent=163 // pred_region
          %s3504 = ssub.s32 16, 16
          %3505 = vsyncadd %s3491, %s3504
          %s3506 = smul.addr %s98, 16
          %s3507 = scalar_lea.hbm %s73, %s3506
          %s3509 = sshll.u32 %s3493, 4
          %s3510 = int_to_ptr.vmem [resolvable:$true] %s3509
          %3512 = dma.vmem_to_hbm [thread:$0]  %s3510, 16, %s3507, %s3491
        $region168: #{ssgpool_forward.1} parent=163 // pred_fallthru
          _
        // Predicated region
        $region169: #{ssgpool_forward.1} parent=163 // pred_check
          %p3513 = pneg %p913
        $region170: #{ssgpool_forward.1} parent=163 // pred_check_branch
          %3515 = sbr.rel (%p3513) target = $region172
        $region171: #{ssgpool_forward.1} parent=163 // pred_region
          _
        $region172: #{ssgpool_forward.1} parent=163 // pred_fallthru
          _
        // Predicated region
        $region173: #{ssgpool_forward.1} parent=163 // pred_check
          %p3516 = pneg %p939
        $region174: #{ssgpool_forward.1} parent=163 // pred_check_branch
          %3518 = sbr.rel (%p3516) target = $region176
        $region175: #{ssgpool_forward.1} parent=163 // pred_region
          _
        $region176: #{ssgpool_forward.1} parent=163 // pred_fallthru
          _
      $region164: #{ssgpool_forward.1} parent=5 // pred_fallthru
        _
      %p3519 = scmp.le.s32.totalorder 2, %s93
      // Predicated region
      $region177: #{ssgpool_forward.1} parent=5 // pred_check
        %p3520 = pneg %p3519
      $region178: #{ssgpool_forward.1} parent=5 // pred_check_branch
        %3522 = sbr.rel (%p3520) target = $region180
      $region179: #{ssgpool_forward.1} parent=5 // pred_region
        %s3523 = ssub.s32 %s93, 2
        // Predicated region
        $region181: #{ssgpool_forward.1} parent=179 // pred_check
          %p3524 = pneg %p893
        $region182: #{ssgpool_forward.1} parent=179 // pred_check_branch
          %3526 = sbr.rel (%p3524) target = $region184
        $region183: #{ssgpool_forward.1} parent=179 // pred_region
          %s3527 = sand.u32 %s878, 1
          %s3528 = scalar_lea.sflag [#allocation6], %s3527
          %s3529 = sand.u32 %s878, 1
          %s3530 = scalar_lea.vmem [#allocation5], %s3529
          %3531 = dma.done %s3528, 16
        $region184: #{ssgpool_forward.1} parent=179 // pred_fallthru
          _
        // Predicated region
        $region185: #{ssgpool_forward.1} parent=179 // pred_check
          %p3532 = pneg %p919
        $region186: #{ssgpool_forward.1} parent=179 // pred_check_branch
          %3534 = sbr.rel (%p3532) target = $region188
        $region187: #{ssgpool_forward.1} parent=179 // pred_region
          %p3535 = scmp.lt.s32.totalorder %s99, 1
          %s3536 = scalar_select %p3535, %s99, 1
          %s3537 = scalar_lea.vmem %s75, %s3536
        $region188: #{ssgpool_forward.1} parent=179 // pred_fallthru
          _
        // Predicated region
        $region189: #{ssgpool_forward.1} parent=179 // pred_check
          %p3538 = pneg %p945
        $region190: #{ssgpool_forward.1} parent=179 // pred_check_branch
          %3540 = sbr.rel (%p3538) target = $region192
        $region191: #{ssgpool_forward.1} parent=179 // pred_region
          %p3541 = scmp.lt.s32.totalorder %s99, 1
          %s3542 = scalar_select %p3541, %s99, 1
          %s3543 = scalar_lea.vmem %s77, %s3542
        $region192: #{ssgpool_forward.1} parent=179 // pred_fallthru
          _
      $region180: #{ssgpool_forward.1} parent=5 // pred_fallthru
        _
    $region6: #{ssgpool_forward.1} parent=1 // loop_footer
      %s97 = sadd.s32 1, %s93
    $region7: #{ssgpool_forward.1} parent=1 // loop_footer_branch
      %92 = sbr.rel target = $region3
    $region8: #{ssgpool_forward.1} parent=1 // loop_exit
      _
    %3544 = vsyncpa [#allocation6], 1
    %s3545 = scalar_lea.sflag [#allocation6], 1
    %3546 = vsyncpa %s3545, 1

</llo_original>
